<compile_context>
chip_gen: v7x
topology: tpu7x:2x2x1
jax: 0.10.0
libtpu: 0.0.40
codegen_flags: <defaults>
</compile_context>

<pallas_src>
import functools

import jax
import jax.numpy as jnp
from jax import lax
from jax.experimental import pallas as pl
from jax.experimental.pallas import tpu as pltpu


# ---------------------------------------------------------------------------
# In-kernel helper
# ---------------------------------------------------------------------------
def _flat_shift(x, s):
    """y[:, f] = x[:, f + s] along the flattened spatial axis, zero outside."""
    if s == 0:
        return x
    c, l = x.shape
    pad = jnp.zeros((c, abs(s)), x.dtype)
    if s > 0:
        return jnp.concatenate([x[:, s:], pad], axis=1)
    return jnp.concatenate([pad, x[:, : l + s]], axis=1)


# ---------------------------------------------------------------------------
# Pallas kernel: full non_bottleneck_1d forward for one batch element
# ---------------------------------------------------------------------------
def nb1d_kernel(
    x_ref, col_ref,
    w1_ref, b1_ref,      # conv3x1_1   fused weight (C, 3C), bias (C, 1)
    w2_ref, b2_ref,      # conv1x3_1
    s1_ref, t1_ref,      # bn1 folded scale / shift (C, 1)
    w3_ref, b3_ref,      # conv3x1_2 (dilated along H)
    w4_ref, b4_ref,      # conv1x3_2 (dilated along W)
    s2_ref, t2_ref,      # bn2
    o_ref,
    *, dil, width, compute_dtype,
):
    col = col_ref[...]                                    # (1, H*W) int32: w index

    def conv_h(y, w_ref, b_ref, d):
        # 3-tap conv along H: taps at row offsets -d, 0, +d  ==  flat +-d*width.
        yc = y.astype(compute_dtype)
        stacked = jnp.concatenate(
            [_flat_shift(yc, -d * width), yc, _flat_shift(yc, d * width)], axis=0)
        out = jnp.dot(w_ref[...], stacked, preferred_element_type=jnp.float32)
        return out + b_ref[...]

    def conv_w(y, w_ref, b_ref, d):
        # 3-tap conv along W: flat shifts by +-d, masked at row boundaries.
        yc = y.astype(compute_dtype)
        zero = jnp.zeros((), compute_dtype)
        left = jnp.where(col >= d, _flat_shift(yc, -d), zero)           # x[.., w-d]
        right = jnp.where(col < width - d, _flat_shift(yc, d), zero)    # x[.., w+d]
        stacked = jnp.concatenate([left, yc, right], axis=0)
        out = jnp.dot(w_ref[...], stacked, preferred_element_type=jnp.float32)
        return out + b_ref[...]

    y = jnp.maximum(conv_h(x_ref[0], w1_ref, b1_ref, 1), 0.0)   # conv3x1_1 + relu
    y = conv_w(y, w2_ref, b2_ref, 1)                            # conv1x3_1
    y = jnp.maximum(y * s1_ref[...] + t1_ref[...], 0.0)         # bn1 + relu
    y = jnp.maximum(conv_h(y, w3_ref, b3_ref, dil), 0.0)        # conv3x1_2 + relu
    y = conv_w(y, w4_ref, b4_ref, dil)                          # conv1x3_2
    y = y * s2_ref[...] + t2_ref[...]                           # bn2
    # dropprob == 0 -> Dropout2d branch skipped (matches `if self.dropout.p != 0`).
    # TODO(synk): training-mode Dropout2d (p != 0) would need pltpu PRNG masks.
    o_ref[0] = jnp.maximum(y + x_ref[0].astype(jnp.float32), 0.0).astype(o_ref.dtype)


# ---------------------------------------------------------------------------
# Wrapper (NCHW in / NCHW out, like the PyTorch module; no transposes)
# ---------------------------------------------------------------------------
def non_bottleneck_1d_pallas(x_nchw, params, dilated, compute_dtype=jnp.bfloat16):
    N, C, H, W = x_nchw.shape
    HW = H * W
    # Whole-image tile: the shifts assume the dilation fits inside the tile.
    assert dilated < H and dilated < W, "dilation must be smaller than H and W"

    x_flat = x_nchw.reshape(N, C, HW)            # collapse of trailing dims: free
    col = (jnp.arange(HW, dtype=jnp.int32) % W).reshape(1, HW)

    def fuse_w(w):   # (3, Cin, Cout) taps -> (Cout, 3*Cin), tap-major contraction
        return jnp.transpose(w, (2, 0, 1)).reshape(w.shape[2], -1).astype(compute_dtype)

    def per_ch(v):   # (1, C) -> (C, 1) column vector (single lane broadcast)
        return v.reshape(-1, 1).astype(jnp.float32)

    p = [
        fuse_w(params["w31_1"]), per_ch(params["b31_1"]),
        fuse_w(params["w13_1"]), per_ch(params["b13_1"]),
        per_ch(params["s1"]), per_ch(params["t1"]),
        fuse_w(params["w31_2"]), per_ch(params["b31_2"]),
        fuse_w(params["w13_2"]), per_ch(params["b13_2"]),
        per_ch(params["s2"]), per_ch(params["t2"]),
    ]

    # TODO(synk): for large images (or v7x's 64 MiB VMEM), add halo-based H/W
    # tiling (grid=(N, H_tiles) with a (1+dil)-row halo) instead of one
    # whole-image block per grid step.
    out = pl.pallas_call(
        functools.partial(nb1d_kernel, dil=dilated, width=W,
                          compute_dtype=compute_dtype),
        out_shape=jax.ShapeDtypeStruct((N, C, HW), x_nchw.dtype),
        grid=(N,),
        in_specs=[pl.BlockSpec((1, C, HW), lambda n: (n, 0, 0)),
                  pl.BlockSpec((1, HW), lambda n: (0, 0))]
                 + [pl.BlockSpec(a.shape, lambda n: (0, 0)) for a in p],
        out_specs=pl.BlockSpec((1, C, HW), lambda n: (n, 0, 0)),
        compiler_params=pltpu.CompilerParams(
            dimension_semantics=("parallel",),
            vmem_limit_bytes=64 * 1024 * 1024),
    )(x_flat, col, *p)

    return out.reshape(N, C, H, W)


# ---------------------------------------------------------------------------
# Pure-JAX reference (lax.conv_general_dilated, f32) for verification
# ---------------------------------------------------------------------------
def non_bottleneck_1d_ref(x_nchw, params, dilated):
    x = jnp.transpose(x_nchw, (0, 2, 3, 1))                # NHWC

    def conv_h(y, w, b, dil):  # w: (3, Cin, Cout) [tap, cin, cout]
        k = w[:, None]                                     # HWIO (3,1,C,C)
        out = lax.conv_general_dilated(
            y, k, (1, 1), ((dil, dil), (0, 0)), rhs_dilation=(dil, 1),
            dimension_numbers=("NHWC", "HWIO", "NHWC"))
        return out + b[0]

    def conv_w(y, w, b, dil):
        k = w[None]                                        # HWIO (1,3,C,C)
        out = lax.conv_general_dilated(
            y, k, (1, 1), ((0, 0), (dil, dil)), rhs_dilation=(1, dil),
            dimension_numbers=("NHWC", "HWIO", "NHWC"))
        return out + b[0]

    y = jax.nn.relu(conv_h(x, params["w31_1"], params["b31_1"], 1))
    y = conv_w(y, params["w13_1"], params["b13_1"], 1)
    y = jax.nn.relu(y * params["s1"][0] + params["t1"][0])
    y = jax.nn.relu(conv_h(y, params["w31_2"], params["b31_2"], dilated))
    y = conv_w(y, params["w13_2"], params["b13_2"], dilated)
    y = y * params["s2"][0] + params["t2"][0]
    out = jax.nn.relu(y + x)
    return jnp.transpose(out, (0, 3, 1, 2))


# ---------------------------------------------------------------------------
# Deterministic parameter init (shapes per nn.Conv2d / nn.BatchNorm2d in __init__)
# ---------------------------------------------------------------------------
def make_params(key, C, eps=1e-3):
    ks = jax.random.split(key, 16)
    p = {}
    # conv weights stored as (tap, cin, cout); conv bias as (1, cout)
    p["w31_1"] = 0.2 * jax.random.normal(ks[0], (3, C, C), jnp.float32)
    p["b31_1"] = 0.1 * jax.random.normal(ks[1], (1, C), jnp.float32)
    p["w13_1"] = 0.2 * jax.random.normal(ks[2], (3, C, C), jnp.float32)
    p["b13_1"] = 0.1 * jax.random.normal(ks[3], (1, C), jnp.float32)
    p["w31_2"] = 0.2 * jax.random.normal(ks[4], (3, C, C), jnp.float32)
    p["b31_2"] = 0.1 * jax.random.normal(ks[5], (1, C), jnp.float32)
    p["w13_2"] = 0.2 * jax.random.normal(ks[6], (3, C, C), jnp.float32)
    p["b13_2"] = 0.1 * jax.random.normal(ks[7], (1, C), jnp.float32)

    def bn(kg, kb, km, kv):
        gamma = 1.0 + 0.1 * jax.random.normal(kg, (1, C), jnp.float32)
        beta = 0.1 * jax.random.normal(kb, (1, C), jnp.float32)
        mean = 0.1 * jax.random.normal(km, (1, C), jnp.float32)
        var = jnp.abs(jax.random.normal(kv, (1, C), jnp.float32)) + 0.5
        scale = gamma * lax.rsqrt(var + eps)
        shift = beta - mean * scale
        return scale, shift

    p["s1"], p["t1"] = bn(ks[8], ks[9], ks[10], ks[11])
    p["s2"], p["t2"] = bn(ks[12], ks[13], ks[14], ks[15])
    return p


if __name__ == "__main__":
    import numpy as np

    key = jax.random.PRNGKey(0)
    N, C, H, W = 2, 8, 16, 128          # W multiple of 128 -> lane-dense tiles
    dilated = 2
    # dropprob = 0.0  (dropout branch not taken, as in the PyTorch forward)

    kx, kp = jax.random.split(key)
    x = jax.random.normal(kx, (N, C, H, W), jnp.float32)   # NCHW like PyTorch
    params = make_params(kp, C)

    ref = jax.block_until_ready(non_bottleneck_1d_ref(x, params, dilated))

    # f32 matmul path: faithful to the f32 PyTorch module -> tight tolerance.
    out_f32 = jax.block_until_ready(
        non_bottleneck_1d_pallas(x, params, dilated, compute_dtype=jnp.float32))
    np.testing.assert_allclose(np.asarray(out_f32), np.asarray(ref),
                               rtol=1e-3, atol=1e-3)

    # bf16 matmul inputs / f32 accumulation (v6e/v7x fast path): tolerance only
    # reflects bf16 rounding of the matmul inputs.
    out_bf16 = jax.block_until_ready(
        non_bottleneck_1d_pallas(x, params, dilated, compute_dtype=jnp.bfloat16))
    np.testing.assert_allclose(np.asarray(out_bf16), np.asarray(ref),
                               rtol=1e-1, atol=1e-1)

    print("KERNEL_OK")
</pallas_src>

<mosaic_0001>
module attributes {stable_mosaic.version = 11 : i64} {
  func.func @nb1d_kernel(%arg0: i32, %arg1: memref<1x8x2048xf32, #tpu.memory_space<vmem>>, %arg2: memref<1x2048xi32, #tpu.memory_space<vmem>>, %arg3: memref<8x24xf32, #tpu.memory_space<vmem>>, %arg4: memref<8x1xf32, #tpu.memory_space<vmem>>, %arg5: memref<8x24xf32, #tpu.memory_space<vmem>>, %arg6: memref<8x1xf32, #tpu.memory_space<vmem>>, %arg7: memref<8x1xf32, #tpu.memory_space<vmem>>, %arg8: memref<8x1xf32, #tpu.memory_space<vmem>>, %arg9: memref<8x24xf32, #tpu.memory_space<vmem>>, %arg10: memref<8x1xf32, #tpu.memory_space<vmem>>, %arg11: memref<8x24xf32, #tpu.memory_space<vmem>>, %arg12: memref<8x1xf32, #tpu.memory_space<vmem>>, %arg13: memref<8x1xf32, #tpu.memory_space<vmem>>, %arg14: memref<8x1xf32, #tpu.memory_space<vmem>>, %arg15: memref<1x8x2048xf32, #tpu.memory_space<vmem>>) attributes {dimension_semantics = [#tpu.dimension_semantics<parallel>], iteration_bounds = array<i64: 2>, scalar_prefetch = 0 : i64, scratch_operands = 0 : i64, tpu.core_type = #tpu.core_type<tc>, window_params = [{transform_indices = @transform_0, window_bounds = array<i64: 1, 8, 2048>}, {pipeline_mode = #tpu.pipeline_mode<synchronous>, transform_indices = @transform_1, window_bounds = array<i64: 1, 2048>}, {pipeline_mode = #tpu.pipeline_mode<synchronous>, transform_indices = @transform_2, window_bounds = array<i64: 8, 24>}, {pipeline_mode = #tpu.pipeline_mode<synchronous>, transform_indices = @transform_3, window_bounds = array<i64: 8, 1>}, {pipeline_mode = #tpu.pipeline_mode<synchronous>, transform_indices = @transform_4, window_bounds = array<i64: 8, 24>}, {pipeline_mode = #tpu.pipeline_mode<synchronous>, transform_indices = @transform_5, window_bounds = array<i64: 8, 1>}, {pipeline_mode = #tpu.pipeline_mode<synchronous>, transform_indices = @transform_6, window_bounds = array<i64: 8, 1>}, {pipeline_mode = #tpu.pipeline_mode<synchronous>, transform_indices = @transform_7, window_bounds = array<i64: 8, 1>}, {pipeline_mode = #tpu.pipeline_mode<synchronous>, transform_indices = @transform_8, window_bounds = array<i64: 8, 24>}, {pipeline_mode = #tpu.pipeline_mode<synchronous>, transform_indices = @transform_9, window_bounds = array<i64: 8, 1>}, {pipeline_mode = #tpu.pipeline_mode<synchronous>, transform_indices = @transform_10, window_bounds = array<i64: 8, 24>}, {pipeline_mode = #tpu.pipeline_mode<synchronous>, transform_indices = @transform_11, window_bounds = array<i64: 8, 1>}, {pipeline_mode = #tpu.pipeline_mode<synchronous>, transform_indices = @transform_12, window_bounds = array<i64: 8, 1>}, {pipeline_mode = #tpu.pipeline_mode<synchronous>, transform_indices = @transform_13, window_bounds = array<i64: 8, 1>}, {transform_indices = @transform_14, window_bounds = array<i64: 1, 8, 2048>}]} {
    %c0 = arith.constant 0 : index
    %c0_0 = arith.constant 0 : index
    %0 = vector.load %arg2[%c0, %c0_0] : memref<1x2048xi32, #tpu.memory_space<vmem>>, vector<1x2048xi32>
    %c0_1 = arith.constant 0 : index
    %c0_2 = arith.constant 0 : index
    %c0_3 = arith.constant 0 : index
    %1 = vector.load %arg1[%c0_1, %c0_2, %c0_3] : memref<1x8x2048xf32, #tpu.memory_space<vmem>>, vector<1x8x2048xf32>
    %2 = vector.shape_cast %1 : vector<1x8x2048xf32> to vector<8x2048xf32>
    %cst = arith.constant 0.000000e+00 : f32
    %3 = vector.broadcast %cst : f32 to vector<8x128xf32>
    %4 = vector.extract_strided_slice %2 {offsets = [0, 0], sizes = [8, 1920], strides = [1, 1]} : vector<8x2048xf32> to vector<8x1920xf32>
    %5 = tpu.concatenate %3, %4 in 1 : vector<8x128xf32>, vector<8x1920xf32> -> vector<8x2048xf32>
    %cst_4 = arith.constant 0.000000e+00 : f32
    %6 = vector.broadcast %cst_4 : f32 to vector<8x128xf32>
    %7 = vector.extract_strided_slice %2 {offsets = [0, 128], sizes = [8, 1920], strides = [1, 1]} : vector<8x2048xf32> to vector<8x1920xf32>
    %8 = tpu.concatenate %7, %6 in 1 : vector<8x1920xf32>, vector<8x128xf32> -> vector<8x2048xf32>
    %9 = tpu.concatenate %5, %2, %8 in 0 : vector<8x2048xf32>, vector<8x2048xf32>, vector<8x2048xf32> -> vector<24x2048xf32>
    %c0_5 = arith.constant 0 : index
    %c0_6 = arith.constant 0 : index
    %10 = vector.load %arg3[%c0_5, %c0_6] : memref<8x24xf32, #tpu.memory_space<vmem>>, vector<8x24xf32>
    %cst_7 = arith.constant dense<0.000000e+00> : vector<8x2048xf32>
    %11 = tpu.matmul %10, %9, %cst_7 {dimension_numbers = #tpu.dot_dimension_numbers<[1], [0], [0], [1], [0, 0, 1, 1], [], []>} : vector<8x24xf32>, vector<24x2048xf32>, vector<8x2048xf32> -> vector<8x2048xf32>
    %c0_8 = arith.constant 0 : index
    %c0_9 = arith.constant 0 : index
    %12 = vector.load %arg4[%c0_8, %c0_9] : memref<8x1xf32, #tpu.memory_space<vmem>>, vector<8x1xf32>
    %13 = vector.broadcast %12 : vector<8x1xf32> to vector<8x2048xf32>
    %14 = arith.addf %11, %13 : vector<8x2048xf32>
    %cst_10 = arith.constant 0.000000e+00 : f32
    %15 = vector.broadcast %cst_10 : f32 to vector<8x2048xf32>
    %16 = arith.maximumf %14, %15 : vector<8x2048xf32>
    %c1_i32 = arith.constant 1 : i32
    %17 = vector.broadcast %c1_i32 : i32 to vector<1x2048xi32>
    %18 = arith.cmpi sge, %0, %17 : vector<1x2048xi32>
    %cst_11 = arith.constant 0.000000e+00 : f32
    %19 = vector.broadcast %cst_11 : f32 to vector<8x1xf32>
    %20 = vector.extract_strided_slice %16 {offsets = [0, 0], sizes = [8, 2047], strides = [1, 1]} : vector<8x2048xf32> to vector<8x2047xf32>
    %21 = tpu.concatenate %19, %20 in 1 : vector<8x1xf32>, vector<8x2047xf32> -> vector<8x2048xf32>
    %cst_12 = arith.constant 0.000000e+00 : f32
    %22 = vector.shape_cast %18 : vector<1x2048xi1> to vector<1x2048xi1>
    %23 = vector.broadcast %22 : vector<1x2048xi1> to vector<8x2048xi1>
    %24 = vector.broadcast %cst_12 : f32 to vector<8x2048xf32>
    %25 = arith.select %23, %21, %24 : vector<8x2048xi1>, vector<8x2048xf32>
    %c127_i32 = arith.constant 127 : i32
    %26 = vector.broadcast %c127_i32 : i32 to vector<1x2048xi32>
    %27 = arith.cmpi slt, %0, %26 : vector<1x2048xi32>
    %cst_13 = arith.constant 0.000000e+00 : f32
    %28 = vector.broadcast %cst_13 : f32 to vector<8x1xf32>
    %29 = vector.extract_strided_slice %16 {offsets = [0, 1], sizes = [8, 2047], strides = [1, 1]} : vector<8x2048xf32> to vector<8x2047xf32>
    %30 = tpu.concatenate %29, %28 in 1 : vector<8x2047xf32>, vector<8x1xf32> -> vector<8x2048xf32>
    %cst_14 = arith.constant 0.000000e+00 : f32
    %31 = vector.shape_cast %27 : vector<1x2048xi1> to vector<1x2048xi1>
    %32 = vector.broadcast %31 : vector<1x2048xi1> to vector<8x2048xi1>
    %33 = vector.broadcast %cst_14 : f32 to vector<8x2048xf32>
    %34 = arith.select %32, %30, %33 : vector<8x2048xi1>, vector<8x2048xf32>
    %35 = tpu.concatenate %25, %16, %34 in 0 : vector<8x2048xf32>, vector<8x2048xf32>, vector<8x2048xf32> -> vector<24x2048xf32>
    %c0_15 = arith.constant 0 : index
    %c0_16 = arith.constant 0 : index
    %36 = vector.load %arg5[%c0_15, %c0_16] : memref<8x24xf32, #tpu.memory_space<vmem>>, vector<8x24xf32>
    %cst_17 = arith.constant dense<0.000000e+00> : vector<8x2048xf32>
    %37 = tpu.matmul %36, %35, %cst_17 {dimension_numbers = #tpu.dot_dimension_numbers<[1], [0], [0], [1], [0, 0, 1, 1], [], []>} : vector<8x24xf32>, vector<24x2048xf32>, vector<8x2048xf32> -> vector<8x2048xf32>
    %c0_18 = arith.constant 0 : index
    %c0_19 = arith.constant 0 : index
    %38 = vector.load %arg6[%c0_18, %c0_19] : memref<8x1xf32, #tpu.memory_space<vmem>>, vector<8x1xf32>
    %39 = vector.broadcast %38 : vector<8x1xf32> to vector<8x2048xf32>
    %40 = arith.addf %37, %39 : vector<8x2048xf32>
    %c0_20 = arith.constant 0 : index
    %c0_21 = arith.constant 0 : index
    %41 = vector.load %arg7[%c0_20, %c0_21] : memref<8x1xf32, #tpu.memory_space<vmem>>, vector<8x1xf32>
    %42 = vector.broadcast %41 : vector<8x1xf32> to vector<8x2048xf32>
    %43 = arith.mulf %40, %42 : vector<8x2048xf32>
    %c0_22 = arith.constant 0 : index
    %c0_23 = arith.constant 0 : index
    %44 = vector.load %arg8[%c0_22, %c0_23] : memref<8x1xf32, #tpu.memory_space<vmem>>, vector<8x1xf32>
    %45 = vector.broadcast %44 : vector<8x1xf32> to vector<8x2048xf32>
    %46 = arith.addf %43, %45 : vector<8x2048xf32>
    %cst_24 = arith.constant 0.000000e+00 : f32
    %47 = vector.broadcast %cst_24 : f32 to vector<8x2048xf32>
    %48 = arith.maximumf %46, %47 : vector<8x2048xf32>
    %cst_25 = arith.constant 0.000000e+00 : f32
    %49 = vector.broadcast %cst_25 : f32 to vector<8x256xf32>
    %50 = vector.extract_strided_slice %48 {offsets = [0, 0], sizes = [8, 1792], strides = [1, 1]} : vector<8x2048xf32> to vector<8x1792xf32>
    %51 = tpu.concatenate %49, %50 in 1 : vector<8x256xf32>, vector<8x1792xf32> -> vector<8x2048xf32>
    %cst_26 = arith.constant 0.000000e+00 : f32
    %52 = vector.broadcast %cst_26 : f32 to vector<8x256xf32>
    %53 = vector.extract_strided_slice %48 {offsets = [0, 256], sizes = [8, 1792], strides = [1, 1]} : vector<8x2048xf32> to vector<8x1792xf32>
    %54 = tpu.concatenate %53, %52 in 1 : vector<8x1792xf32>, vector<8x256xf32> -> vector<8x2048xf32>
    %55 = tpu.concatenate %51, %48, %54 in 0 : vector<8x2048xf32>, vector<8x2048xf32>, vector<8x2048xf32> -> vector<24x2048xf32>
    %c0_27 = arith.constant 0 : index
    %c0_28 = arith.constant 0 : index
    %56 = vector.load %arg9[%c0_27, %c0_28] : memref<8x24xf32, #tpu.memory_space<vmem>>, vector<8x24xf32>
    %cst_29 = arith.constant dense<0.000000e+00> : vector<8x2048xf32>
    %57 = tpu.matmul %56, %55, %cst_29 {dimension_numbers = #tpu.dot_dimension_numbers<[1], [0], [0], [1], [0, 0, 1, 1], [], []>} : vector<8x24xf32>, vector<24x2048xf32>, vector<8x2048xf32> -> vector<8x2048xf32>
    %c0_30 = arith.constant 0 : index
    %c0_31 = arith.constant 0 : index
    %58 = vector.load %arg10[%c0_30, %c0_31] : memref<8x1xf32, #tpu.memory_space<vmem>>, vector<8x1xf32>
    %59 = vector.broadcast %58 : vector<8x1xf32> to vector<8x2048xf32>
    %60 = arith.addf %57, %59 : vector<8x2048xf32>
    %cst_32 = arith.constant 0.000000e+00 : f32
    %61 = vector.broadcast %cst_32 : f32 to vector<8x2048xf32>
    %62 = arith.maximumf %60, %61 : vector<8x2048xf32>
    %c2_i32 = arith.constant 2 : i32
    %63 = vector.broadcast %c2_i32 : i32 to vector<1x2048xi32>
    %64 = arith.cmpi sge, %0, %63 : vector<1x2048xi32>
    %cst_33 = arith.constant 0.000000e+00 : f32
    %65 = vector.broadcast %cst_33 : f32 to vector<8x2xf32>
    %66 = vector.extract_strided_slice %62 {offsets = [0, 0], sizes = [8, 2046], strides = [1, 1]} : vector<8x2048xf32> to vector<8x2046xf32>
    %67 = tpu.concatenate %65, %66 in 1 : vector<8x2xf32>, vector<8x2046xf32> -> vector<8x2048xf32>
    %cst_34 = arith.constant 0.000000e+00 : f32
    %68 = vector.shape_cast %64 : vector<1x2048xi1> to vector<1x2048xi1>
    %69 = vector.broadcast %68 : vector<1x2048xi1> to vector<8x2048xi1>
    %70 = vector.broadcast %cst_34 : f32 to vector<8x2048xf32>
    %71 = arith.select %69, %67, %70 : vector<8x2048xi1>, vector<8x2048xf32>
    %c126_i32 = arith.constant 126 : i32
    %72 = vector.broadcast %c126_i32 : i32 to vector<1x2048xi32>
    %73 = arith.cmpi slt, %0, %72 : vector<1x2048xi32>
    %cst_35 = arith.constant 0.000000e+00 : f32
    %74 = vector.broadcast %cst_35 : f32 to vector<8x2xf32>
    %75 = vector.extract_strided_slice %62 {offsets = [0, 2], sizes = [8, 2046], strides = [1, 1]} : vector<8x2048xf32> to vector<8x2046xf32>
    %76 = tpu.concatenate %75, %74 in 1 : vector<8x2046xf32>, vector<8x2xf32> -> vector<8x2048xf32>
    %cst_36 = arith.constant 0.000000e+00 : f32
    %77 = vector.shape_cast %73 : vector<1x2048xi1> to vector<1x2048xi1>
    %78 = vector.broadcast %77 : vector<1x2048xi1> to vector<8x2048xi1>
    %79 = vector.broadcast %cst_36 : f32 to vector<8x2048xf32>
    %80 = arith.select %78, %76, %79 : vector<8x2048xi1>, vector<8x2048xf32>
    %81 = tpu.concatenate %71, %62, %80 in 0 : vector<8x2048xf32>, vector<8x2048xf32>, vector<8x2048xf32> -> vector<24x2048xf32>
    %c0_37 = arith.constant 0 : index
    %c0_38 = arith.constant 0 : index
    %82 = vector.load %arg11[%c0_37, %c0_38] : memref<8x24xf32, #tpu.memory_space<vmem>>, vector<8x24xf32>
    %cst_39 = arith.constant dense<0.000000e+00> : vector<8x2048xf32>
    %83 = tpu.matmul %82, %81, %cst_39 {dimension_numbers = #tpu.dot_dimension_numbers<[1], [0], [0], [1], [0, 0, 1, 1], [], []>} : vector<8x24xf32>, vector<24x2048xf32>, vector<8x2048xf32> -> vector<8x2048xf32>
    %c0_40 = arith.constant 0 : index
    %c0_41 = arith.constant 0 : index
    %84 = vector.load %arg12[%c0_40, %c0_41] : memref<8x1xf32, #tpu.memory_space<vmem>>, vector<8x1xf32>
    %85 = vector.broadcast %84 : vector<8x1xf32> to vector<8x2048xf32>
    %86 = arith.addf %83, %85 : vector<8x2048xf32>
    %c0_42 = arith.constant 0 : index
    %c0_43 = arith.constant 0 : index
    %87 = vector.load %arg13[%c0_42, %c0_43] : memref<8x1xf32, #tpu.memory_space<vmem>>, vector<8x1xf32>
    %88 = vector.broadcast %87 : vector<8x1xf32> to vector<8x2048xf32>
    %89 = arith.mulf %86, %88 : vector<8x2048xf32>
    %c0_44 = arith.constant 0 : index
    %c0_45 = arith.constant 0 : index
    %90 = vector.load %arg14[%c0_44, %c0_45] : memref<8x1xf32, #tpu.memory_space<vmem>>, vector<8x1xf32>
    %91 = vector.broadcast %90 : vector<8x1xf32> to vector<8x2048xf32>
    %92 = arith.addf %89, %91 : vector<8x2048xf32>
    %c0_46 = arith.constant 0 : index
    %c0_47 = arith.constant 0 : index
    %c0_48 = arith.constant 0 : index
    %93 = vector.load %arg1[%c0_46, %c0_47, %c0_48] : memref<1x8x2048xf32, #tpu.memory_space<vmem>>, vector<1x8x2048xf32>
    %94 = vector.shape_cast %93 : vector<1x8x2048xf32> to vector<8x2048xf32>
    %95 = arith.addf %92, %94 : vector<8x2048xf32>
    %cst_49 = arith.constant 0.000000e+00 : f32
    %96 = vector.broadcast %cst_49 : f32 to vector<8x2048xf32>
    %97 = arith.maximumf %95, %96 : vector<8x2048xf32>
    %c0_50 = arith.constant 0 : index
    %c0_51 = arith.constant 0 : index
    %c0_52 = arith.constant 0 : index
    %98 = vector.load %arg15[%c0_50, %c0_51, %c0_52] : memref<1x8x2048xf32, #tpu.memory_space<vmem>>, vector<1x8x2048xf32>
    %99 = vector.shape_cast %98 : vector<1x8x2048xf32> to vector<8x2048xf32>
    %100 = vector.shape_cast %97 : vector<8x2048xf32> to vector<1x8x2048xf32>
    tpu.vector_store %arg15[%c0_50, %c0_51, %c0_52], %100 {strides = array<i32>} : memref<1x8x2048xf32, #tpu.memory_space<vmem>>, vector<1x8x2048xf32>,
    return
  }
  func.func @transform_0(%arg0: i32) -> (i32, i32, i32) {
    %c0_i32 = arith.constant 0 : i32
    %c0_i32_0 = arith.constant 0 : i32
    %c0_i32_1 = arith.constant 0 : i32
    return %arg0, %c0_i32, %c0_i32_0 : i32, i32, i32
  }
  func.func @transform_1(%arg0: i32) -> (i32, i32) {
    %c0_i32 = arith.constant 0 : i32
    %c0_i32_0 = arith.constant 0 : i32
    %c0_i32_1 = arith.constant 0 : i32
    return %c0_i32, %c0_i32_0 : i32, i32
  }
  func.func @transform_2(%arg0: i32) -> (i32, i32) {
    %c0_i32 = arith.constant 0 : i32
    %c0_i32_0 = arith.constant 0 : i32
    %c0_i32_1 = arith.constant 0 : i32
    return %c0_i32, %c0_i32_0 : i32, i32
  }
  func.func @transform_3(%arg0: i32) -> (i32, i32) {
    %c0_i32 = arith.constant 0 : i32
    %c0_i32_0 = arith.constant 0 : i32
    %c0_i32_1 = arith.constant 0 : i32
    return %c0_i32, %c0_i32_0 : i32, i32
  }
  func.func @transform_4(%arg0: i32) -> (i32, i32) {
    %c0_i32 = arith.constant 0 : i32
    %c0_i32_0 = arith.constant 0 : i32
    %c0_i32_1 = arith.constant 0 : i32
    return %c0_i32, %c0_i32_0 : i32, i32
  }
  func.func @transform_5(%arg0: i32) -> (i32, i32) {
    %c0_i32 = arith.constant 0 : i32
    %c0_i32_0 = arith.constant 0 : i32
    %c0_i32_1 = arith.constant 0 : i32
    return %c0_i32, %c0_i32_0 : i32, i32
  }
  func.func @transform_6(%arg0: i32) -> (i32, i32) {
    %c0_i32 = arith.constant 0 : i32
    %c0_i32_0 = arith.constant 0 : i32
    %c0_i32_1 = arith.constant 0 : i32
    return %c0_i32, %c0_i32_0 : i32, i32
  }
  func.func @transform_7(%arg0: i32) -> (i32, i32) {
    %c0_i32 = arith.constant 0 : i32
    %c0_i32_0 = arith.constant 0 : i32
    %c0_i32_1 = arith.constant 0 : i32
    return %c0_i32, %c0_i32_0 : i32, i32
  }
  func.func @transform_8(%arg0: i32) -> (i32, i32) {
    %c0_i32 = arith.constant 0 : i32
    %c0_i32_0 = arith.constant 0 : i32
    %c0_i32_1 = arith.constant 0 : i32
    return %c0_i32, %c0_i32_0 : i32, i32
  }
  func.func @transform_9(%arg0: i32) -> (i32, i32) {
    %c0_i32 = arith.constant 0 : i32
    %c0_i32_0 = arith.constant 0 : i32
    %c0_i32_1 = arith.constant 0 : i32
    return %c0_i32, %c0_i32_0 : i32, i32
  }
  func.func @transform_10(%arg0: i32) -> (i32, i32) {
    %c0_i32 = arith.constant 0 : i32
    %c0_i32_0 = arith.constant 0 : i32
    %c0_i32_1 = arith.constant 0 : i32
    return %c0_i32, %c0_i32_0 : i32, i32
  }
  func.func @transform_11(%arg0: i32) -> (i32, i32) {
    %c0_i32 = arith.constant 0 : i32
    %c0_i32_0 = arith.constant 0 : i32
    %c0_i32_1 = arith.constant 0 : i32
    return %c0_i32, %c0_i32_0 : i32, i32
  }
  func.func @transform_12(%arg0: i32) -> (i32, i32) {
    %c0_i32 = arith.constant 0 : i32
    %c0_i32_0 = arith.constant 0 : i32
    %c0_i32_1 = arith.constant 0 : i32
    return %c0_i32, %c0_i32_0 : i32, i32
  }
  func.func @transform_13(%arg0: i32) -> (i32, i32) {
    %c0_i32 = arith.constant 0 : i32
    %c0_i32_0 = arith.constant 0 : i32
    %c0_i32_1 = arith.constant 0 : i32
    return %c0_i32, %c0_i32_0 : i32, i32
  }
  func.func @transform_14(%arg0: i32) -> (i32, i32, i32) {
    %c0_i32 = arith.constant 0 : i32
    %c0_i32_0 = arith.constant 0 : i32
    %c0_i32_1 = arith.constant 0 : i32
    return %arg0, %c0_i32, %c0_i32_0 : i32, i32, i32
  }
}

</mosaic_0001>

<llo_original>
// kernel: tpu_custom_call.1
$region0: #{tpu_custom_call.1}
  #allocation0 [shape = 'u32[]', space=smem, size = 0x4, offset = 0x4, fixed_abs, tag = 'smem constant byte address 0x4 - core index']
  #allocation1 [shape = 'u32[144,128]{1,0:T(1,128)}', space=vmem, size = 0x12000, scoped, tag = 'internal scratch']
  %s0 = inlined_call_operand.hbm [shape: f32[2,8,2048], index: 0, kind: input, shape index: {}]
  %s1 = inlined_call_operand.hbm [shape: s32[1,2048], index: 1, kind: input, shape index: {}]
  %s2 = inlined_call_operand.hbm [shape: f32[8,24], index: 2, kind: input, shape index: {}]
  %s3 = inlined_call_operand.hbm [shape: f32[8,1], index: 3, kind: input, shape index: {}]
  %s4 = inlined_call_operand.hbm [shape: f32[8,24], index: 4, kind: input, shape index: {}]
  %s5 = inlined_call_operand.hbm [shape: f32[8,1], index: 5, kind: input, shape index: {}]
  %s6 = inlined_call_operand.hbm [shape: f32[8,1], index: 6, kind: input, shape index: {}]
  %s7 = inlined_call_operand.hbm [shape: f32[8,1], index: 7, kind: input, shape index: {}]
  %s8 = inlined_call_operand.hbm [shape: f32[8,24], index: 8, kind: input, shape index: {}]
  %s9 = inlined_call_operand.hbm [shape: f32[8,1], index: 9, kind: input, shape index: {}]
  %s10 = inlined_call_operand.hbm [shape: f32[8,24], index: 10, kind: input, shape index: {}]
  %s11 = inlined_call_operand.hbm [shape: f32[8,1], index: 11, kind: input, shape index: {}]
  %s12 = inlined_call_operand.hbm [shape: f32[8,1], index: 12, kind: input, shape index: {}]
  %s13 = inlined_call_operand.hbm [shape: f32[8,1], index: 13, kind: input, shape index: {}]
  %s14 = inlined_call_operand.hbm [shape: f32[2,8,2048], index: 14, kind: output, shape index: {}]
  %s15 = sld [smem:[#allocation0]]
  $region145: #{tpu_custom_call.1} parent=0
    _
  %s17 = ssub.s32 1, %s15
  %s18 = scalar_select 0, %s17, %s15
  $region1: #{tpu_custom_call.1} parent=0
    #allocation2 [shape = 'u8[131072]{0}', space=vmem, size = 0x20000, scoped, tag = 'input window, operand 0']
    #allocation3 [shape = 's32[2]{0}', space=sflag, size = 0x8, scoped, tag = 'scoped memory for tpu_custom_call.1']
    #allocation4 [shape = 's32[2]{0}', space=sflag, size = 0x8, scoped, tag = 'scoped memory for tpu_custom_call.1']
    #allocation5 [shape = 'u8[8192]{0}', space=vmem, size = 0x2000, scoped, tag = 'input window, operand 1, single buffered']
    #allocation6 [shape = 's32[1]{0}', space=sflag, size = 0x4, scoped, tag = 'scoped memory for tpu_custom_call.1']
    #allocation7 [shape = 'u8[4096]{0}', space=vmem, size = 0x1000, scoped, tag = 'input window, operand 2, single buffered']
    #allocation8 [shape = 'u8[4096]{0}', space=vmem, size = 0x1000, scoped, tag = 'input window, operand 3, single buffered']
    #allocation9 [shape = 's32[1]{0}', space=sflag, size = 0x4, scoped, tag = 'scoped memory for tpu_custom_call.1']
    #allocation10 [shape = 'u8[4096]{0}', space=vmem, size = 0x1000, scoped, tag = 'input window, operand 4, single buffered']
    #allocation11 [shape = 'u8[4096]{0}', space=vmem, size = 0x1000, scoped, tag = 'input window, operand 5, single buffered']
    #allocation12 [shape = 's32[1]{0}', space=sflag, size = 0x4, scoped, tag = 'scoped memory for tpu_custom_call.1']
    #allocation13 [shape = 'u8[4096]{0}', space=vmem, size = 0x1000, scoped, tag = 'input window, operand 6, single buffered']
    #allocation14 [shape = 'u8[4096]{0}', space=vmem, size = 0x1000, scoped, tag = 'input window, operand 7, single buffered']
    #allocation15 [shape = 's32[1]{0}', space=sflag, size = 0x4, scoped, tag = 'scoped memory for tpu_custom_call.1']
    #allocation16 [shape = 'u8[4096]{0}', space=vmem, size = 0x1000, scoped, tag = 'input window, operand 8, single buffered']
    #allocation17 [shape = 'u8[4096]{0}', space=vmem, size = 0x1000, scoped, tag = 'input window, operand 9, single buffered']
    #allocation18 [shape = 's32[1]{0}', space=sflag, size = 0x4, scoped, tag = 'scoped memory for tpu_custom_call.1']
    #allocation19 [shape = 'u8[4096]{0}', space=vmem, size = 0x1000, scoped, tag = 'input window, operand 10, single buffered']
    #allocation20 [shape = 'u8[4096]{0}', space=vmem, size = 0x1000, scoped, tag = 'input window, operand 11, single buffered']
    #allocation21 [shape = 's32[1]{0}', space=sflag, size = 0x4, scoped, tag = 'scoped memory for tpu_custom_call.1']
    #allocation22 [shape = 'u8[4096]{0}', space=vmem, size = 0x1000, scoped, tag = 'input window, operand 12, single buffered']
    #allocation23 [shape = 'u8[4096]{0}', space=vmem, size = 0x1000, scoped, tag = 'input window, operand 13, single buffered']
    #allocation24 [shape = 's32[1]{0}', space=sflag, size = 0x4, scoped, tag = 'scoped memory for tpu_custom_call.1']
    #allocation25 [shape = 'u8[131072]{0}', space=vmem, size = 0x20000, scoped, tag = 'output window, operand 0']
    %19 = vsyncpa [#allocation3], 0
    %s20 = scalar_lea.sflag [#allocation3], 1
    %21 = vsyncpa %s20, 0
    %22 = vsyncpa [#allocation6], 0
    %23 = vsyncpa [#allocation9], 0
    %24 = vsyncpa [#allocation12], 0
    %25 = vsyncpa [#allocation15], 0
    %26 = vsyncpa [#allocation18], 0
    %27 = vsyncpa [#allocation21], 0
    %28 = vsyncpa [#allocation24], 0
    %29 = vsyncpa [#allocation4], 0
    %s30 = scalar_lea.sflag [#allocation4], 1
    %31 = vsyncpa %s30, 0
    loop: start=0, step=1, limit=4
    $region2: #{tpu_custom_call.1} parent=1 // loop_pre_header
      _
    $region3: #{tpu_custom_call.1} parent=1 // loop_header
      %s33 = sphi 0, %s37
      %p34 = scmp.ge.s32.totalorder %s33, 4
      %s43 = sphi 0, %s45
      %s46 = sphi 0, %s43
      %s47 = sphi 0, %s46
      %s63 = sphi 0, %s47
      %s67 = sphi 0, %s67
      %s69 = sphi 0, %s67
      %s70 = sphi 0, %s69
      %s84 = sphi 0, %s70
      %s88 = sphi 0, %s88
      %s90 = sphi 0, %s88
      %s91 = sphi 0, %s90
      %s105 = sphi 0, %s91
      %s109 = sphi 0, %s109
      %s111 = sphi 0, %s109
      %s112 = sphi 0, %s111
      %s126 = sphi 0, %s112
      %s130 = sphi 0, %s130
      %s132 = sphi 0, %s130
      %s133 = sphi 0, %s132
      %s147 = sphi 0, %s133
      %s151 = sphi 0, %s151
      %s153 = sphi 0, %s151
      %s154 = sphi 0, %s153
      %s168 = sphi 0, %s154
      %s172 = sphi 0, %s172
      %s174 = sphi 0, %s172
      %s175 = sphi 0, %s174
      %s189 = sphi 0, %s175
      %s193 = sphi 0, %s193
      %s195 = sphi 0, %s193
      %s196 = sphi 0, %s195
      %s210 = sphi 0, %s196
      %s214 = sphi 0, %s214
      %s216 = sphi 0, %s214
      %s217 = sphi 0, %s216
      %s231 = sphi 0, %s217
      %s235 = sphi 0, %s235
      %s237 = sphi 0, %s235
      %s238 = sphi 0, %s237
      %s252 = sphi 0, %s238
      %s256 = sphi 0, %s256
      %s258 = sphi 0, %s256
      %s259 = sphi 0, %s258
      %s273 = sphi 0, %s259
      %s277 = sphi 0, %s277
      %s279 = sphi 0, %s277
      %s280 = sphi 0, %s279
      %s294 = sphi 0, %s280
      %s298 = sphi 0, %s298
      %s300 = sphi 0, %s298
      %s301 = sphi 0, %s300
      %s315 = sphi 0, %s301
      %s319 = sphi 0, %s319
      %s321 = sphi 0, %s319
      %s322 = sphi 0, %s321
      %s336 = sphi 0, %s322
      %s342 = sphi 0, %s344
      %s345 = sphi 0, %s342
      %s346 = sphi 0, %s345
      %s362 = sphi 0, %s346
    $region4: #{tpu_custom_call.1} parent=1 // loop_header_branch
      %36 = sbr.rel (%p34) target = $region8
    $region5: #{tpu_custom_call.1} parent=1 // loop_body
      %s38 = ssub.s32 %s33, 1
      %s39 = ssub.s32 %s33, 2
      %s40 = sadd.s32 %s33, 1
      %s41 = ssub.s32 %s33, %s40
      %p42 = scmp.eq.s32.totalorder %s41, 0
      %s44 = sadd.s32 %s43, 1
      %s45 = scalar_select %p42, %s43, %s44
      %p48 = pneg %p42
      %p49 = scmp.eq.s32.totalorder %s33, 1
      %p50 = por %p48, %p49
      %p51 = scmp.ne.s32.totalorder %s43, %s46
      %p52 = scmp.eq.s32.totalorder %s33, 0
      %p53 = por %p51, %p52
      %p54 = scmp.ne.s32.totalorder %s43, %s46
      %p55 = scmp.eq.s32.totalorder %s38, 1
      %p56 = por %p54, %p55
      %p57 = scmp.ne.s32.totalorder %s46, %s47
      %p58 = scmp.eq.s32.totalorder %s38, 0
      %p59 = por %p57, %p58
      %p60 = scmp.ne.s32.totalorder %s46, %s47
      %p61 = scmp.eq.s32.totalorder %s39, 1
      %p62 = por %p60, %p61
      %p64 = scmp.ne.s32.totalorder %s47, %s63
      %p65 = scmp.eq.s32.totalorder %s39, 0
      %p66 = por %p64, %p65
      %s68 = sadd.s32 %s67, 1
      %p71 = scmp.eq.s32.totalorder %s33, 1
      %p72 = scmp.ne.s32.totalorder %s67, %s69
      %p73 = scmp.eq.s32.totalorder %s33, 0
      %p74 = por %p72, %p73
      %p75 = scmp.ne.s32.totalorder %s67, %s69
      %p76 = scmp.eq.s32.totalorder %s38, 1
      %p77 = por %p75, %p76
      %p78 = scmp.ne.s32.totalorder %s69, %s70
      %p79 = scmp.eq.s32.totalorder %s38, 0
      %p80 = por %p78, %p79
      %p81 = scmp.ne.s32.totalorder %s69, %s70
      %p82 = scmp.eq.s32.totalorder %s39, 1
      %p83 = por %p81, %p82
      %p85 = scmp.ne.s32.totalorder %s70, %s84
      %p86 = scmp.eq.s32.totalorder %s39, 0
      %p87 = por %p85, %p86
      %s89 = sadd.s32 %s88, 1
      %p92 = scmp.eq.s32.totalorder %s33, 1
      %p93 = scmp.ne.s32.totalorder %s88, %s90
      %p94 = scmp.eq.s32.totalorder %s33, 0
      %p95 = por %p93, %p94
      %p96 = scmp.ne.s32.totalorder %s88, %s90
      %p97 = scmp.eq.s32.totalorder %s38, 1
      %p98 = por %p96, %p97
      %p99 = scmp.ne.s32.totalorder %s90, %s91
      %p100 = scmp.eq.s32.totalorder %s38, 0
      %p101 = por %p99, %p100
      %p102 = scmp.ne.s32.totalorder %s90, %s91
      %p103 = scmp.eq.s32.totalorder %s39, 1
      %p104 = por %p102, %p103
      %p106 = scmp.ne.s32.totalorder %s91, %s105
      %p107 = scmp.eq.s32.totalorder %s39, 0
      %p108 = por %p106, %p107
      %s110 = sadd.s32 %s109, 1
      %p113 = scmp.eq.s32.totalorder %s33, 1
      %p114 = scmp.ne.s32.totalorder %s109, %s111
      %p115 = scmp.eq.s32.totalorder %s33, 0
      %p116 = por %p114, %p115
      %p117 = scmp.ne.s32.totalorder %s109, %s111
      %p118 = scmp.eq.s32.totalorder %s38, 1
      %p119 = por %p117, %p118
      %p120 = scmp.ne.s32.totalorder %s111, %s112
      %p121 = scmp.eq.s32.totalorder %s38, 0
      %p122 = por %p120, %p121
      %p123 = scmp.ne.s32.totalorder %s111, %s112
      %p124 = scmp.eq.s32.totalorder %s39, 1
      %p125 = por %p123, %p124
      %p127 = scmp.ne.s32.totalorder %s112, %s126
      %p128 = scmp.eq.s32.totalorder %s39, 0
      %p129 = por %p127, %p128
      %s131 = sadd.s32 %s130, 1
      %p134 = scmp.eq.s32.totalorder %s33, 1
      %p135 = scmp.ne.s32.totalorder %s130, %s132
      %p136 = scmp.eq.s32.totalorder %s33, 0
      %p137 = por %p135, %p136
      %p138 = scmp.ne.s32.totalorder %s130, %s132
      %p139 = scmp.eq.s32.totalorder %s38, 1
      %p140 = por %p138, %p139
      %p141 = scmp.ne.s32.totalorder %s132, %s133
      %p142 = scmp.eq.s32.totalorder %s38, 0
      %p143 = por %p141, %p142
      %p144 = scmp.ne.s32.totalorder %s132, %s133
      %p145 = scmp.eq.s32.totalorder %s39, 1
      %p146 = por %p144, %p145
      %p148 = scmp.ne.s32.totalorder %s133, %s147
      %p149 = scmp.eq.s32.totalorder %s39, 0
      %p150 = por %p148, %p149
      %s152 = sadd.s32 %s151, 1
      %p155 = scmp.eq.s32.totalorder %s33, 1
      %p156 = scmp.ne.s32.totalorder %s151, %s153
      %p157 = scmp.eq.s32.totalorder %s33, 0
      %p158 = por %p156, %p157
      %p159 = scmp.ne.s32.totalorder %s151, %s153
      %p160 = scmp.eq.s32.totalorder %s38, 1
      %p161 = por %p159, %p160
      %p162 = scmp.ne.s32.totalorder %s153, %s154
      %p163 = scmp.eq.s32.totalorder %s38, 0
      %p164 = por %p162, %p163
      %p165 = scmp.ne.s32.totalorder %s153, %s154
      %p166 = scmp.eq.s32.totalorder %s39, 1
      %p167 = por %p165, %p166
      %p169 = scmp.ne.s32.totalorder %s154, %s168
      %p170 = scmp.eq.s32.totalorder %s39, 0
      %p171 = por %p169, %p170
      %s173 = sadd.s32 %s172, 1
      %p176 = scmp.eq.s32.totalorder %s33, 1
      %p177 = scmp.ne.s32.totalorder %s172, %s174
      %p178 = scmp.eq.s32.totalorder %s33, 0
      %p179 = por %p177, %p178
      %p180 = scmp.ne.s32.totalorder %s172, %s174
      %p181 = scmp.eq.s32.totalorder %s38, 1
      %p182 = por %p180, %p181
      %p183 = scmp.ne.s32.totalorder %s174, %s175
      %p184 = scmp.eq.s32.totalorder %s38, 0
      %p185 = por %p183, %p184
      %p186 = scmp.ne.s32.totalorder %s174, %s175
      %p187 = scmp.eq.s32.totalorder %s39, 1
      %p188 = por %p186, %p187
      %p190 = scmp.ne.s32.totalorder %s175, %s189
      %p191 = scmp.eq.s32.totalorder %s39, 0
      %p192 = por %p190, %p191
      %s194 = sadd.s32 %s193, 1
      %p197 = scmp.eq.s32.totalorder %s33, 1
      %p198 = scmp.ne.s32.totalorder %s193, %s195
      %p199 = scmp.eq.s32.totalorder %s33, 0
      %p200 = por %p198, %p199
      %p201 = scmp.ne.s32.totalorder %s193, %s195
      %p202 = scmp.eq.s32.totalorder %s38, 1
      %p203 = por %p201, %p202
      %p204 = scmp.ne.s32.totalorder %s195, %s196
      %p205 = scmp.eq.s32.totalorder %s38, 0
      %p206 = por %p204, %p205
      %p207 = scmp.ne.s32.totalorder %s195, %s196
      %p208 = scmp.eq.s32.totalorder %s39, 1
      %p209 = por %p207, %p208
      %p211 = scmp.ne.s32.totalorder %s196, %s210
      %p212 = scmp.eq.s32.totalorder %s39, 0
      %p213 = por %p211, %p212
      %s215 = sadd.s32 %s214, 1
      %p218 = scmp.eq.s32.totalorder %s33, 1
      %p219 = scmp.ne.s32.totalorder %s214, %s216
      %p220 = scmp.eq.s32.totalorder %s33, 0
      %p221 = por %p219, %p220
      %p222 = scmp.ne.s32.totalorder %s214, %s216
      %p223 = scmp.eq.s32.totalorder %s38, 1
      %p224 = por %p222, %p223
      %p225 = scmp.ne.s32.totalorder %s216, %s217
      %p226 = scmp.eq.s32.totalorder %s38, 0
      %p227 = por %p225, %p226
      %p228 = scmp.ne.s32.totalorder %s216, %s217
      %p229 = scmp.eq.s32.totalorder %s39, 1
      %p230 = por %p228, %p229
      %p232 = scmp.ne.s32.totalorder %s217, %s231
      %p233 = scmp.eq.s32.totalorder %s39, 0
      %p234 = por %p232, %p233
      %s236 = sadd.s32 %s235, 1
      %p239 = scmp.eq.s32.totalorder %s33, 1
      %p240 = scmp.ne.s32.totalorder %s235, %s237
      %p241 = scmp.eq.s32.totalorder %s33, 0
      %p242 = por %p240, %p241
      %p243 = scmp.ne.s32.totalorder %s235, %s237
      %p244 = scmp.eq.s32.totalorder %s38, 1
      %p245 = por %p243, %p244
      %p246 = scmp.ne.s32.totalorder %s237, %s238
      %p247 = scmp.eq.s32.totalorder %s38, 0
      %p248 = por %p246, %p247
      %p249 = scmp.ne.s32.totalorder %s237, %s238
      %p250 = scmp.eq.s32.totalorder %s39, 1
      %p251 = por %p249, %p250
      %p253 = scmp.ne.s32.totalorder %s238, %s252
      %p254 = scmp.eq.s32.totalorder %s39, 0
      %p255 = por %p253, %p254
      %s257 = sadd.s32 %s256, 1
      %p260 = scmp.eq.s32.totalorder %s33, 1
      %p261 = scmp.ne.s32.totalorder %s256, %s258
      %p262 = scmp.eq.s32.totalorder %s33, 0
      %p263 = por %p261, %p262
      %p264 = scmp.ne.s32.totalorder %s256, %s258
      %p265 = scmp.eq.s32.totalorder %s38, 1
      %p266 = por %p264, %p265
      %p267 = scmp.ne.s32.totalorder %s258, %s259
      %p268 = scmp.eq.s32.totalorder %s38, 0
      %p269 = por %p267, %p268
      %p270 = scmp.ne.s32.totalorder %s258, %s259
      %p271 = scmp.eq.s32.totalorder %s39, 1
      %p272 = por %p270, %p271
      %p274 = scmp.ne.s32.totalorder %s259, %s273
      %p275 = scmp.eq.s32.totalorder %s39, 0
      %p276 = por %p274, %p275
      %s278 = sadd.s32 %s277, 1
      %p281 = scmp.eq.s32.totalorder %s33, 1
      %p282 = scmp.ne.s32.totalorder %s277, %s279
      %p283 = scmp.eq.s32.totalorder %s33, 0
      %p284 = por %p282, %p283
      %p285 = scmp.ne.s32.totalorder %s277, %s279
      %p286 = scmp.eq.s32.totalorder %s38, 1
      %p287 = por %p285, %p286
      %p288 = scmp.ne.s32.totalorder %s279, %s280
      %p289 = scmp.eq.s32.totalorder %s38, 0
      %p290 = por %p288, %p289
      %p291 = scmp.ne.s32.totalorder %s279, %s280
      %p292 = scmp.eq.s32.totalorder %s39, 1
      %p293 = por %p291, %p292
      %p295 = scmp.ne.s32.totalorder %s280, %s294
      %p296 = scmp.eq.s32.totalorder %s39, 0
      %p297 = por %p295, %p296
      %s299 = sadd.s32 %s298, 1
      %p302 = scmp.eq.s32.totalorder %s33, 1
      %p303 = scmp.ne.s32.totalorder %s298, %s300
      %p304 = scmp.eq.s32.totalorder %s33, 0
      %p305 = por %p303, %p304
      %p306 = scmp.ne.s32.totalorder %s298, %s300
      %p307 = scmp.eq.s32.totalorder %s38, 1
      %p308 = por %p306, %p307
      %p309 = scmp.ne.s32.totalorder %s300, %s301
      %p310 = scmp.eq.s32.totalorder %s38, 0
      %p311 = por %p309, %p310
      %p312 = scmp.ne.s32.totalorder %s300, %s301
      %p313 = scmp.eq.s32.totalorder %s39, 1
      %p314 = por %p312, %p313
      %p316 = scmp.ne.s32.totalorder %s301, %s315
      %p317 = scmp.eq.s32.totalorder %s39, 0
      %p318 = por %p316, %p317
      %s320 = sadd.s32 %s319, 1
      %p323 = scmp.eq.s32.totalorder %s33, 1
      %p324 = scmp.ne.s32.totalorder %s319, %s321
      %p325 = scmp.eq.s32.totalorder %s33, 0
      %p326 = por %p324, %p325
      %p327 = scmp.ne.s32.totalorder %s319, %s321
      %p328 = scmp.eq.s32.totalorder %s38, 1
      %p329 = por %p327, %p328
      %p330 = scmp.ne.s32.totalorder %s321, %s322
      %p331 = scmp.eq.s32.totalorder %s38, 0
      %p332 = por %p330, %p331
      %p333 = scmp.ne.s32.totalorder %s321, %s322
      %p334 = scmp.eq.s32.totalorder %s39, 1
      %p335 = por %p333, %p334
      %p337 = scmp.ne.s32.totalorder %s322, %s336
      %p338 = scmp.eq.s32.totalorder %s39, 0
      %p339 = por %p337, %p338
      %s340 = ssub.s32 %s33, %s40
      %p341 = scmp.eq.s32.totalorder %s340, 0
      %s343 = sadd.s32 %s342, 1
      %s344 = scalar_select %p341, %s342, %s343
      %p347 = pneg %p341
      %p348 = scmp.eq.s32.totalorder %s33, 1
      %p349 = por %p347, %p348
      %p350 = scmp.ne.s32.totalorder %s342, %s345
      %p351 = scmp.eq.s32.totalorder %s33, 0
      %p352 = por %p350, %p351
      %p353 = scmp.ne.s32.totalorder %s342, %s345
      %p354 = scmp.eq.s32.totalorder %s38, 1
      %p355 = por %p353, %p354
      %p356 = scmp.ne.s32.totalorder %s345, %s346
      %p357 = scmp.eq.s32.totalorder %s38, 0
      %p358 = por %p356, %p357
      %p359 = scmp.ne.s32.totalorder %s345, %s346
      %p360 = scmp.eq.s32.totalorder %s39, 1
      %p361 = por %p359, %p360
      %p363 = scmp.ne.s32.totalorder %s346, %s362
      %p364 = scmp.eq.s32.totalorder %s39, 0
      %p365 = por %p363, %p364
      %p366 = scmp.le.s32.totalorder 1, %s33
      %p367 = scmp.lt.s32.totalorder %s33, 3
      %p368 = pnand %p366, %p367
      %p369 = pneg %p368
      // Predicated region
      $region9: #{tpu_custom_call.1} parent=5 // pred_check
        _
      $region10: #{tpu_custom_call.1} parent=5 // pred_check_branch
        %371 = sbr.rel (%p368) target = $region12
      $region11: #{tpu_custom_call.1} parent=5 // pred_region
        %s372 = ssub.s32 %s33, 1
        // Predicated region
        $region13: #{tpu_custom_call.1} parent=11 // pred_check
          %p373 = pneg %p80
        $region14: #{tpu_custom_call.1} parent=11 // pred_check_branch
          %375 = sbr.rel (%p373) target = $region16
        $region15: #{tpu_custom_call.1} parent=11 // pred_region
          %s377 = ssub.s32 256, 256
          %378 = vsyncadd [#allocation6], %s377
          %s380 = sshll.u32 [#allocation5], 4
          %s381 = int_to_ptr.vmem [resolvable:$true] %s380
          %383 = dma.hbm_to_vmem [thread:$0]  %s1, 256, %s381, [#allocation6]
        $region16: #{tpu_custom_call.1} parent=11 // pred_fallthru
          _
        // Predicated region
        $region17: #{tpu_custom_call.1} parent=11 // pred_check
          %p384 = pneg %p101
        $region18: #{tpu_custom_call.1} parent=11 // pred_check_branch
          %386 = sbr.rel (%p384) target = $region20
        $region19: #{tpu_custom_call.1} parent=11 // pred_region
          %s388 = ssub.s32 128, 128
          %389 = vsyncadd [#allocation6], %s388
          %s391 = sshll.u32 [#allocation7], 4
          %s392 = int_to_ptr.vmem [resolvable:$true] %s391
          %394 = dma.hbm_to_vmem [thread:$0]  %s2, 128, %s392, [#allocation6]
        $region20: #{tpu_custom_call.1} parent=11 // pred_fallthru
          _
        // Predicated region
        $region21: #{tpu_custom_call.1} parent=11 // pred_check
          %p395 = pneg %p122
        $region22: #{tpu_custom_call.1} parent=11 // pred_check_branch
          %397 = sbr.rel (%p395) target = $region24
        $region23: #{tpu_custom_call.1} parent=11 // pred_region
          %s399 = ssub.s32 128, 128
          %400 = vsyncadd [#allocation9], %s399
          %s402 = sshll.u32 [#allocation8], 4
          %s403 = int_to_ptr.vmem [resolvable:$true] %s402
          %405 = dma.hbm_to_vmem [thread:$0]  %s3, 128, %s403, [#allocation9]
        $region24: #{tpu_custom_call.1} parent=11 // pred_fallthru
          _
        // Predicated region
        $region25: #{tpu_custom_call.1} parent=11 // pred_check
          %p406 = pneg %p143
        $region26: #{tpu_custom_call.1} parent=11 // pred_check_branch
          %408 = sbr.rel (%p406) target = $region28
        $region27: #{tpu_custom_call.1} parent=11 // pred_region
          %s410 = ssub.s32 128, 128
          %411 = vsyncadd [#allocation9], %s410
          %s413 = sshll.u32 [#allocation10], 4
          %s414 = int_to_ptr.vmem [resolvable:$true] %s413
          %416 = dma.hbm_to_vmem [thread:$0]  %s4, 128, %s414, [#allocation9]
        $region28: #{tpu_custom_call.1} parent=11 // pred_fallthru
          _
        // Predicated region
        $region29: #{tpu_custom_call.1} parent=11 // pred_check
          %p417 = pneg %p164
        $region30: #{tpu_custom_call.1} parent=11 // pred_check_branch
          %419 = sbr.rel (%p417) target = $region32
        $region31: #{tpu_custom_call.1} parent=11 // pred_region
          %s421 = ssub.s32 128, 128
          %422 = vsyncadd [#allocation12], %s421
          %s424 = sshll.u32 [#allocation11], 4
          %s425 = int_to_ptr.vmem [resolvable:$true] %s424
          %427 = dma.hbm_to_vmem [thread:$0]  %s5, 128, %s425, [#allocation12]
        $region32: #{tpu_custom_call.1} parent=11 // pred_fallthru
          _
        // Predicated region
        $region33: #{tpu_custom_call.1} parent=11 // pred_check
          %p428 = pneg %p185
        $region34: #{tpu_custom_call.1} parent=11 // pred_check_branch
          %430 = sbr.rel (%p428) target = $region36
        $region35: #{tpu_custom_call.1} parent=11 // pred_region
          %s432 = ssub.s32 128, 128
          %433 = vsyncadd [#allocation12], %s432
          %s435 = sshll.u32 [#allocation13], 4
          %s436 = int_to_ptr.vmem [resolvable:$true] %s435
          %438 = dma.hbm_to_vmem [thread:$0]  %s6, 128, %s436, [#allocation12]
        $region36: #{tpu_custom_call.1} parent=11 // pred_fallthru
          _
        // Predicated region
        $region37: #{tpu_custom_call.1} parent=11 // pred_check
          %p439 = pneg %p206
        $region38: #{tpu_custom_call.1} parent=11 // pred_check_branch
          %441 = sbr.rel (%p439) target = $region40
        $region39: #{tpu_custom_call.1} parent=11 // pred_region
          %s443 = ssub.s32 128, 128
          %444 = vsyncadd [#allocation15], %s443
          %s446 = sshll.u32 [#allocation14], 4
          %s447 = int_to_ptr.vmem [resolvable:$true] %s446
          %449 = dma.hbm_to_vmem [thread:$0]  %s7, 128, %s447, [#allocation15]
        $region40: #{tpu_custom_call.1} parent=11 // pred_fallthru
          _
        // Predicated region
        $region41: #{tpu_custom_call.1} parent=11 // pred_check
          %p450 = pneg %p227
        $region42: #{tpu_custom_call.1} parent=11 // pred_check_branch
          %452 = sbr.rel (%p450) target = $region44
        $region43: #{tpu_custom_call.1} parent=11 // pred_region
          %s454 = ssub.s32 128, 128
          %455 = vsyncadd [#allocation15], %s454
          %s457 = sshll.u32 [#allocation16], 4
          %s458 = int_to_ptr.vmem [resolvable:$true] %s457
          %460 = dma.hbm_to_vmem [thread:$0]  %s8, 128, %s458, [#allocation15]
        $region44: #{tpu_custom_call.1} parent=11 // pred_fallthru
          _
        // Predicated region
        $region45: #{tpu_custom_call.1} parent=11 // pred_check
          %p461 = pneg %p248
        $region46: #{tpu_custom_call.1} parent=11 // pred_check_branch
          %463 = sbr.rel (%p461) target = $region48
        $region47: #{tpu_custom_call.1} parent=11 // pred_region
          %s465 = ssub.s32 128, 128
          %466 = vsyncadd [#allocation18], %s465
          %s468 = sshll.u32 [#allocation17], 4
          %s469 = int_to_ptr.vmem [resolvable:$true] %s468
          %471 = dma.hbm_to_vmem [thread:$0]  %s9, 128, %s469, [#allocation18]
        $region48: #{tpu_custom_call.1} parent=11 // pred_fallthru
          _
        // Predicated region
        $region49: #{tpu_custom_call.1} parent=11 // pred_check
          %p472 = pneg %p269
        $region50: #{tpu_custom_call.1} parent=11 // pred_check_branch
          %474 = sbr.rel (%p472) target = $region52
        $region51: #{tpu_custom_call.1} parent=11 // pred_region
          %s476 = ssub.s32 128, 128
          %477 = vsyncadd [#allocation18], %s476
          %s479 = sshll.u32 [#allocation19], 4
          %s480 = int_to_ptr.vmem [resolvable:$true] %s479
          %482 = dma.hbm_to_vmem [thread:$0]  %s10, 128, %s480, [#allocation18]
        $region52: #{tpu_custom_call.1} parent=11 // pred_fallthru
          _
        // Predicated region
        $region53: #{tpu_custom_call.1} parent=11 // pred_check
          %p483 = pneg %p290
        $region54: #{tpu_custom_call.1} parent=11 // pred_check_branch
          %485 = sbr.rel (%p483) target = $region56
        $region55: #{tpu_custom_call.1} parent=11 // pred_region
          %s487 = ssub.s32 128, 128
          %488 = vsyncadd [#allocation21], %s487
          %s490 = sshll.u32 [#allocation20], 4
          %s491 = int_to_ptr.vmem [resolvable:$true] %s490
          %493 = dma.hbm_to_vmem [thread:$0]  %s11, 128, %s491, [#allocation21]
        $region56: #{tpu_custom_call.1} parent=11 // pred_fallthru
          _
        // Predicated region
        $region57: #{tpu_custom_call.1} parent=11 // pred_check
          %p494 = pneg %p311
        $region58: #{tpu_custom_call.1} parent=11 // pred_check_branch
          %496 = sbr.rel (%p494) target = $region60
        $region59: #{tpu_custom_call.1} parent=11 // pred_region
          %s498 = ssub.s32 128, 128
          %499 = vsyncadd [#allocation21], %s498
          %s501 = sshll.u32 [#allocation22], 4
          %s502 = int_to_ptr.vmem [resolvable:$true] %s501
          %504 = dma.hbm_to_vmem [thread:$0]  %s12, 128, %s502, [#allocation21]
        $region60: #{tpu_custom_call.1} parent=11 // pred_fallthru
          _
        // Predicated region
        $region61: #{tpu_custom_call.1} parent=11 // pred_check
          %p505 = pneg %p332
        $region62: #{tpu_custom_call.1} parent=11 // pred_check_branch
          %507 = sbr.rel (%p505) target = $region64
        $region63: #{tpu_custom_call.1} parent=11 // pred_region
          %s509 = ssub.s32 128, 128
          %510 = vsyncadd [#allocation24], %s509
          %s512 = sshll.u32 [#allocation23], 4
          %s513 = int_to_ptr.vmem [resolvable:$true] %s512
          %515 = dma.hbm_to_vmem [thread:$0]  %s13, 128, %s513, [#allocation24]
        $region64: #{tpu_custom_call.1} parent=11 // pred_fallthru
          _
      $region12: #{tpu_custom_call.1} parent=5 // pred_fallthru
        _
      %p516 = scmp.lt.s32.totalorder %s33, 2
      // Predicated region
      $region65: #{tpu_custom_call.1} parent=5 // pred_check
        %p517 = pneg %p516
      $region66: #{tpu_custom_call.1} parent=5 // pred_check_branch
        %519 = sbr.rel (%p517) target = $region68
      $region67: #{tpu_custom_call.1} parent=5 // pred_region
        // Predicated region
        $region69: #{tpu_custom_call.1} parent=67 // pred_check
          %p520 = pneg %p53
        $region70: #{tpu_custom_call.1} parent=67 // pred_check_branch
          %522 = sbr.rel (%p520) target = $region72
        $region71: #{tpu_custom_call.1} parent=67 // pred_region
          %s523 = sand.u32 %s43, 1
          %s524 = scalar_lea.sflag [#allocation3], %s523
          %s525 = sand.u32 %s43, 1
          %s526 = smul.addr %s525, 128
          %s527 = scalar_lea.vmem [#allocation2], %s526
          %s529 = ssub.s32 2048, 2048
          %530 = vsyncadd %s524, %s529
          %s531 = smul.addr %s33, 16
          %s532 = smul.addr %s531, 128
          %s533 = scalar_lea.hbm %s0, %s532
          %s535 = sshll.u32 %s527, 4
          %s536 = int_to_ptr.vmem [resolvable:$true] %s535
          %538 = dma.hbm_to_vmem [thread:$0]  %s533, 2048, %s536, %s524
        $region72: #{tpu_custom_call.1} parent=67 // pred_fallthru
          _
      $region68: #{tpu_custom_call.1} parent=5 // pred_fallthru
        _
      %p539 = scmp.le.s32.totalorder 1, %s33
      %p540 = scmp.lt.s32.totalorder %s33, 3
      %p541 = pnand %p539, %p540
      %p542 = pneg %p541
      // Predicated region
      $region73: #{tpu_custom_call.1} parent=5 // pred_check
        _
      $region74: #{tpu_custom_call.1} parent=5 // pred_check_branch
        %544 = sbr.rel (%p541) target = $region76
      $region75: #{tpu_custom_call.1} parent=5 // pred_region
        %s545 = ssub.s32 %s33, 1
        %s546 = sand.u32 %s46, 1
        %s547 = scalar_lea.sflag [#allocation3], %s546
        %s548 = sand.u32 %s46, 1
        %s549 = smul.addr %s548, 128
        %s550 = scalar_lea.vmem [#allocation2], %s549
        // Predicated region
        $region77: #{tpu_custom_call.1} parent=75 // pred_check
          %p551 = pneg %p59
        $region78: #{tpu_custom_call.1} parent=75 // pred_check_branch
          %553 = sbr.rel (%p551) target = $region80
        $region79: #{tpu_custom_call.1} parent=75 // pred_region
          %554 = dma.done %s547, 2048
        $region80: #{tpu_custom_call.1} parent=75 // pred_fallthru
          _
        // Predicated region
        $region81: #{tpu_custom_call.1} parent=75 // pred_check
          %p555 = pneg %p80
        $region82: #{tpu_custom_call.1} parent=75 // pred_check_branch
          %557 = sbr.rel (%p555) target = $region84
        $region83: #{tpu_custom_call.1} parent=75 // pred_region
          %558 = dma.done [#allocation6], 256
        $region84: #{tpu_custom_call.1} parent=75 // pred_fallthru
          _
        // Predicated region
        $region85: #{tpu_custom_call.1} parent=75 // pred_check
          %p559 = pneg %p101
        $region86: #{tpu_custom_call.1} parent=75 // pred_check_branch
          %561 = sbr.rel (%p559) target = $region88
        $region87: #{tpu_custom_call.1} parent=75 // pred_region
          %562 = dma.done [#allocation6], 128
        $region88: #{tpu_custom_call.1} parent=75 // pred_fallthru
          _
        // Predicated region
        $region89: #{tpu_custom_call.1} parent=75 // pred_check
          %p563 = pneg %p122
        $region90: #{tpu_custom_call.1} parent=75 // pred_check_branch
          %565 = sbr.rel (%p563) target = $region92
        $region91: #{tpu_custom_call.1} parent=75 // pred_region
          %566 = dma.done [#allocation9], 128
        $region92: #{tpu_custom_call.1} parent=75 // pred_fallthru
          _
        // Predicated region
        $region93: #{tpu_custom_call.1} parent=75 // pred_check
          %p567 = pneg %p143
        $region94: #{tpu_custom_call.1} parent=75 // pred_check_branch
          %569 = sbr.rel (%p567) target = $region96
        $region95: #{tpu_custom_call.1} parent=75 // pred_region
          %570 = dma.done [#allocation9], 128
        $region96: #{tpu_custom_call.1} parent=75 // pred_fallthru
          _
        // Predicated region
        $region97: #{tpu_custom_call.1} parent=75 // pred_check
          %p571 = pneg %p164
        $region98: #{tpu_custom_call.1} parent=75 // pred_check_branch
          %573 = sbr.rel (%p571) target = $region100
        $region99: #{tpu_custom_call.1} parent=75 // pred_region
          %574 = dma.done [#allocation12], 128
        $region100: #{tpu_custom_call.1} parent=75 // pred_fallthru
          _
        // Predicated region
        $region101: #{tpu_custom_call.1} parent=75 // pred_check
          %p575 = pneg %p185
        $region102: #{tpu_custom_call.1} parent=75 // pred_check_branch
          %577 = sbr.rel (%p575) target = $region104
        $region103: #{tpu_custom_call.1} parent=75 // pred_region
          %578 = dma.done [#allocation12], 128
        $region104: #{tpu_custom_call.1} parent=75 // pred_fallthru
          _
        // Predicated region
        $region105: #{tpu_custom_call.1} parent=75 // pred_check
          %p579 = pneg %p206
        $region106: #{tpu_custom_call.1} parent=75 // pred_check_branch
          %581 = sbr.rel (%p579) target = $region108
        $region107: #{tpu_custom_call.1} parent=75 // pred_region
          %582 = dma.done [#allocation15], 128
        $region108: #{tpu_custom_call.1} parent=75 // pred_fallthru
          _
        // Predicated region
        $region109: #{tpu_custom_call.1} parent=75 // pred_check
          %p583 = pneg %p227
        $region110: #{tpu_custom_call.1} parent=75 // pred_check_branch
          %585 = sbr.rel (%p583) target = $region112
        $region111: #{tpu_custom_call.1} parent=75 // pred_region
          %586 = dma.done [#allocation15], 128
        $region112: #{tpu_custom_call.1} parent=75 // pred_fallthru
          _
        // Predicated region
        $region113: #{tpu_custom_call.1} parent=75 // pred_check
          %p587 = pneg %p248
        $region114: #{tpu_custom_call.1} parent=75 // pred_check_branch
          %589 = sbr.rel (%p587) target = $region116
        $region115: #{tpu_custom_call.1} parent=75 // pred_region
          %590 = dma.done [#allocation18], 128
        $region116: #{tpu_custom_call.1} parent=75 // pred_fallthru
          _
        // Predicated region
        $region117: #{tpu_custom_call.1} parent=75 // pred_check
          %p591 = pneg %p269
        $region118: #{tpu_custom_call.1} parent=75 // pred_check_branch
          %593 = sbr.rel (%p591) target = $region120
        $region119: #{tpu_custom_call.1} parent=75 // pred_region
          %594 = dma.done [#allocation18], 128
        $region120: #{tpu_custom_call.1} parent=75 // pred_fallthru
          _
        // Predicated region
        $region121: #{tpu_custom_call.1} parent=75 // pred_check
          %p595 = pneg %p290
        $region122: #{tpu_custom_call.1} parent=75 // pred_check_branch
          %597 = sbr.rel (%p595) target = $region124
        $region123: #{tpu_custom_call.1} parent=75 // pred_region
          %598 = dma.done [#allocation21], 128
        $region124: #{tpu_custom_call.1} parent=75 // pred_fallthru
          _
        // Predicated region
        $region125: #{tpu_custom_call.1} parent=75 // pred_check
          %p599 = pneg %p311
        $region126: #{tpu_custom_call.1} parent=75 // pred_check_branch
          %601 = sbr.rel (%p599) target = $region128
        $region127: #{tpu_custom_call.1} parent=75 // pred_region
          %602 = dma.done [#allocation21], 128
        $region128: #{tpu_custom_call.1} parent=75 // pred_fallthru
          _
        // Predicated region
        $region129: #{tpu_custom_call.1} parent=75 // pred_check
          %p603 = pneg %p332
        $region130: #{tpu_custom_call.1} parent=75 // pred_check_branch
          %605 = sbr.rel (%p603) target = $region132
        $region131: #{tpu_custom_call.1} parent=75 // pred_region
          %606 = dma.done [#allocation24], 128
        $region132: #{tpu_custom_call.1} parent=75 // pred_fallthru
          _
        %s607 = sand.u32 %s46, 1
        %s608 = scalar_lea.sflag [#allocation3], %s607
        %s609 = sand.u32 %s46, 1
        %s610 = smul.addr %s609, 128
        %s611 = scalar_lea.vmem [#allocation2], %s610
        %p612 = pneg %p59
        %p613 = pneg %p56
        %p614 = pneg %p80
        %p615 = pneg %p77
        %p616 = pneg %p101
        %p617 = pneg %p98
        %p618 = pneg %p122
        %p619 = pneg %p119
        %p620 = pneg %p143
        %p621 = pneg %p140
        %p622 = pneg %p164
        %p623 = pneg %p161
        %p624 = pneg %p185
        %p625 = pneg %p182
        %p626 = pneg %p206
        %p627 = pneg %p203
        %p628 = pneg %p227
        %p629 = pneg %p224
        %p630 = pneg %p248
        %p631 = pneg %p245
        %p632 = pneg %p269
        %p633 = pneg %p266
        %p634 = pneg %p290
        %p635 = pneg %p287
        %p636 = pneg %p311
        %p637 = pneg %p308
        %p638 = pneg %p332
        %p639 = pneg %p329
        %p640 = pneg %p358
        %p641 = pneg %p355
        %s642 = sand.u32 %s345, 1
        %s643 = scalar_lea.sflag [#allocation4], %s642
        %s644 = sand.u32 %s345, 1
        %s645 = smul.addr %s644, 128
        %s646 = scalar_lea.vmem [#allocation25], %s645
        %v647 = vld [vmem:[#allocation5] sm:$0xff]
        %v648 = vld [vmem:[#allocation5 + $0x8] sm:$0xff]
        %v649 = vld [vmem:[%s550] sm:$0xff]
        %v650 = vld [vmem:[%s550 + $0x8] sm:$0xff]
        %v651 = vld [vmem:[%s550 + $0x10] sm:$0xff]
        %v652 = vld [vmem:[%s550 + $0x18] sm:$0xff]
        %v653 = vld [vmem:[%s550 + $0x20] sm:$0xff]
        %v654 = vld [vmem:[%s550 + $0x28] sm:$0xff]
        %v655 = vld [vmem:[%s550 + $0x30] sm:$0xff]
        %v656 = vld [vmem:[%s550 + $0x38] sm:$0xff]
        %v657 = vld [vmem:[%s550 + $0x40] sm:$0xff]
        %v658 = vld [vmem:[%s550 + $0x48] sm:$0xff]
        %v659 = vld [vmem:[%s550 + $0x50] sm:$0xff]
        %v660 = vld [vmem:[%s550 + $0x58] sm:$0xff]
        %v661 = vld [vmem:[%s550 + $0x60] sm:$0xff]
        %v662 = vld [vmem:[%s550 + $0x68] sm:$0xff]
        %v663 = vld [vmem:[%s550 + $0x70] sm:$0xff]
        %v664 = vld [vmem:[%s550 + $0x78] sm:$0xff]
        %v665 = vld [vmem:[#allocation7] sm:$0xff]
        %v666 = vld [vmem:[#allocation8] sm:$0xff]
        %668 = vset.pattern.permute.xlu0 0
        %669 = vperm.xlu0 %668, %v666
        %v670 = vpop.permute.xlu0 %669
        %vm672 = vcmask 195584
        %v674 = vsel %vm672, %v665, 0
        %676 = vmatprep.subr.mxu0 %v649
        %677 = vmatpush1.msra.mxu0 0.0
        %678 = vmatprep.subr.mxu0 %v650
        %679 = vmatpush1.msra.mxu0 %v649
        %680 = vmatprep.subr.mxu0 %v651
        %681 = vmatpush1.msra.mxu0 %v650
        %682 = vmatprep.subr.mxu0 0.0
        %683 = vmatpush1.msra.mxu0 0.0
        %684 = vmatprep.subr.mxu0 0.0
        %685 = vmatpush1.msra.mxu0 0.0
        %686 = vmatprep.subr.mxu0 0.0
        %687 = vmatpush1.msra.mxu0 0.0
        %688 = vmatprep.subr.mxu0 0.0
        %689 = vmatpush1.msra.mxu0 0.0
        %690 = vmatprep.subr.mxu0 0.0
        %691 = vmatpush1.msra.mxu0 0.0
        %692 = vmatprep.subr.mxu0 0.0
        %693 = vmatpush1.msra.mxu0 0.0
        %694 = vmatprep.subr.mxu0 0.0
        %695 = vmatpush1.msra.mxu0 0.0
        %696 = vmatprep.subr.mxu0 0.0
        %697 = vmatpush1.msra.mxu0 0.0
        %698 = vmatprep.subr.mxu0 0.0
        %699 = vmatpush1.msra.mxu0 0.0
        %700 = vmatprep.subr.mxu0 0.0
        %701 = vmatpush1.msra.mxu0 0.0
        %702 = vmatprep.subr.mxu0 0.0
        %703 = vmatpush1.msra.mxu0 0.0
        %704 = vmatprep.subr.mxu0 0.0
        %705 = vmatpush1.msra.mxu0 0.0
        %706 = vmatprep.subr.mxu0 0.0
        %707 = vmatpush1.msra.mxu0 0.0
        %708 = vmatprep.subr.mxu0 0.0
        %709 = vmatpush1.msra.mxu0 0.0
        %710 = vmatprep.subr.mxu0 0.0
        %711 = vmatpush1.msra.mxu0 0.0
        %712 = vmatprep.subr.mxu0 0.0
        %713 = vmatpush1.msra.mxu0 0.0
        %714 = vmatprep.subr.mxu0 0.0
        %715 = vmatpush1.msra.mxu0 0.0
        %716 = vmatprep.subr.mxu0 0.0
        %717 = vmatpush1.msra.mxu0 0.0
        %718 = vmatprep.subr.mxu0 0.0
        %719 = vmatpush1.msra.mxu0 0.0
        %720 = vmatprep.subr.mxu0 0.0
        %721 = vmatpush1.msra.mxu0 0.0
        %722 = vmatprep.subr.mxu0 0.0
        %723 = vmatpush1.msra.mxu0 0.0
        %724 = vmatprep.subr.mxu0 0.0
        %725 = vmatpush1.msra.mxu0 0.0
        %726 = vmatprep.subr.mxu0 0.0
        %727 = vmatpush1.msra.mxu0 0.0
        %728 = vmatprep.subr.mxu0 0.0
        %729 = vmatpush1.msra.mxu0 0.0
        %730 = vmatprep.subr.mxu0 0.0
        %731 = vmatpush1.msra.mxu0 0.0
        %732 = vmatprep.subr.mxu0 0.0
        %733 = vmatpush1.msra.mxu0 0.0
        %734 = vmatprep.subr.mxu0 0.0
        %735 = vmatpush1.msra.mxu0 0.0
        %736 = vmatprep.subr.mxu0 0.0
        %737 = vmatpush1.msra.mxu0 0.0
        %738 = vmatprep.subr.mxu0 0.0
        %739 = vmatpush1.msra.mxu0 0.0
        %740 = vmatprep.mubr.f32.mxu0 0.0
        %741 = vmatmul.mubr.f32.gmra.mrb[0].mxu0 %v674
        %v742 = vpop.f32.mrb[0].mxu0
        %v743 = vadd.f32 %v670, %v742
        %v744 = vpop.f32.mrb[0].mxu0
        %v745 = vadd.f32 %v670, %v744
        %746 = vdwg.mxu0
        %747 = vmatprep.subr.mxu0 %v651
        %748 = vmatpush1.msra.mxu0 %v650
        %749 = vmatprep.subr.mxu0 %v652
        %750 = vmatpush1.msra.mxu0 %v651
        %751 = vmatprep.subr.mxu0 %v653
        %752 = vmatpush1.msra.mxu0 %v652
        %753 = vmatprep.subr.mxu0 0.0
        %754 = vmatpush1.msra.mxu0 0.0
        %755 = vmatprep.subr.mxu0 0.0
        %756 = vmatpush1.msra.mxu0 0.0
        %757 = vmatprep.subr.mxu0 0.0
        %758 = vmatpush1.msra.mxu0 0.0
        %759 = vmatprep.subr.mxu0 0.0
        %760 = vmatpush1.msra.mxu0 0.0
        %761 = vmatprep.subr.mxu0 0.0
        %762 = vmatpush1.msra.mxu0 0.0
        %763 = vmatprep.subr.mxu0 0.0
        %764 = vmatpush1.msra.mxu0 0.0
        %765 = vmatprep.subr.mxu0 0.0
        %766 = vmatpush1.msra.mxu0 0.0
        %767 = vmatprep.subr.mxu0 0.0
        %768 = vmatpush1.msra.mxu0 0.0
        %769 = vmatprep.subr.mxu0 0.0
        %770 = vmatpush1.msra.mxu0 0.0
        %771 = vmatprep.subr.mxu0 0.0
        %772 = vmatpush1.msra.mxu0 0.0
        %773 = vmatprep.subr.mxu0 0.0
        %774 = vmatpush1.msra.mxu0 0.0
        %775 = vmatprep.subr.mxu0 0.0
        %776 = vmatpush1.msra.mxu0 0.0
        %777 = vmatprep.subr.mxu0 0.0
        %778 = vmatpush1.msra.mxu0 0.0
        %779 = vmatprep.subr.mxu0 0.0
        %780 = vmatpush1.msra.mxu0 0.0
        %781 = vmatprep.subr.mxu0 0.0
        %782 = vmatpush1.msra.mxu0 0.0
        %783 = vmatprep.subr.mxu0 0.0
        %784 = vmatpush1.msra.mxu0 0.0
        %785 = vmatprep.subr.mxu0 0.0
        %786 = vmatpush1.msra.mxu0 0.0
        %787 = vmatprep.subr.mxu0 0.0
        %788 = vmatpush1.msra.mxu0 0.0
        %789 = vmatprep.subr.mxu0 0.0
        %790 = vmatpush1.msra.mxu0 0.0
        %791 = vmatprep.subr.mxu0 0.0
        %792 = vmatpush1.msra.mxu0 0.0
        %793 = vmatprep.subr.mxu0 0.0
        %794 = vmatpush1.msra.mxu0 0.0
        %795 = vmatprep.subr.mxu0 0.0
        %796 = vmatpush1.msra.mxu0 0.0
        %797 = vmatprep.subr.mxu0 0.0
        %798 = vmatpush1.msra.mxu0 0.0
        %799 = vmatprep.subr.mxu0 0.0
        %800 = vmatpush1.msra.mxu0 0.0
        %801 = vmatprep.subr.mxu0 0.0
        %802 = vmatpush1.msra.mxu0 0.0
        %803 = vmatprep.subr.mxu0 0.0
        %804 = vmatpush1.msra.mxu0 0.0
        %805 = vmatprep.subr.mxu0 0.0
        %806 = vmatpush1.msra.mxu0 0.0
        %807 = vmatprep.subr.mxu0 0.0
        %808 = vmatpush1.msra.mxu0 0.0
        %809 = vmatprep.subr.mxu0 0.0
        %810 = vmatpush1.msra.mxu0 0.0
        %811 = vmatprep.mubr.f32.mxu0 0.0
        %812 = vmatmul.mubr.f32.gmra.mrb[0].mxu0 %v674
        %v813 = vpop.f32.mrb[0].mxu0
        %v814 = vadd.f32 %v670, %v813
        %v815 = vpop.f32.mrb[0].mxu0
        %v816 = vadd.f32 %v670, %v815
        %817 = vdwg.mxu0
        %818 = vmatprep.subr.mxu0 %v653
        %819 = vmatpush1.msra.mxu0 %v652
        %820 = vmatprep.subr.mxu0 %v654
        %821 = vmatpush1.msra.mxu0 %v653
        %822 = vmatprep.subr.mxu0 %v655
        %823 = vmatpush1.msra.mxu0 %v654
        %824 = vmatprep.subr.mxu0 0.0
        %825 = vmatpush1.msra.mxu0 0.0
        %826 = vmatprep.subr.mxu0 0.0
        %827 = vmatpush1.msra.mxu0 0.0
        %828 = vmatprep.subr.mxu0 0.0
        %829 = vmatpush1.msra.mxu0 0.0
        %830 = vmatprep.subr.mxu0 0.0
        %831 = vmatpush1.msra.mxu0 0.0
        %832 = vmatprep.subr.mxu0 0.0
        %833 = vmatpush1.msra.mxu0 0.0
        %834 = vmatprep.subr.mxu0 0.0
        %835 = vmatpush1.msra.mxu0 0.0
        %836 = vmatprep.subr.mxu0 0.0
        %837 = vmatpush1.msra.mxu0 0.0
        %838 = vmatprep.subr.mxu0 0.0
        %839 = vmatpush1.msra.mxu0 0.0
        %840 = vmatprep.subr.mxu0 0.0
        %841 = vmatpush1.msra.mxu0 0.0
        %842 = vmatprep.subr.mxu0 0.0
        %843 = vmatpush1.msra.mxu0 0.0
        %844 = vmatprep.subr.mxu0 0.0
        %845 = vmatpush1.msra.mxu0 0.0
        %846 = vmatprep.subr.mxu0 0.0
        %847 = vmatpush1.msra.mxu0 0.0
        %848 = vmatprep.subr.mxu0 0.0
        %849 = vmatpush1.msra.mxu0 0.0
        %850 = vmatprep.subr.mxu0 0.0
        %851 = vmatpush1.msra.mxu0 0.0
        %852 = vmatprep.subr.mxu0 0.0
        %853 = vmatpush1.msra.mxu0 0.0
        %854 = vmatprep.subr.mxu0 0.0
        %855 = vmatpush1.msra.mxu0 0.0
        %856 = vmatprep.subr.mxu0 0.0
        %857 = vmatpush1.msra.mxu0 0.0
        %858 = vmatprep.subr.mxu0 0.0
        %859 = vmatpush1.msra.mxu0 0.0
        %860 = vmatprep.subr.mxu0 0.0
        %861 = vmatpush1.msra.mxu0 0.0
        %862 = vmatprep.subr.mxu0 0.0
        %863 = vmatpush1.msra.mxu0 0.0
        %864 = vmatprep.subr.mxu0 0.0
        %865 = vmatpush1.msra.mxu0 0.0
        %866 = vmatprep.subr.mxu0 0.0
        %867 = vmatpush1.msra.mxu0 0.0
        %868 = vmatprep.subr.mxu0 0.0
        %869 = vmatpush1.msra.mxu0 0.0
        %870 = vmatprep.subr.mxu0 0.0
        %871 = vmatpush1.msra.mxu0 0.0
        %872 = vmatprep.subr.mxu0 0.0
        %873 = vmatpush1.msra.mxu0 0.0
        %874 = vmatprep.subr.mxu0 0.0
        %875 = vmatpush1.msra.mxu0 0.0
        %876 = vmatprep.subr.mxu0 0.0
        %877 = vmatpush1.msra.mxu0 0.0
        %878 = vmatprep.subr.mxu0 0.0
        %879 = vmatpush1.msra.mxu0 0.0
        %880 = vmatprep.subr.mxu0 0.0
        %881 = vmatpush1.msra.mxu0 0.0
        %882 = vmatprep.mubr.f32.mxu0 0.0
        %883 = vmatmul.mubr.f32.gmra.mrb[0].mxu0 %v674
        %v884 = vpop.f32.mrb[0].mxu0
        %v885 = vadd.f32 %v670, %v884
        %v886 = vpop.f32.mrb[0].mxu0
        %v887 = vadd.f32 %v670, %v886
        %888 = vdwg.mxu0
        %889 = vmatprep.subr.mxu0 %v655
        %890 = vmatpush1.msra.mxu0 %v654
        %891 = vmatprep.subr.mxu0 %v656
        %892 = vmatpush1.msra.mxu0 %v655
        %893 = vmatprep.subr.mxu0 %v657
        %894 = vmatpush1.msra.mxu0 %v656
        %895 = vmatprep.subr.mxu0 0.0
        %896 = vmatpush1.msra.mxu0 0.0
        %897 = vmatprep.subr.mxu0 0.0
        %898 = vmatpush1.msra.mxu0 0.0
        %899 = vmatprep.subr.mxu0 0.0
        %900 = vmatpush1.msra.mxu0 0.0
        %901 = vmatprep.subr.mxu0 0.0
        %902 = vmatpush1.msra.mxu0 0.0
        %903 = vmatprep.subr.mxu0 0.0
        %904 = vmatpush1.msra.mxu0 0.0
        %905 = vmatprep.subr.mxu0 0.0
        %906 = vmatpush1.msra.mxu0 0.0
        %907 = vmatprep.subr.mxu0 0.0
        %908 = vmatpush1.msra.mxu0 0.0
        %909 = vmatprep.subr.mxu0 0.0
        %910 = vmatpush1.msra.mxu0 0.0
        %911 = vmatprep.subr.mxu0 0.0
        %912 = vmatpush1.msra.mxu0 0.0
        %913 = vmatprep.subr.mxu0 0.0
        %914 = vmatpush1.msra.mxu0 0.0
        %915 = vmatprep.subr.mxu0 0.0
        %916 = vmatpush1.msra.mxu0 0.0
        %917 = vmatprep.subr.mxu0 0.0
        %918 = vmatpush1.msra.mxu0 0.0
        %919 = vmatprep.subr.mxu0 0.0
        %920 = vmatpush1.msra.mxu0 0.0
        %921 = vmatprep.subr.mxu0 0.0
        %922 = vmatpush1.msra.mxu0 0.0
        %923 = vmatprep.subr.mxu0 0.0
        %924 = vmatpush1.msra.mxu0 0.0
        %925 = vmatprep.subr.mxu0 0.0
        %926 = vmatpush1.msra.mxu0 0.0
        %927 = vmatprep.subr.mxu0 0.0
        %928 = vmatpush1.msra.mxu0 0.0
        %929 = vmatprep.subr.mxu0 0.0
        %930 = vmatpush1.msra.mxu0 0.0
        %931 = vmatprep.subr.mxu0 0.0
        %932 = vmatpush1.msra.mxu0 0.0
        %933 = vmatprep.subr.mxu0 0.0
        %934 = vmatpush1.msra.mxu0 0.0
        %935 = vmatprep.subr.mxu0 0.0
        %936 = vmatpush1.msra.mxu0 0.0
        %937 = vmatprep.subr.mxu0 0.0
        %938 = vmatpush1.msra.mxu0 0.0
        %939 = vmatprep.subr.mxu0 0.0
        %940 = vmatpush1.msra.mxu0 0.0
        %941 = vmatprep.subr.mxu0 0.0
        %942 = vmatpush1.msra.mxu0 0.0
        %943 = vmatprep.subr.mxu0 0.0
        %944 = vmatpush1.msra.mxu0 0.0
        %945 = vmatprep.subr.mxu0 0.0
        %946 = vmatpush1.msra.mxu0 0.0
        %947 = vmatprep.subr.mxu0 0.0
        %948 = vmatpush1.msra.mxu0 0.0
        %949 = vmatprep.subr.mxu0 0.0
        %950 = vmatpush1.msra.mxu0 0.0
        %951 = vmatprep.subr.mxu0 0.0
        %952 = vmatpush1.msra.mxu0 0.0
        %953 = vmatprep.mubr.f32.mxu0 0.0
        %954 = vmatmul.mubr.f32.gmra.mrb[0].mxu0 %v674
        %v955 = vpop.f32.mrb[0].mxu0
        %v956 = vadd.f32 %v670, %v955
        %v957 = vpop.f32.mrb[0].mxu0
        %v958 = vadd.f32 %v670, %v957
        %959 = vdwg.mxu0
        %960 = vmatprep.subr.mxu0 %v657
        %961 = vmatpush1.msra.mxu0 %v656
        %962 = vmatprep.subr.mxu0 %v658
        %963 = vmatpush1.msra.mxu0 %v657
        %964 = vmatprep.subr.mxu0 %v659
        %965 = vmatpush1.msra.mxu0 %v658
        %966 = vmatprep.subr.mxu0 0.0
        %967 = vmatpush1.msra.mxu0 0.0
        %968 = vmatprep.subr.mxu0 0.0
        %969 = vmatpush1.msra.mxu0 0.0
        %970 = vmatprep.subr.mxu0 0.0
        %971 = vmatpush1.msra.mxu0 0.0
        %972 = vmatprep.subr.mxu0 0.0
        %973 = vmatpush1.msra.mxu0 0.0
        %974 = vmatprep.subr.mxu0 0.0
        %975 = vmatpush1.msra.mxu0 0.0
        %976 = vmatprep.subr.mxu0 0.0
        %977 = vmatpush1.msra.mxu0 0.0
        %978 = vmatprep.subr.mxu0 0.0
        %979 = vmatpush1.msra.mxu0 0.0
        %980 = vmatprep.subr.mxu0 0.0
        %981 = vmatpush1.msra.mxu0 0.0
        %982 = vmatprep.subr.mxu0 0.0
        %983 = vmatpush1.msra.mxu0 0.0
        %984 = vmatprep.subr.mxu0 0.0
        %985 = vmatpush1.msra.mxu0 0.0
        %986 = vmatprep.subr.mxu0 0.0
        %987 = vmatpush1.msra.mxu0 0.0
        %988 = vmatprep.subr.mxu0 0.0
        %989 = vmatpush1.msra.mxu0 0.0
        %990 = vmatprep.subr.mxu0 0.0
        %991 = vmatpush1.msra.mxu0 0.0
        %992 = vmatprep.subr.mxu0 0.0
        %993 = vmatpush1.msra.mxu0 0.0
        %994 = vmatprep.subr.mxu0 0.0
        %995 = vmatpush1.msra.mxu0 0.0
        %996 = vmatprep.subr.mxu0 0.0
        %997 = vmatpush1.msra.mxu0 0.0
        %998 = vmatprep.subr.mxu0 0.0
        %999 = vmatpush1.msra.mxu0 0.0
        %1000 = vmatprep.subr.mxu0 0.0
        %1001 = vmatpush1.msra.mxu0 0.0
        %1002 = vmatprep.subr.mxu0 0.0
        %1003 = vmatpush1.msra.mxu0 0.0
        %1004 = vmatprep.subr.mxu0 0.0
        %1005 = vmatpush1.msra.mxu0 0.0
        %1006 = vmatprep.subr.mxu0 0.0
        %1007 = vmatpush1.msra.mxu0 0.0
        %1008 = vmatprep.subr.mxu0 0.0
        %1009 = vmatpush1.msra.mxu0 0.0
        %1010 = vmatprep.subr.mxu0 0.0
        %1011 = vmatpush1.msra.mxu0 0.0
        %1012 = vmatprep.subr.mxu0 0.0
        %1013 = vmatpush1.msra.mxu0 0.0
        %1014 = vmatprep.subr.mxu0 0.0
        %1015 = vmatpush1.msra.mxu0 0.0
        %1016 = vmatprep.subr.mxu0 0.0
        %1017 = vmatpush1.msra.mxu0 0.0
        %1018 = vmatprep.subr.mxu0 0.0
        %1019 = vmatpush1.msra.mxu0 0.0
        %1020 = vmatprep.subr.mxu0 0.0
        %1021 = vmatpush1.msra.mxu0 0.0
        %1022 = vmatprep.subr.mxu0 0.0
        %1023 = vmatpush1.msra.mxu0 0.0
        %1024 = vmatprep.mubr.f32.mxu0 0.0
        %1025 = vmatmul.mubr.f32.gmra.mrb[0].mxu0 %v674
        %v1026 = vpop.f32.mrb[0].mxu0
        %v1027 = vadd.f32 %v670, %v1026
        %v1028 = vpop.f32.mrb[0].mxu0
        %v1029 = vadd.f32 %v670, %v1028
        %1030 = vdwg.mxu0
        %1031 = vmatprep.subr.mxu0 %v659
        %1032 = vmatpush1.msra.mxu0 %v658
        %1033 = vmatprep.subr.mxu0 %v660
        %1034 = vmatpush1.msra.mxu0 %v659
        %1035 = vmatprep.subr.mxu0 %v661
        %1036 = vmatpush1.msra.mxu0 %v660
        %1037 = vmatprep.subr.mxu0 0.0
        %1038 = vmatpush1.msra.mxu0 0.0
        %1039 = vmatprep.subr.mxu0 0.0
        %1040 = vmatpush1.msra.mxu0 0.0
        %1041 = vmatprep.subr.mxu0 0.0
        %1042 = vmatpush1.msra.mxu0 0.0
        %1043 = vmatprep.subr.mxu0 0.0
        %1044 = vmatpush1.msra.mxu0 0.0
        %1045 = vmatprep.subr.mxu0 0.0
        %1046 = vmatpush1.msra.mxu0 0.0
        %1047 = vmatprep.subr.mxu0 0.0
        %1048 = vmatpush1.msra.mxu0 0.0
        %1049 = vmatprep.subr.mxu0 0.0
        %1050 = vmatpush1.msra.mxu0 0.0
        %1051 = vmatprep.subr.mxu0 0.0
        %1052 = vmatpush1.msra.mxu0 0.0
        %1053 = vmatprep.subr.mxu0 0.0
        %1054 = vmatpush1.msra.mxu0 0.0
        %1055 = vmatprep.subr.mxu0 0.0
        %1056 = vmatpush1.msra.mxu0 0.0
        %1057 = vmatprep.subr.mxu0 0.0
        %1058 = vmatpush1.msra.mxu0 0.0
        %1059 = vmatprep.subr.mxu0 0.0
        %1060 = vmatpush1.msra.mxu0 0.0
        %1061 = vmatprep.subr.mxu0 0.0
        %1062 = vmatpush1.msra.mxu0 0.0
        %1063 = vmatprep.subr.mxu0 0.0
        %1064 = vmatpush1.msra.mxu0 0.0
        %1065 = vmatprep.subr.mxu0 0.0
        %1066 = vmatpush1.msra.mxu0 0.0
        %1067 = vmatprep.subr.mxu0 0.0
        %1068 = vmatpush1.msra.mxu0 0.0
        %1069 = vmatprep.subr.mxu0 0.0
        %1070 = vmatpush1.msra.mxu0 0.0
        %1071 = vmatprep.subr.mxu0 0.0
        %1072 = vmatpush1.msra.mxu0 0.0
        %1073 = vmatprep.subr.mxu0 0.0
        %1074 = vmatpush1.msra.mxu0 0.0
        %1075 = vmatprep.subr.mxu0 0.0
        %1076 = vmatpush1.msra.mxu0 0.0
        %1077 = vmatprep.subr.mxu0 0.0
        %1078 = vmatpush1.msra.mxu0 0.0
        %1079 = vmatprep.subr.mxu0 0.0
        %1080 = vmatpush1.msra.mxu0 0.0
        %1081 = vmatprep.subr.mxu0 0.0
        %1082 = vmatpush1.msra.mxu0 0.0
        %1083 = vmatprep.subr.mxu0 0.0
        %1084 = vmatpush1.msra.mxu0 0.0
        %1085 = vmatprep.subr.mxu0 0.0
        %1086 = vmatpush1.msra.mxu0 0.0
        %1087 = vmatprep.subr.mxu0 0.0
        %1088 = vmatpush1.msra.mxu0 0.0
        %1089 = vmatprep.subr.mxu0 0.0
        %1090 = vmatpush1.msra.mxu0 0.0
        %1091 = vmatprep.subr.mxu0 0.0
        %1092 = vmatpush1.msra.mxu0 0.0
        %1093 = vmatprep.subr.mxu0 0.0
        %1094 = vmatpush1.msra.mxu0 0.0
        %1095 = vmatprep.mubr.f32.mxu0 0.0
        %1096 = vmatmul.mubr.f32.gmra.mrb[0].mxu0 %v674
        %v1097 = vpop.f32.mrb[0].mxu0
        %v1098 = vadd.f32 %v670, %v1097
        %v1099 = vpop.f32.mrb[0].mxu0
        %v1100 = vadd.f32 %v670, %v1099
        %1101 = vdwg.mxu0
        %1102 = vmatprep.subr.mxu0 %v661
        %1103 = vmatpush1.msra.mxu0 %v660
        %1104 = vmatprep.subr.mxu0 %v662
        %1105 = vmatpush1.msra.mxu0 %v661
        %1106 = vmatprep.subr.mxu0 %v663
        %1107 = vmatpush1.msra.mxu0 %v662
        %1108 = vmatprep.subr.mxu0 0.0
        %1109 = vmatpush1.msra.mxu0 0.0
        %1110 = vmatprep.subr.mxu0 0.0
        %1111 = vmatpush1.msra.mxu0 0.0
        %1112 = vmatprep.subr.mxu0 0.0
        %1113 = vmatpush1.msra.mxu0 0.0
        %1114 = vmatprep.subr.mxu0 0.0
        %1115 = vmatpush1.msra.mxu0 0.0
        %1116 = vmatprep.subr.mxu0 0.0
        %1117 = vmatpush1.msra.mxu0 0.0
        %1118 = vmatprep.subr.mxu0 0.0
        %1119 = vmatpush1.msra.mxu0 0.0
        %1120 = vmatprep.subr.mxu0 0.0
        %1121 = vmatpush1.msra.mxu0 0.0
        %1122 = vmatprep.subr.mxu0 0.0
        %1123 = vmatpush1.msra.mxu0 0.0
        %1124 = vmatprep.subr.mxu0 0.0
        %1125 = vmatpush1.msra.mxu0 0.0
        %1126 = vmatprep.subr.mxu0 0.0
        %1127 = vmatpush1.msra.mxu0 0.0
        %1128 = vmatprep.subr.mxu0 0.0
        %1129 = vmatpush1.msra.mxu0 0.0
        %1130 = vmatprep.subr.mxu0 0.0
        %1131 = vmatpush1.msra.mxu0 0.0
        %1132 = vmatprep.subr.mxu0 0.0
        %1133 = vmatpush1.msra.mxu0 0.0
        %1134 = vmatprep.subr.mxu0 0.0
        %1135 = vmatpush1.msra.mxu0 0.0
        %1136 = vmatprep.subr.mxu0 0.0
        %1137 = vmatpush1.msra.mxu0 0.0
        %1138 = vmatprep.subr.mxu0 0.0
        %1139 = vmatpush1.msra.mxu0 0.0
        %1140 = vmatprep.subr.mxu0 0.0
        %1141 = vmatpush1.msra.mxu0 0.0
        %1142 = vmatprep.subr.mxu0 0.0
        %1143 = vmatpush1.msra.mxu0 0.0
        %1144 = vmatprep.subr.mxu0 0.0
        %1145 = vmatpush1.msra.mxu0 0.0
        %1146 = vmatprep.subr.mxu0 0.0
        %1147 = vmatpush1.msra.mxu0 0.0
        %1148 = vmatprep.subr.mxu0 0.0
        %1149 = vmatpush1.msra.mxu0 0.0
        %1150 = vmatprep.subr.mxu0 0.0
        %1151 = vmatpush1.msra.mxu0 0.0
        %1152 = vmatprep.subr.mxu0 0.0
        %1153 = vmatpush1.msra.mxu0 0.0
        %1154 = vmatprep.subr.mxu0 0.0
        %1155 = vmatpush1.msra.mxu0 0.0
        %1156 = vmatprep.subr.mxu0 0.0
        %1157 = vmatpush1.msra.mxu0 0.0
        %1158 = vmatprep.subr.mxu0 0.0
        %1159 = vmatpush1.msra.mxu0 0.0
        %1160 = vmatprep.subr.mxu0 0.0
        %1161 = vmatpush1.msra.mxu0 0.0
        %1162 = vmatprep.subr.mxu0 0.0
        %1163 = vmatpush1.msra.mxu0 0.0
        %1164 = vmatprep.subr.mxu0 0.0
        %1165 = vmatpush1.msra.mxu0 0.0
        %1166 = vmatprep.mubr.f32.mxu0 0.0
        %1167 = vmatmul.mubr.f32.gmra.mrb[0].mxu0 %v674
        %v1168 = vpop.f32.mrb[0].mxu0
        %v1169 = vadd.f32 %v670, %v1168
        %v1170 = vpop.f32.mrb[0].mxu0
        %v1171 = vadd.f32 %v670, %v1170
        %1172 = vdwg.mxu0
        %1173 = vmatprep.subr.mxu0 %v663
        %1174 = vmatpush1.msra.mxu0 %v662
        %1175 = vmatprep.subr.mxu0 %v664
        %1176 = vmatpush1.msra.mxu0 %v663
        %1177 = vmatprep.subr.mxu0 0.0
        %1178 = vmatpush1.msra.mxu0 %v664
        %1179 = vmatprep.subr.mxu0 0.0
        %1180 = vmatpush1.msra.mxu0 0.0
        %1181 = vmatprep.subr.mxu0 0.0
        %1182 = vmatpush1.msra.mxu0 0.0
        %1183 = vmatprep.subr.mxu0 0.0
        %1184 = vmatpush1.msra.mxu0 0.0
        %1185 = vmatprep.subr.mxu0 0.0
        %1186 = vmatpush1.msra.mxu0 0.0
        %1187 = vmatprep.subr.mxu0 0.0
        %1188 = vmatpush1.msra.mxu0 0.0
        %1189 = vmatprep.subr.mxu0 0.0
        %1190 = vmatpush1.msra.mxu0 0.0
        %1191 = vmatprep.subr.mxu0 0.0
        %1192 = vmatpush1.msra.mxu0 0.0
        %1193 = vmatprep.subr.mxu0 0.0
        %1194 = vmatpush1.msra.mxu0 0.0
        %1195 = vmatprep.subr.mxu0 0.0
        %1196 = vmatpush1.msra.mxu0 0.0
        %1197 = vmatprep.subr.mxu0 0.0
        %1198 = vmatpush1.msra.mxu0 0.0
        %1199 = vmatprep.subr.mxu0 0.0
        %1200 = vmatpush1.msra.mxu0 0.0
        %1201 = vmatprep.subr.mxu0 0.0
        %1202 = vmatpush1.msra.mxu0 0.0
        %1203 = vmatprep.subr.mxu0 0.0
        %1204 = vmatpush1.msra.mxu0 0.0
        %1205 = vmatprep.subr.mxu0 0.0
        %1206 = vmatpush1.msra.mxu0 0.0
        %1207 = vmatprep.subr.mxu0 0.0
        %1208 = vmatpush1.msra.mxu0 0.0
        %1209 = vmatprep.subr.mxu0 0.0
        %1210 = vmatpush1.msra.mxu0 0.0
        %1211 = vmatprep.subr.mxu0 0.0
        %1212 = vmatpush1.msra.mxu0 0.0
        %1213 = vmatprep.subr.mxu0 0.0
        %1214 = vmatpush1.msra.mxu0 0.0
        %1215 = vmatprep.subr.mxu0 0.0
        %1216 = vmatpush1.msra.mxu0 0.0
        %1217 = vmatprep.subr.mxu0 0.0
        %1218 = vmatpush1.msra.mxu0 0.0
        %1219 = vmatprep.subr.mxu0 0.0
        %1220 = vmatpush1.msra.mxu0 0.0
        %1221 = vmatprep.subr.mxu0 0.0
        %1222 = vmatpush1.msra.mxu0 0.0
        %1223 = vmatprep.subr.mxu0 0.0
        %1224 = vmatpush1.msra.mxu0 0.0
        %1225 = vmatprep.subr.mxu0 0.0
        %1226 = vmatpush1.msra.mxu0 0.0
        %1227 = vmatprep.subr.mxu0 0.0
        %1228 = vmatpush1.msra.mxu0 0.0
        %1229 = vmatprep.subr.mxu0 0.0
        %1230 = vmatpush1.msra.mxu0 0.0
        %1231 = vmatprep.subr.mxu0 0.0
        %1232 = vmatpush1.msra.mxu0 0.0
        %1233 = vmatprep.subr.mxu0 0.0
        %1234 = vmatpush1.msra.mxu0 0.0
        %1235 = vmatprep.subr.mxu0 0.0
        %1236 = vmatpush1.msra.mxu0 0.0
        %1237 = vmatprep.mubr.f32.mxu0 0.0
        %1238 = vmatmul.mubr.f32.gmra.mrb[0].mxu0 %v674
        %v1239 = vpop.f32.mrb[0].mxu0
        %v1240 = vadd.f32 %v670, %v1239
        %v1241 = vpop.f32.mrb[0].mxu0
        %v1242 = vadd.f32 %v670, %v1241
        %1243 = vdwg.mxu0
        %v1244 = vmax.f32 %v743, 0.0
        %v1245 = vmax.f32 %v745, 0.0
        %v1246 = vmax.f32 %v814, 0.0
        %v1247 = vmax.f32 %v816, 0.0
        %v1248 = vmax.f32 %v885, 0.0
        %v1249 = vmax.f32 %v887, 0.0
        %v1250 = vmax.f32 %v956, 0.0
        %v1251 = vmax.f32 %v958, 0.0
        %v1252 = vmax.f32 %v1027, 0.0
        %v1253 = vmax.f32 %v1029, 0.0
        %v1254 = vmax.f32 %v1098, 0.0
        %v1255 = vmax.f32 %v1100, 0.0
        %v1256 = vmax.f32 %v1169, 0.0
        %v1257 = vmax.f32 %v1171, 0.0
        %v1258 = vmax.f32 %v1240, 0.0
        %v1259 = vmax.f32 %v1242, 0.0
        %vm1260 = vcmp.ge.s32.totalorder %v647, 1
        %vm1261 = vcmp.ge.s32.totalorder %v648, 1
        %1278 = vrot.lane.b32.xlu0 %v1244, 1
        %v1279 = vpop.permute.xlu0 %1278
        %1280 = vrot.lane.b32.xlu0 %v1245, 1
        %v1281 = vpop.permute.xlu0 %1280
        %1282 = vrot.lane.b32.xlu0 %v1246, 1
        %v1283 = vpop.permute.xlu0 %1282
        %1284 = vrot.lane.b32.xlu0 %v1247, 1
        %v1285 = vpop.permute.xlu0 %1284
        %1286 = vrot.lane.b32.xlu0 %v1248, 1
        %v1287 = vpop.permute.xlu0 %1286
        %1288 = vrot.lane.b32.xlu0 %v1249, 1
        %v1289 = vpop.permute.xlu0 %1288
        %1290 = vrot.lane.b32.xlu0 %v1250, 1
        %v1291 = vpop.permute.xlu0 %1290
        %1292 = vrot.lane.b32.xlu0 %v1251, 1
        %v1293 = vpop.permute.xlu0 %1292
        %1294 = vrot.lane.b32.xlu0 %v1252, 1
        %v1295 = vpop.permute.xlu0 %1294
        %1296 = vrot.lane.b32.xlu0 %v1253, 1
        %v1297 = vpop.permute.xlu0 %1296
        %1298 = vrot.lane.b32.xlu0 %v1254, 1
        %v1299 = vpop.permute.xlu0 %1298
        %1300 = vrot.lane.b32.xlu0 %v1255, 1
        %v1301 = vpop.permute.xlu0 %1300
        %1302 = vrot.lane.b32.xlu0 %v1256, 1
        %v1303 = vpop.permute.xlu0 %1302
        %1304 = vrot.lane.b32.xlu0 %v1257, 1
        %v1305 = vpop.permute.xlu0 %1304
        %1306 = vrot.lane.b32.xlu0 %v1258, 1
        %v1307 = vpop.permute.xlu0 %1306
        %1308 = vrot.lane.b32.xlu0 %v1259, 1
        %v1309 = vpop.permute.xlu0 %1308
        %vm1310 = vcmask 7168
        %v1311 = vsel %vm1310, %v1279, %v1281
        %v1312 = vsel %vm1310, %v1281, %v1283
        %v1313 = vsel %vm1310, %v1283, %v1285
        %v1314 = vsel %vm1310, %v1285, %v1287
        %v1315 = vsel %vm1310, %v1287, %v1289
        %v1316 = vsel %vm1310, %v1289, %v1291
        %v1317 = vsel %vm1310, %v1291, %v1293
        %v1318 = vsel %vm1310, %v1293, %v1295
        %v1319 = vsel %vm1310, %v1295, %v1297
        %v1320 = vsel %vm1310, %v1297, %v1299
        %v1321 = vsel %vm1310, %v1299, %v1301
        %v1322 = vsel %vm1310, %v1301, %v1303
        %v1323 = vsel %vm1310, %v1303, %v1305
        %v1324 = vsel %vm1310, %v1305, %v1307
        %v1325 = vsel %vm1310, %v1307, %v1309
        %v1342 = vsel %vm1310, 0.0, %v1279
        %v1343 = vsel %vm1260, 1, 0
        %v1344 = vsel %vm1261, 1, 0
        %v1345 = vlaneseq
        %v1346 = vshrl.u32 %v1345, 7
        %v1347 = vsub.s32 0, %v1346
        %v1348 = vrot.slane %v1343, %v1347
        %v1349 = vlaneseq
        %v1350 = vshrl.u32 %v1349, 7
        %v1351 = vsub.s32 1, %v1350
        %v1352 = vrot.slane %v1343, %v1351
        %v1353 = vlaneseq
        %v1354 = vshrl.u32 %v1353, 7
        %v1355 = vsub.s32 2, %v1354
        %v1356 = vrot.slane %v1343, %v1355
        %v1357 = vlaneseq
        %v1358 = vshrl.u32 %v1357, 7
        %v1359 = vsub.s32 3, %v1358
        %v1360 = vrot.slane %v1343, %v1359
        %v1361 = vlaneseq
        %v1362 = vshrl.u32 %v1361, 7
        %v1363 = vsub.s32 4, %v1362
        %v1364 = vrot.slane %v1343, %v1363
        %v1365 = vlaneseq
        %v1366 = vshrl.u32 %v1365, 7
        %v1367 = vsub.s32 5, %v1366
        %v1368 = vrot.slane %v1343, %v1367
        %v1369 = vlaneseq
        %v1370 = vshrl.u32 %v1369, 7
        %v1371 = vsub.s32 6, %v1370
        %v1372 = vrot.slane %v1343, %v1371
        %v1373 = vlaneseq
        %v1374 = vshrl.u32 %v1373, 7
        %v1375 = vsub.s32 7, %v1374
        %v1376 = vrot.slane %v1343, %v1375
        %v1377 = vlaneseq
        %v1378 = vshrl.u32 %v1377, 7
        %v1379 = vsub.s32 0, %v1378
        %v1380 = vrot.slane %v1344, %v1379
        %v1381 = vlaneseq
        %v1382 = vshrl.u32 %v1381, 7
        %v1383 = vsub.s32 1, %v1382
        %v1384 = vrot.slane %v1344, %v1383
        %v1385 = vlaneseq
        %v1386 = vshrl.u32 %v1385, 7
        %v1387 = vsub.s32 2, %v1386
        %v1388 = vrot.slane %v1344, %v1387
        %v1389 = vlaneseq
        %v1390 = vshrl.u32 %v1389, 7
        %v1391 = vsub.s32 3, %v1390
        %v1392 = vrot.slane %v1344, %v1391
        %v1393 = vlaneseq
        %v1394 = vshrl.u32 %v1393, 7
        %v1395 = vsub.s32 4, %v1394
        %v1396 = vrot.slane %v1344, %v1395
        %v1397 = vlaneseq
        %v1398 = vshrl.u32 %v1397, 7
        %v1399 = vsub.s32 5, %v1398
        %v1400 = vrot.slane %v1344, %v1399
        %v1401 = vlaneseq
        %v1402 = vshrl.u32 %v1401, 7
        %v1403 = vsub.s32 6, %v1402
        %v1404 = vrot.slane %v1344, %v1403
        %v1405 = vlaneseq
        %v1406 = vshrl.u32 %v1405, 7
        %v1407 = vsub.s32 7, %v1406
        %v1408 = vrot.slane %v1344, %v1407
        %vm1409 = vcmp.eq.s32.totalorder %v1348, 1
        %vm1410 = vcmp.eq.s32.totalorder %v1352, 1
        %vm1411 = vcmp.eq.s32.totalorder %v1356, 1
        %vm1412 = vcmp.eq.s32.totalorder %v1360, 1
        %vm1413 = vcmp.eq.s32.totalorder %v1364, 1
        %vm1414 = vcmp.eq.s32.totalorder %v1368, 1
        %vm1415 = vcmp.eq.s32.totalorder %v1372, 1
        %vm1416 = vcmp.eq.s32.totalorder %v1376, 1
        %vm1417 = vcmp.eq.s32.totalorder %v1380, 1
        %vm1418 = vcmp.eq.s32.totalorder %v1384, 1
        %vm1419 = vcmp.eq.s32.totalorder %v1388, 1
        %vm1420 = vcmp.eq.s32.totalorder %v1392, 1
        %vm1421 = vcmp.eq.s32.totalorder %v1396, 1
        %vm1422 = vcmp.eq.s32.totalorder %v1400, 1
        %vm1423 = vcmp.eq.s32.totalorder %v1404, 1
        %vm1424 = vcmp.eq.s32.totalorder %v1408, 1
        %v1425 = vsel %vm1409, %v1342, 0.0
        %v1426 = vsel %vm1410, %v1311, 0.0
        %v1427 = vsel %vm1411, %v1312, 0.0
        %v1428 = vsel %vm1412, %v1313, 0.0
        %v1429 = vsel %vm1413, %v1314, 0.0
        %v1430 = vsel %vm1414, %v1315, 0.0
        %v1431 = vsel %vm1415, %v1316, 0.0
        %v1432 = vsel %vm1416, %v1317, 0.0
        %v1433 = vsel %vm1417, %v1318, 0.0
        %v1434 = vsel %vm1418, %v1319, 0.0
        %v1435 = vsel %vm1419, %v1320, 0.0
        %v1436 = vsel %vm1420, %v1321, 0.0
        %v1437 = vsel %vm1421, %v1322, 0.0
        %v1438 = vsel %vm1422, %v1323, 0.0
        %v1439 = vsel %vm1423, %v1324, 0.0
        %v1440 = vsel %vm1424, %v1325, 0.0
        %vm1441 = vcmp.lt.s32.totalorder %v647, 127
        %vm1442 = vcmp.lt.s32.totalorder %v648, 127
        %1443 = vrot.lane.b32.xlu0 %v1244, 127
        %v1444 = vpop.permute.xlu0 %1443
        %1445 = vrot.lane.b32.xlu0 %v1245, 127
        %v1446 = vpop.permute.xlu0 %1445
        %1447 = vrot.lane.b32.xlu0 %v1246, 127
        %v1448 = vpop.permute.xlu0 %1447
        %1449 = vrot.lane.b32.xlu0 %v1247, 127
        %v1450 = vpop.permute.xlu0 %1449
        %1451 = vrot.lane.b32.xlu0 %v1248, 127
        %v1452 = vpop.permute.xlu0 %1451
        %1453 = vrot.lane.b32.xlu0 %v1249, 127
        %v1454 = vpop.permute.xlu0 %1453
        %1455 = vrot.lane.b32.xlu0 %v1250, 127
        %v1456 = vpop.permute.xlu0 %1455
        %1457 = vrot.lane.b32.xlu0 %v1251, 127
        %v1458 = vpop.permute.xlu0 %1457
        %1459 = vrot.lane.b32.xlu0 %v1252, 127
        %v1460 = vpop.permute.xlu0 %1459
        %1461 = vrot.lane.b32.xlu0 %v1253, 127
        %v1462 = vpop.permute.xlu0 %1461
        %1463 = vrot.lane.b32.xlu0 %v1254, 127
        %v1464 = vpop.permute.xlu0 %1463
        %1465 = vrot.lane.b32.xlu0 %v1255, 127
        %v1466 = vpop.permute.xlu0 %1465
        %1467 = vrot.lane.b32.xlu0 %v1256, 127
        %v1468 = vpop.permute.xlu0 %1467
        %1469 = vrot.lane.b32.xlu0 %v1257, 127
        %v1470 = vpop.permute.xlu0 %1469
        %1471 = vrot.lane.b32.xlu0 %v1258, 127
        %v1472 = vpop.permute.xlu0 %1471
        %1473 = vrot.lane.b32.xlu0 %v1259, 127
        %v1474 = vpop.permute.xlu0 %1473
        %vm1475 = vcmask 1039360
        %v1476 = vsel %vm1475, %v1444, %v1446
        %v1477 = vsel %vm1475, %v1446, %v1448
        %v1478 = vsel %vm1475, %v1448, %v1450
        %v1479 = vsel %vm1475, %v1450, %v1452
        %v1480 = vsel %vm1475, %v1452, %v1454
        %v1481 = vsel %vm1475, %v1454, %v1456
        %v1482 = vsel %vm1475, %v1456, %v1458
        %v1483 = vsel %vm1475, %v1458, %v1460
        %v1484 = vsel %vm1475, %v1460, %v1462
        %v1485 = vsel %vm1475, %v1462, %v1464
        %v1486 = vsel %vm1475, %v1464, %v1466
        %v1487 = vsel %vm1475, %v1466, %v1468
        %v1488 = vsel %vm1475, %v1468, %v1470
        %v1489 = vsel %vm1475, %v1470, %v1472
        %v1490 = vsel %vm1475, %v1472, %v1474
        %v1507 = vsel %vm1475, %v1474, 0.0
        %v1508 = vsel %vm1441, 1, 0
        %v1509 = vsel %vm1442, 1, 0
        %v1510 = vlaneseq
        %v1511 = vshrl.u32 %v1510, 7
        %v1512 = vsub.s32 0, %v1511
        %v1513 = vrot.slane %v1508, %v1512
        %v1514 = vlaneseq
        %v1515 = vshrl.u32 %v1514, 7
        %v1516 = vsub.s32 1, %v1515
        %v1517 = vrot.slane %v1508, %v1516
        %v1518 = vlaneseq
        %v1519 = vshrl.u32 %v1518, 7
        %v1520 = vsub.s32 2, %v1519
        %v1521 = vrot.slane %v1508, %v1520
        %v1522 = vlaneseq
        %v1523 = vshrl.u32 %v1522, 7
        %v1524 = vsub.s32 3, %v1523
        %v1525 = vrot.slane %v1508, %v1524
        %v1526 = vlaneseq
        %v1527 = vshrl.u32 %v1526, 7
        %v1528 = vsub.s32 4, %v1527
        %v1529 = vrot.slane %v1508, %v1528
        %v1530 = vlaneseq
        %v1531 = vshrl.u32 %v1530, 7
        %v1532 = vsub.s32 5, %v1531
        %v1533 = vrot.slane %v1508, %v1532
        %v1534 = vlaneseq
        %v1535 = vshrl.u32 %v1534, 7
        %v1536 = vsub.s32 6, %v1535
        %v1537 = vrot.slane %v1508, %v1536
        %v1538 = vlaneseq
        %v1539 = vshrl.u32 %v1538, 7
        %v1540 = vsub.s32 7, %v1539
        %v1541 = vrot.slane %v1508, %v1540
        %v1542 = vlaneseq
        %v1543 = vshrl.u32 %v1542, 7
        %v1544 = vsub.s32 0, %v1543
        %v1545 = vrot.slane %v1509, %v1544
        %v1546 = vlaneseq
        %v1547 = vshrl.u32 %v1546, 7
        %v1548 = vsub.s32 1, %v1547
        %v1549 = vrot.slane %v1509, %v1548
        %v1550 = vlaneseq
        %v1551 = vshrl.u32 %v1550, 7
        %v1552 = vsub.s32 2, %v1551
        %v1553 = vrot.slane %v1509, %v1552
        %v1554 = vlaneseq
        %v1555 = vshrl.u32 %v1554, 7
        %v1556 = vsub.s32 3, %v1555
        %v1557 = vrot.slane %v1509, %v1556
        %v1558 = vlaneseq
        %v1559 = vshrl.u32 %v1558, 7
        %v1560 = vsub.s32 4, %v1559
        %v1561 = vrot.slane %v1509, %v1560
        %v1562 = vlaneseq
        %v1563 = vshrl.u32 %v1562, 7
        %v1564 = vsub.s32 5, %v1563
        %v1565 = vrot.slane %v1509, %v1564
        %v1566 = vlaneseq
        %v1567 = vshrl.u32 %v1566, 7
        %v1568 = vsub.s32 6, %v1567
        %v1569 = vrot.slane %v1509, %v1568
        %v1570 = vlaneseq
        %v1571 = vshrl.u32 %v1570, 7
        %v1572 = vsub.s32 7, %v1571
        %v1573 = vrot.slane %v1509, %v1572
        %vm1574 = vcmp.eq.s32.totalorder %v1513, 1
        %vm1575 = vcmp.eq.s32.totalorder %v1517, 1
        %vm1576 = vcmp.eq.s32.totalorder %v1521, 1
        %vm1577 = vcmp.eq.s32.totalorder %v1525, 1
        %vm1578 = vcmp.eq.s32.totalorder %v1529, 1
        %vm1579 = vcmp.eq.s32.totalorder %v1533, 1
        %vm1580 = vcmp.eq.s32.totalorder %v1537, 1
        %vm1581 = vcmp.eq.s32.totalorder %v1541, 1
        %vm1582 = vcmp.eq.s32.totalorder %v1545, 1
        %vm1583 = vcmp.eq.s32.totalorder %v1549, 1
        %vm1584 = vcmp.eq.s32.totalorder %v1553, 1
        %vm1585 = vcmp.eq.s32.totalorder %v1557, 1
        %vm1586 = vcmp.eq.s32.totalorder %v1561, 1
        %vm1587 = vcmp.eq.s32.totalorder %v1565, 1
        %vm1588 = vcmp.eq.s32.totalorder %v1569, 1
        %vm1589 = vcmp.eq.s32.totalorder %v1573, 1
        %v1590 = vsel %vm1574, %v1476, 0.0
        %v1591 = vsel %vm1575, %v1477, 0.0
        %v1592 = vsel %vm1576, %v1478, 0.0
        %v1593 = vsel %vm1577, %v1479, 0.0
        %v1594 = vsel %vm1578, %v1480, 0.0
        %v1595 = vsel %vm1579, %v1481, 0.0
        %v1596 = vsel %vm1580, %v1482, 0.0
        %v1597 = vsel %vm1581, %v1483, 0.0
        %v1598 = vsel %vm1582, %v1484, 0.0
        %v1599 = vsel %vm1583, %v1485, 0.0
        %v1600 = vsel %vm1584, %v1486, 0.0
        %v1601 = vsel %vm1585, %v1487, 0.0
        %v1602 = vsel %vm1586, %v1488, 0.0
        %v1603 = vsel %vm1587, %v1489, 0.0
        %v1604 = vsel %vm1588, %v1490, 0.0
        %v1605 = vsel %vm1589, %v1507, 0.0
        %v1606 = vld [vmem:[#allocation10] sm:$0xff]
        %v1607 = vld [vmem:[#allocation11] sm:$0xff]
        %1609 = vset.pattern.permute.xlu0 0
        %1610 = vperm.xlu0 %1609, %v1607
        %v1611 = vpop.permute.xlu0 %1610
        %v1614 = vsel %vm672, %v1606, 0
        %1616 = vmatprep.subr.mxu0 %v1426
        %1617 = vmatpush1.msra.mxu0 %v1425
        %1618 = vmatprep.subr.mxu0 %v1245
        %1619 = vmatpush1.msra.mxu0 %v1244
        %1620 = vmatprep.subr.mxu0 %v1591
        %1621 = vmatpush1.msra.mxu0 %v1590
        %1622 = vmatprep.subr.mxu0 0.0
        %1623 = vmatpush1.msra.mxu0 0.0
        %1624 = vmatprep.subr.mxu0 0.0
        %1625 = vmatpush1.msra.mxu0 0.0
        %1626 = vmatprep.subr.mxu0 0.0
        %1627 = vmatpush1.msra.mxu0 0.0
        %1628 = vmatprep.subr.mxu0 0.0
        %1629 = vmatpush1.msra.mxu0 0.0
        %1630 = vmatprep.subr.mxu0 0.0
        %1631 = vmatpush1.msra.mxu0 0.0
        %1632 = vmatprep.subr.mxu0 0.0
        %1633 = vmatpush1.msra.mxu0 0.0
        %1634 = vmatprep.subr.mxu0 0.0
        %1635 = vmatpush1.msra.mxu0 0.0
        %1636 = vmatprep.subr.mxu0 0.0
        %1637 = vmatpush1.msra.mxu0 0.0
        %1638 = vmatprep.subr.mxu0 0.0
        %1639 = vmatpush1.msra.mxu0 0.0
        %1640 = vmatprep.subr.mxu0 0.0
        %1641 = vmatpush1.msra.mxu0 0.0
        %1642 = vmatprep.subr.mxu0 0.0
        %1643 = vmatpush1.msra.mxu0 0.0
        %1644 = vmatprep.subr.mxu0 0.0
        %1645 = vmatpush1.msra.mxu0 0.0
        %1646 = vmatprep.subr.mxu0 0.0
        %1647 = vmatpush1.msra.mxu0 0.0
        %1648 = vmatprep.subr.mxu0 0.0
        %1649 = vmatpush1.msra.mxu0 0.0
        %1650 = vmatprep.subr.mxu0 0.0
        %1651 = vmatpush1.msra.mxu0 0.0
        %1652 = vmatprep.subr.mxu0 0.0
        %1653 = vmatpush1.msra.mxu0 0.0
        %1654 = vmatprep.subr.mxu0 0.0
        %1655 = vmatpush1.msra.mxu0 0.0
        %1656 = vmatprep.subr.mxu0 0.0
        %1657 = vmatpush1.msra.mxu0 0.0
        %1658 = vmatprep.subr.mxu0 0.0
        %1659 = vmatpush1.msra.mxu0 0.0
        %1660 = vmatprep.subr.mxu0 0.0
        %1661 = vmatpush1.msra.mxu0 0.0
        %1662 = vmatprep.subr.mxu0 0.0
        %1663 = vmatpush1.msra.mxu0 0.0
        %1664 = vmatprep.subr.mxu0 0.0
        %1665 = vmatpush1.msra.mxu0 0.0
        %1666 = vmatprep.subr.mxu0 0.0
        %1667 = vmatpush1.msra.mxu0 0.0
        %1668 = vmatprep.subr.mxu0 0.0
        %1669 = vmatpush1.msra.mxu0 0.0
        %1670 = vmatprep.subr.mxu0 0.0
        %1671 = vmatpush1.msra.mxu0 0.0
        %1672 = vmatprep.subr.mxu0 0.0
        %1673 = vmatpush1.msra.mxu0 0.0
        %1674 = vmatprep.subr.mxu0 0.0
        %1675 = vmatpush1.msra.mxu0 0.0
        %1676 = vmatprep.subr.mxu0 0.0
        %1677 = vmatpush1.msra.mxu0 0.0
        %1678 = vmatprep.subr.mxu0 0.0
        %1679 = vmatpush1.msra.mxu0 0.0
        %1680 = vmatprep.mubr.f32.mxu0 0.0
        %1681 = vmatmul.mubr.f32.gmra.mrb[0].mxu0 %v1614
        %v1682 = vpop.f32.mrb[0].mxu0
        %v1683 = vadd.f32 %v1611, %v1682
        %v1684 = vpop.f32.mrb[0].mxu0
        %v1685 = vadd.f32 %v1611, %v1684
        %1686 = vdwg.mxu0
        %1687 = vmatprep.subr.mxu0 %v1428
        %1688 = vmatpush1.msra.mxu0 %v1427
        %1689 = vmatprep.subr.mxu0 %v1247
        %1690 = vmatpush1.msra.mxu0 %v1246
        %1691 = vmatprep.subr.mxu0 %v1593
        %1692 = vmatpush1.msra.mxu0 %v1592
        %1693 = vmatprep.subr.mxu0 0.0
        %1694 = vmatpush1.msra.mxu0 0.0
        %1695 = vmatprep.subr.mxu0 0.0
        %1696 = vmatpush1.msra.mxu0 0.0
        %1697 = vmatprep.subr.mxu0 0.0
        %1698 = vmatpush1.msra.mxu0 0.0
        %1699 = vmatprep.subr.mxu0 0.0
        %1700 = vmatpush1.msra.mxu0 0.0
        %1701 = vmatprep.subr.mxu0 0.0
        %1702 = vmatpush1.msra.mxu0 0.0
        %1703 = vmatprep.subr.mxu0 0.0
        %1704 = vmatpush1.msra.mxu0 0.0
        %1705 = vmatprep.subr.mxu0 0.0
        %1706 = vmatpush1.msra.mxu0 0.0
        %1707 = vmatprep.subr.mxu0 0.0
        %1708 = vmatpush1.msra.mxu0 0.0
        %1709 = vmatprep.subr.mxu0 0.0
        %1710 = vmatpush1.msra.mxu0 0.0
        %1711 = vmatprep.subr.mxu0 0.0
        %1712 = vmatpush1.msra.mxu0 0.0
        %1713 = vmatprep.subr.mxu0 0.0
        %1714 = vmatpush1.msra.mxu0 0.0
        %1715 = vmatprep.subr.mxu0 0.0
        %1716 = vmatpush1.msra.mxu0 0.0
        %1717 = vmatprep.subr.mxu0 0.0
        %1718 = vmatpush1.msra.mxu0 0.0
        %1719 = vmatprep.subr.mxu0 0.0
        %1720 = vmatpush1.msra.mxu0 0.0
        %1721 = vmatprep.subr.mxu0 0.0
        %1722 = vmatpush1.msra.mxu0 0.0
        %1723 = vmatprep.subr.mxu0 0.0
        %1724 = vmatpush1.msra.mxu0 0.0
        %1725 = vmatprep.subr.mxu0 0.0
        %1726 = vmatpush1.msra.mxu0 0.0
        %1727 = vmatprep.subr.mxu0 0.0
        %1728 = vmatpush1.msra.mxu0 0.0
        %1729 = vmatprep.subr.mxu0 0.0
        %1730 = vmatpush1.msra.mxu0 0.0
        %1731 = vmatprep.subr.mxu0 0.0
        %1732 = vmatpush1.msra.mxu0 0.0
        %1733 = vmatprep.subr.mxu0 0.0
        %1734 = vmatpush1.msra.mxu0 0.0
        %1735 = vmatprep.subr.mxu0 0.0
        %1736 = vmatpush1.msra.mxu0 0.0
        %1737 = vmatprep.subr.mxu0 0.0
        %1738 = vmatpush1.msra.mxu0 0.0
        %1739 = vmatprep.subr.mxu0 0.0
        %1740 = vmatpush1.msra.mxu0 0.0
        %1741 = vmatprep.subr.mxu0 0.0
        %1742 = vmatpush1.msra.mxu0 0.0
        %1743 = vmatprep.subr.mxu0 0.0
        %1744 = vmatpush1.msra.mxu0 0.0
        %1745 = vmatprep.subr.mxu0 0.0
        %1746 = vmatpush1.msra.mxu0 0.0
        %1747 = vmatprep.subr.mxu0 0.0
        %1748 = vmatpush1.msra.mxu0 0.0
        %1749 = vmatprep.subr.mxu0 0.0
        %1750 = vmatpush1.msra.mxu0 0.0
        %1751 = vmatprep.mubr.f32.mxu0 0.0
        %1752 = vmatmul.mubr.f32.gmra.mrb[0].mxu0 %v1614
        %v1753 = vpop.f32.mrb[0].mxu0
        %v1754 = vadd.f32 %v1611, %v1753
        %v1755 = vpop.f32.mrb[0].mxu0
        %v1756 = vadd.f32 %v1611, %v1755
        %1757 = vdwg.mxu0
        %1758 = vmatprep.subr.mxu0 %v1430
        %1759 = vmatpush1.msra.mxu0 %v1429
        %1760 = vmatprep.subr.mxu0 %v1249
        %1761 = vmatpush1.msra.mxu0 %v1248
        %1762 = vmatprep.subr.mxu0 %v1595
        %1763 = vmatpush1.msra.mxu0 %v1594
        %1764 = vmatprep.subr.mxu0 0.0
        %1765 = vmatpush1.msra.mxu0 0.0
        %1766 = vmatprep.subr.mxu0 0.0
        %1767 = vmatpush1.msra.mxu0 0.0
        %1768 = vmatprep.subr.mxu0 0.0
        %1769 = vmatpush1.msra.mxu0 0.0
        %1770 = vmatprep.subr.mxu0 0.0
        %1771 = vmatpush1.msra.mxu0 0.0
        %1772 = vmatprep.subr.mxu0 0.0
        %1773 = vmatpush1.msra.mxu0 0.0
        %1774 = vmatprep.subr.mxu0 0.0
        %1775 = vmatpush1.msra.mxu0 0.0
        %1776 = vmatprep.subr.mxu0 0.0
        %1777 = vmatpush1.msra.mxu0 0.0
        %1778 = vmatprep.subr.mxu0 0.0
        %1779 = vmatpush1.msra.mxu0 0.0
        %1780 = vmatprep.subr.mxu0 0.0
        %1781 = vmatpush1.msra.mxu0 0.0
        %1782 = vmatprep.subr.mxu0 0.0
        %1783 = vmatpush1.msra.mxu0 0.0
        %1784 = vmatprep.subr.mxu0 0.0
        %1785 = vmatpush1.msra.mxu0 0.0
        %1786 = vmatprep.subr.mxu0 0.0
        %1787 = vmatpush1.msra.mxu0 0.0
        %1788 = vmatprep.subr.mxu0 0.0
        %1789 = vmatpush1.msra.mxu0 0.0
        %1790 = vmatprep.subr.mxu0 0.0
        %1791 = vmatpush1.msra.mxu0 0.0
        %1792 = vmatprep.subr.mxu0 0.0
        %1793 = vmatpush1.msra.mxu0 0.0
        %1794 = vmatprep.subr.mxu0 0.0
        %1795 = vmatpush1.msra.mxu0 0.0
        %1796 = vmatprep.subr.mxu0 0.0
        %1797 = vmatpush1.msra.mxu0 0.0
        %1798 = vmatprep.subr.mxu0 0.0
        %1799 = vmatpush1.msra.mxu0 0.0
        %1800 = vmatprep.subr.mxu0 0.0
        %1801 = vmatpush1.msra.mxu0 0.0
        %1802 = vmatprep.subr.mxu0 0.0
        %1803 = vmatpush1.msra.mxu0 0.0
        %1804 = vmatprep.subr.mxu0 0.0
        %1805 = vmatpush1.msra.mxu0 0.0
        %1806 = vmatprep.subr.mxu0 0.0
        %1807 = vmatpush1.msra.mxu0 0.0
        %1808 = vmatprep.subr.mxu0 0.0
        %1809 = vmatpush1.msra.mxu0 0.0
        %1810 = vmatprep.subr.mxu0 0.0
        %1811 = vmatpush1.msra.mxu0 0.0
        %1812 = vmatprep.subr.mxu0 0.0
        %1813 = vmatpush1.msra.mxu0 0.0
        %1814 = vmatprep.subr.mxu0 0.0
        %1815 = vmatpush1.msra.mxu0 0.0
        %1816 = vmatprep.subr.mxu0 0.0
        %1817 = vmatpush1.msra.mxu0 0.0
        %1818 = vmatprep.subr.mxu0 0.0
        %1819 = vmatpush1.msra.mxu0 0.0
        %1820 = vmatprep.subr.mxu0 0.0
        %1821 = vmatpush1.msra.mxu0 0.0
        %1822 = vmatprep.mubr.f32.mxu0 0.0
        %1823 = vmatmul.mubr.f32.gmra.mrb[0].mxu0 %v1614
        %v1824 = vpop.f32.mrb[0].mxu0
        %v1825 = vadd.f32 %v1611, %v1824
        %v1826 = vpop.f32.mrb[0].mxu0
        %v1827 = vadd.f32 %v1611, %v1826
        %1828 = vdwg.mxu0
        %1829 = vmatprep.subr.mxu0 %v1432
        %1830 = vmatpush1.msra.mxu0 %v1431
        %1831 = vmatprep.subr.mxu0 %v1251
        %1832 = vmatpush1.msra.mxu0 %v1250
        %1833 = vmatprep.subr.mxu0 %v1597
        %1834 = vmatpush1.msra.mxu0 %v1596
        %1835 = vmatprep.subr.mxu0 0.0
        %1836 = vmatpush1.msra.mxu0 0.0
        %1837 = vmatprep.subr.mxu0 0.0
        %1838 = vmatpush1.msra.mxu0 0.0
        %1839 = vmatprep.subr.mxu0 0.0
        %1840 = vmatpush1.msra.mxu0 0.0
        %1841 = vmatprep.subr.mxu0 0.0
        %1842 = vmatpush1.msra.mxu0 0.0
        %1843 = vmatprep.subr.mxu0 0.0
        %1844 = vmatpush1.msra.mxu0 0.0
        %1845 = vmatprep.subr.mxu0 0.0
        %1846 = vmatpush1.msra.mxu0 0.0
        %1847 = vmatprep.subr.mxu0 0.0
        %1848 = vmatpush1.msra.mxu0 0.0
        %1849 = vmatprep.subr.mxu0 0.0
        %1850 = vmatpush1.msra.mxu0 0.0
        %1851 = vmatprep.subr.mxu0 0.0
        %1852 = vmatpush1.msra.mxu0 0.0
        %1853 = vmatprep.subr.mxu0 0.0
        %1854 = vmatpush1.msra.mxu0 0.0
        %1855 = vmatprep.subr.mxu0 0.0
        %1856 = vmatpush1.msra.mxu0 0.0
        %1857 = vmatprep.subr.mxu0 0.0
        %1858 = vmatpush1.msra.mxu0 0.0
        %1859 = vmatprep.subr.mxu0 0.0
        %1860 = vmatpush1.msra.mxu0 0.0
        %1861 = vmatprep.subr.mxu0 0.0
        %1862 = vmatpush1.msra.mxu0 0.0
        %1863 = vmatprep.subr.mxu0 0.0
        %1864 = vmatpush1.msra.mxu0 0.0
        %1865 = vmatprep.subr.mxu0 0.0
        %1866 = vmatpush1.msra.mxu0 0.0
        %1867 = vmatprep.subr.mxu0 0.0
        %1868 = vmatpush1.msra.mxu0 0.0
        %1869 = vmatprep.subr.mxu0 0.0
        %1870 = vmatpush1.msra.mxu0 0.0
        %1871 = vmatprep.subr.mxu0 0.0
        %1872 = vmatpush1.msra.mxu0 0.0
        %1873 = vmatprep.subr.mxu0 0.0
        %1874 = vmatpush1.msra.mxu0 0.0
        %1875 = vmatprep.subr.mxu0 0.0
        %1876 = vmatpush1.msra.mxu0 0.0
        %1877 = vmatprep.subr.mxu0 0.0
        %1878 = vmatpush1.msra.mxu0 0.0
        %1879 = vmatprep.subr.mxu0 0.0
        %1880 = vmatpush1.msra.mxu0 0.0
        %1881 = vmatprep.subr.mxu0 0.0
        %1882 = vmatpush1.msra.mxu0 0.0
        %1883 = vmatprep.subr.mxu0 0.0
        %1884 = vmatpush1.msra.mxu0 0.0
        %1885 = vmatprep.subr.mxu0 0.0
        %1886 = vmatpush1.msra.mxu0 0.0
        %1887 = vmatprep.subr.mxu0 0.0
        %1888 = vmatpush1.msra.mxu0 0.0
        %1889 = vmatprep.subr.mxu0 0.0
        %1890 = vmatpush1.msra.mxu0 0.0
        %1891 = vmatprep.subr.mxu0 0.0
        %1892 = vmatpush1.msra.mxu0 0.0
        %1893 = vmatprep.mubr.f32.mxu0 0.0
        %1894 = vmatmul.mubr.f32.gmra.mrb[0].mxu0 %v1614
        %v1895 = vpop.f32.mrb[0].mxu0
        %v1896 = vadd.f32 %v1611, %v1895
        %v1897 = vpop.f32.mrb[0].mxu0
        %v1898 = vadd.f32 %v1611, %v1897
        %1899 = vdwg.mxu0
        %1900 = vmatprep.subr.mxu0 %v1434
        %1901 = vmatpush1.msra.mxu0 %v1433
        %1902 = vmatprep.subr.mxu0 %v1253
        %1903 = vmatpush1.msra.mxu0 %v1252
        %1904 = vmatprep.subr.mxu0 %v1599
        %1905 = vmatpush1.msra.mxu0 %v1598
        %1906 = vmatprep.subr.mxu0 0.0
        %1907 = vmatpush1.msra.mxu0 0.0
        %1908 = vmatprep.subr.mxu0 0.0
        %1909 = vmatpush1.msra.mxu0 0.0
        %1910 = vmatprep.subr.mxu0 0.0
        %1911 = vmatpush1.msra.mxu0 0.0
        %1912 = vmatprep.subr.mxu0 0.0
        %1913 = vmatpush1.msra.mxu0 0.0
        %1914 = vmatprep.subr.mxu0 0.0
        %1915 = vmatpush1.msra.mxu0 0.0
        %1916 = vmatprep.subr.mxu0 0.0
        %1917 = vmatpush1.msra.mxu0 0.0
        %1918 = vmatprep.subr.mxu0 0.0
        %1919 = vmatpush1.msra.mxu0 0.0
        %1920 = vmatprep.subr.mxu0 0.0
        %1921 = vmatpush1.msra.mxu0 0.0
        %1922 = vmatprep.subr.mxu0 0.0
        %1923 = vmatpush1.msra.mxu0 0.0
        %1924 = vmatprep.subr.mxu0 0.0
        %1925 = vmatpush1.msra.mxu0 0.0
        %1926 = vmatprep.subr.mxu0 0.0
        %1927 = vmatpush1.msra.mxu0 0.0
        %1928 = vmatprep.subr.mxu0 0.0
        %1929 = vmatpush1.msra.mxu0 0.0
        %1930 = vmatprep.subr.mxu0 0.0
        %1931 = vmatpush1.msra.mxu0 0.0
        %1932 = vmatprep.subr.mxu0 0.0
        %1933 = vmatpush1.msra.mxu0 0.0
        %1934 = vmatprep.subr.mxu0 0.0
        %1935 = vmatpush1.msra.mxu0 0.0
        %1936 = vmatprep.subr.mxu0 0.0
        %1937 = vmatpush1.msra.mxu0 0.0
        %1938 = vmatprep.subr.mxu0 0.0
        %1939 = vmatpush1.msra.mxu0 0.0
        %1940 = vmatprep.subr.mxu0 0.0
        %1941 = vmatpush1.msra.mxu0 0.0
        %1942 = vmatprep.subr.mxu0 0.0
        %1943 = vmatpush1.msra.mxu0 0.0
        %1944 = vmatprep.subr.mxu0 0.0
        %1945 = vmatpush1.msra.mxu0 0.0
        %1946 = vmatprep.subr.mxu0 0.0
        %1947 = vmatpush1.msra.mxu0 0.0
        %1948 = vmatprep.subr.mxu0 0.0
        %1949 = vmatpush1.msra.mxu0 0.0
        %1950 = vmatprep.subr.mxu0 0.0
        %1951 = vmatpush1.msra.mxu0 0.0
        %1952 = vmatprep.subr.mxu0 0.0
        %1953 = vmatpush1.msra.mxu0 0.0
        %1954 = vmatprep.subr.mxu0 0.0
        %1955 = vmatpush1.msra.mxu0 0.0
        %1956 = vmatprep.subr.mxu0 0.0
        %1957 = vmatpush1.msra.mxu0 0.0
        %1958 = vmatprep.subr.mxu0 0.0
        %1959 = vmatpush1.msra.mxu0 0.0
        %1960 = vmatprep.subr.mxu0 0.0
        %1961 = vmatpush1.msra.mxu0 0.0
        %1962 = vmatprep.subr.mxu0 0.0
        %1963 = vmatpush1.msra.mxu0 0.0
        %1964 = vmatprep.mubr.f32.mxu0 0.0
        %1965 = vmatmul.mubr.f32.gmra.mrb[0].mxu0 %v1614
        %v1966 = vpop.f32.mrb[0].mxu0
        %v1967 = vadd.f32 %v1611, %v1966
        %v1968 = vpop.f32.mrb[0].mxu0
        %v1969 = vadd.f32 %v1611, %v1968
        %1970 = vdwg.mxu0
        %1971 = vmatprep.subr.mxu0 %v1436
        %1972 = vmatpush1.msra.mxu0 %v1435
        %1973 = vmatprep.subr.mxu0 %v1255
        %1974 = vmatpush1.msra.mxu0 %v1254
        %1975 = vmatprep.subr.mxu0 %v1601
        %1976 = vmatpush1.msra.mxu0 %v1600
        %1977 = vmatprep.subr.mxu0 0.0
        %1978 = vmatpush1.msra.mxu0 0.0
        %1979 = vmatprep.subr.mxu0 0.0
        %1980 = vmatpush1.msra.mxu0 0.0
        %1981 = vmatprep.subr.mxu0 0.0
        %1982 = vmatpush1.msra.mxu0 0.0
        %1983 = vmatprep.subr.mxu0 0.0
        %1984 = vmatpush1.msra.mxu0 0.0
        %1985 = vmatprep.subr.mxu0 0.0
        %1986 = vmatpush1.msra.mxu0 0.0
        %1987 = vmatprep.subr.mxu0 0.0
        %1988 = vmatpush1.msra.mxu0 0.0
        %1989 = vmatprep.subr.mxu0 0.0
        %1990 = vmatpush1.msra.mxu0 0.0
        %1991 = vmatprep.subr.mxu0 0.0
        %1992 = vmatpush1.msra.mxu0 0.0
        %1993 = vmatprep.subr.mxu0 0.0
        %1994 = vmatpush1.msra.mxu0 0.0
        %1995 = vmatprep.subr.mxu0 0.0
        %1996 = vmatpush1.msra.mxu0 0.0
        %1997 = vmatprep.subr.mxu0 0.0
        %1998 = vmatpush1.msra.mxu0 0.0
        %1999 = vmatprep.subr.mxu0 0.0
        %2000 = vmatpush1.msra.mxu0 0.0
        %2001 = vmatprep.subr.mxu0 0.0
        %2002 = vmatpush1.msra.mxu0 0.0
        %2003 = vmatprep.subr.mxu0 0.0
        %2004 = vmatpush1.msra.mxu0 0.0
        %2005 = vmatprep.subr.mxu0 0.0
        %2006 = vmatpush1.msra.mxu0 0.0
        %2007 = vmatprep.subr.mxu0 0.0
        %2008 = vmatpush1.msra.mxu0 0.0
        %2009 = vmatprep.subr.mxu0 0.0
        %2010 = vmatpush1.msra.mxu0 0.0
        %2011 = vmatprep.subr.mxu0 0.0
        %2012 = vmatpush1.msra.mxu0 0.0
        %2013 = vmatprep.subr.mxu0 0.0
        %2014 = vmatpush1.msra.mxu0 0.0
        %2015 = vmatprep.subr.mxu0 0.0
        %2016 = vmatpush1.msra.mxu0 0.0
        %2017 = vmatprep.subr.mxu0 0.0
        %2018 = vmatpush1.msra.mxu0 0.0
        %2019 = vmatprep.subr.mxu0 0.0
        %2020 = vmatpush1.msra.mxu0 0.0
        %2021 = vmatprep.subr.mxu0 0.0
        %2022 = vmatpush1.msra.mxu0 0.0
        %2023 = vmatprep.subr.mxu0 0.0
        %2024 = vmatpush1.msra.mxu0 0.0
        %2025 = vmatprep.subr.mxu0 0.0
        %2026 = vmatpush1.msra.mxu0 0.0
        %2027 = vmatprep.subr.mxu0 0.0
        %2028 = vmatpush1.msra.mxu0 0.0
        %2029 = vmatprep.subr.mxu0 0.0
        %2030 = vmatpush1.msra.mxu0 0.0
        %2031 = vmatprep.subr.mxu0 0.0
        %2032 = vmatpush1.msra.mxu0 0.0
        %2033 = vmatprep.subr.mxu0 0.0
        %2034 = vmatpush1.msra.mxu0 0.0
        %2035 = vmatprep.mubr.f32.mxu0 0.0
        %2036 = vmatmul.mubr.f32.gmra.mrb[0].mxu0 %v1614
        %v2037 = vpop.f32.mrb[0].mxu0
        %v2038 = vadd.f32 %v1611, %v2037
        %v2039 = vpop.f32.mrb[0].mxu0
        %v2040 = vadd.f32 %v1611, %v2039
        %2041 = vdwg.mxu0
        %2042 = vmatprep.subr.mxu0 %v1438
        %2043 = vmatpush1.msra.mxu0 %v1437
        %2044 = vmatprep.subr.mxu0 %v1257
        %2045 = vmatpush1.msra.mxu0 %v1256
        %2046 = vmatprep.subr.mxu0 %v1603
        %2047 = vmatpush1.msra.mxu0 %v1602
        %2048 = vmatprep.subr.mxu0 0.0
        %2049 = vmatpush1.msra.mxu0 0.0
        %2050 = vmatprep.subr.mxu0 0.0
        %2051 = vmatpush1.msra.mxu0 0.0
        %2052 = vmatprep.subr.mxu0 0.0
        %2053 = vmatpush1.msra.mxu0 0.0
        %2054 = vmatprep.subr.mxu0 0.0
        %2055 = vmatpush1.msra.mxu0 0.0
        %2056 = vmatprep.subr.mxu0 0.0
        %2057 = vmatpush1.msra.mxu0 0.0
        %2058 = vmatprep.subr.mxu0 0.0
        %2059 = vmatpush1.msra.mxu0 0.0
        %2060 = vmatprep.subr.mxu0 0.0
        %2061 = vmatpush1.msra.mxu0 0.0
        %2062 = vmatprep.subr.mxu0 0.0
        %2063 = vmatpush1.msra.mxu0 0.0
        %2064 = vmatprep.subr.mxu0 0.0
        %2065 = vmatpush1.msra.mxu0 0.0
        %2066 = vmatprep.subr.mxu0 0.0
        %2067 = vmatpush1.msra.mxu0 0.0
        %2068 = vmatprep.subr.mxu0 0.0
        %2069 = vmatpush1.msra.mxu0 0.0
        %2070 = vmatprep.subr.mxu0 0.0
        %2071 = vmatpush1.msra.mxu0 0.0
        %2072 = vmatprep.subr.mxu0 0.0
        %2073 = vmatpush1.msra.mxu0 0.0
        %2074 = vmatprep.subr.mxu0 0.0
        %2075 = vmatpush1.msra.mxu0 0.0
        %2076 = vmatprep.subr.mxu0 0.0
        %2077 = vmatpush1.msra.mxu0 0.0
        %2078 = vmatprep.subr.mxu0 0.0
        %2079 = vmatpush1.msra.mxu0 0.0
        %2080 = vmatprep.subr.mxu0 0.0
        %2081 = vmatpush1.msra.mxu0 0.0
        %2082 = vmatprep.subr.mxu0 0.0
        %2083 = vmatpush1.msra.mxu0 0.0
        %2084 = vmatprep.subr.mxu0 0.0
        %2085 = vmatpush1.msra.mxu0 0.0
        %2086 = vmatprep.subr.mxu0 0.0
        %2087 = vmatpush1.msra.mxu0 0.0
        %2088 = vmatprep.subr.mxu0 0.0
        %2089 = vmatpush1.msra.mxu0 0.0
        %2090 = vmatprep.subr.mxu0 0.0
        %2091 = vmatpush1.msra.mxu0 0.0
        %2092 = vmatprep.subr.mxu0 0.0
        %2093 = vmatpush1.msra.mxu0 0.0
        %2094 = vmatprep.subr.mxu0 0.0
        %2095 = vmatpush1.msra.mxu0 0.0
        %2096 = vmatprep.subr.mxu0 0.0
        %2097 = vmatpush1.msra.mxu0 0.0
        %2098 = vmatprep.subr.mxu0 0.0
        %2099 = vmatpush1.msra.mxu0 0.0
        %2100 = vmatprep.subr.mxu0 0.0
        %2101 = vmatpush1.msra.mxu0 0.0
        %2102 = vmatprep.subr.mxu0 0.0
        %2103 = vmatpush1.msra.mxu0 0.0
        %2104 = vmatprep.subr.mxu0 0.0
        %2105 = vmatpush1.msra.mxu0 0.0
        %2106 = vmatprep.mubr.f32.mxu0 0.0
        %2107 = vmatmul.mubr.f32.gmra.mrb[0].mxu0 %v1614
        %v2108 = vpop.f32.mrb[0].mxu0
        %v2109 = vadd.f32 %v1611, %v2108
        %v2110 = vpop.f32.mrb[0].mxu0
        %v2111 = vadd.f32 %v1611, %v2110
        %2112 = vdwg.mxu0
        %2113 = vmatprep.subr.mxu0 %v1440
        %2114 = vmatpush1.msra.mxu0 %v1439
        %2115 = vmatprep.subr.mxu0 %v1259
        %2116 = vmatpush1.msra.mxu0 %v1258
        %2117 = vmatprep.subr.mxu0 %v1605
        %2118 = vmatpush1.msra.mxu0 %v1604
        %2119 = vmatprep.subr.mxu0 0.0
        %2120 = vmatpush1.msra.mxu0 0.0
        %2121 = vmatprep.subr.mxu0 0.0
        %2122 = vmatpush1.msra.mxu0 0.0
        %2123 = vmatprep.subr.mxu0 0.0
        %2124 = vmatpush1.msra.mxu0 0.0
        %2125 = vmatprep.subr.mxu0 0.0
        %2126 = vmatpush1.msra.mxu0 0.0
        %2127 = vmatprep.subr.mxu0 0.0
        %2128 = vmatpush1.msra.mxu0 0.0
        %2129 = vmatprep.subr.mxu0 0.0
        %2130 = vmatpush1.msra.mxu0 0.0
        %2131 = vmatprep.subr.mxu0 0.0
        %2132 = vmatpush1.msra.mxu0 0.0
        %2133 = vmatprep.subr.mxu0 0.0
        %2134 = vmatpush1.msra.mxu0 0.0
        %2135 = vmatprep.subr.mxu0 0.0
        %2136 = vmatpush1.msra.mxu0 0.0
        %2137 = vmatprep.subr.mxu0 0.0
        %2138 = vmatpush1.msra.mxu0 0.0
        %2139 = vmatprep.subr.mxu0 0.0
        %2140 = vmatpush1.msra.mxu0 0.0
        %2141 = vmatprep.subr.mxu0 0.0
        %2142 = vmatpush1.msra.mxu0 0.0
        %2143 = vmatprep.subr.mxu0 0.0
        %2144 = vmatpush1.msra.mxu0 0.0
        %2145 = vmatprep.subr.mxu0 0.0
        %2146 = vmatpush1.msra.mxu0 0.0
        %2147 = vmatprep.subr.mxu0 0.0
        %2148 = vmatpush1.msra.mxu0 0.0
        %2149 = vmatprep.subr.mxu0 0.0
        %2150 = vmatpush1.msra.mxu0 0.0
        %2151 = vmatprep.subr.mxu0 0.0
        %2152 = vmatpush1.msra.mxu0 0.0
        %2153 = vmatprep.subr.mxu0 0.0
        %2154 = vmatpush1.msra.mxu0 0.0
        %2155 = vmatprep.subr.mxu0 0.0
        %2156 = vmatpush1.msra.mxu0 0.0
        %2157 = vmatprep.subr.mxu0 0.0
        %2158 = vmatpush1.msra.mxu0 0.0
        %2159 = vmatprep.subr.mxu0 0.0
        %2160 = vmatpush1.msra.mxu0 0.0
        %2161 = vmatprep.subr.mxu0 0.0
        %2162 = vmatpush1.msra.mxu0 0.0
        %2163 = vmatprep.subr.mxu0 0.0
        %2164 = vmatpush1.msra.mxu0 0.0
        %2165 = vmatprep.subr.mxu0 0.0
        %2166 = vmatpush1.msra.mxu0 0.0
        %2167 = vmatprep.subr.mxu0 0.0
        %2168 = vmatpush1.msra.mxu0 0.0
        %2169 = vmatprep.subr.mxu0 0.0
        %2170 = vmatpush1.msra.mxu0 0.0
        %2171 = vmatprep.subr.mxu0 0.0
        %2172 = vmatpush1.msra.mxu0 0.0
        %2173 = vmatprep.subr.mxu0 0.0
        %2174 = vmatpush1.msra.mxu0 0.0
        %2175 = vmatprep.subr.mxu0 0.0
        %2176 = vmatpush1.msra.mxu0 0.0
        %2177 = vmatprep.mubr.f32.mxu0 0.0
        %2178 = vmatmul.mubr.f32.gmra.mrb[0].mxu0 %v1614
        %v2179 = vpop.f32.mrb[0].mxu0
        %v2180 = vadd.f32 %v1611, %v2179
        %v2181 = vpop.f32.mrb[0].mxu0
        %v2182 = vadd.f32 %v1611, %v2181
        %2183 = vdwg.mxu0
        %v2184 = vld [vmem:[#allocation13] sm:$0xff]
        %2186 = vset.pattern.permute.xlu0 0
        %2187 = vperm.xlu0 %2186, %v2184
        %v2188 = vpop.permute.xlu0 %2187
        %v2190 = vmul.f32 %v1683, %v2188
        %v2191 = vmul.f32 %v1685, %v2188
        %v2192 = vmul.f32 %v1754, %v2188
        %v2193 = vmul.f32 %v1756, %v2188
        %v2194 = vmul.f32 %v1825, %v2188
        %v2195 = vmul.f32 %v1827, %v2188
        %v2196 = vmul.f32 %v1896, %v2188
        %v2197 = vmul.f32 %v1898, %v2188
        %v2198 = vmul.f32 %v1967, %v2188
        %v2199 = vmul.f32 %v1969, %v2188
        %v2200 = vmul.f32 %v2038, %v2188
        %v2201 = vmul.f32 %v2040, %v2188
        %v2202 = vmul.f32 %v2109, %v2188
        %v2203 = vmul.f32 %v2111, %v2188
        %v2204 = vmul.f32 %v2180, %v2188
        %v2205 = vmul.f32 %v2182, %v2188
        %v2206 = vld [vmem:[#allocation14] sm:$0xff]
        %2208 = vset.pattern.permute.xlu0 0
        %2209 = vperm.xlu0 %2208, %v2206
        %v2210 = vpop.permute.xlu0 %2209
        %v2212 = vadd.f32 %v2190, %v2210
        %v2213 = vadd.f32 %v2191, %v2210
        %v2214 = vadd.f32 %v2192, %v2210
        %v2215 = vadd.f32 %v2193, %v2210
        %v2216 = vadd.f32 %v2194, %v2210
        %v2217 = vadd.f32 %v2195, %v2210
        %v2218 = vadd.f32 %v2196, %v2210
        %v2219 = vadd.f32 %v2197, %v2210
        %v2220 = vadd.f32 %v2198, %v2210
        %v2221 = vadd.f32 %v2199, %v2210
        %v2222 = vadd.f32 %v2200, %v2210
        %v2223 = vadd.f32 %v2201, %v2210
        %v2224 = vadd.f32 %v2202, %v2210
        %v2225 = vadd.f32 %v2203, %v2210
        %v2226 = vadd.f32 %v2204, %v2210
        %v2227 = vadd.f32 %v2205, %v2210
        %v2228 = vmax.f32 %v2212, 0.0
        %v2229 = vmax.f32 %v2213, 0.0
        %v2230 = vmax.f32 %v2214, 0.0
        %v2231 = vmax.f32 %v2215, 0.0
        %v2232 = vmax.f32 %v2216, 0.0
        %v2233 = vmax.f32 %v2217, 0.0
        %v2234 = vmax.f32 %v2218, 0.0
        %v2235 = vmax.f32 %v2219, 0.0
        %v2236 = vmax.f32 %v2220, 0.0
        %v2237 = vmax.f32 %v2221, 0.0
        %v2238 = vmax.f32 %v2222, 0.0
        %v2239 = vmax.f32 %v2223, 0.0
        %v2240 = vmax.f32 %v2224, 0.0
        %v2241 = vmax.f32 %v2225, 0.0
        %v2242 = vmax.f32 %v2226, 0.0
        %v2243 = vmax.f32 %v2227, 0.0
        %v2244 = vld [vmem:[#allocation16] sm:$0xff]
        %v2245 = vld [vmem:[#allocation17] sm:$0xff]
        %2247 = vset.pattern.permute.xlu0 0
        %2248 = vperm.xlu0 %2247, %v2245
        %v2249 = vpop.permute.xlu0 %2248
        %v2252 = vsel %vm672, %v2244, 0
        %2254 = vmatprep.subr.mxu0 0.0
        %2255 = vmatpush1.msra.mxu0 0.0
        %2256 = vmatprep.subr.mxu0 %v2229
        %2257 = vmatpush1.msra.mxu0 %v2228
        %2258 = vmatprep.subr.mxu0 %v2231
        %2259 = vmatpush1.msra.mxu0 %v2230
        %2260 = vmatprep.subr.mxu0 0.0
        %2261 = vmatpush1.msra.mxu0 0.0
        %2262 = vmatprep.subr.mxu0 0.0
        %2263 = vmatpush1.msra.mxu0 0.0
        %2264 = vmatprep.subr.mxu0 0.0
        %2265 = vmatpush1.msra.mxu0 0.0
        %2266 = vmatprep.subr.mxu0 0.0
        %2267 = vmatpush1.msra.mxu0 0.0
        %2268 = vmatprep.subr.mxu0 0.0
        %2269 = vmatpush1.msra.mxu0 0.0
        %2270 = vmatprep.subr.mxu0 0.0
        %2271 = vmatpush1.msra.mxu0 0.0
        %2272 = vmatprep.subr.mxu0 0.0
        %2273 = vmatpush1.msra.mxu0 0.0
        %2274 = vmatprep.subr.mxu0 0.0
        %2275 = vmatpush1.msra.mxu0 0.0
        %2276 = vmatprep.subr.mxu0 0.0
        %2277 = vmatpush1.msra.mxu0 0.0
        %2278 = vmatprep.subr.mxu0 0.0
        %2279 = vmatpush1.msra.mxu0 0.0
        %2280 = vmatprep.subr.mxu0 0.0
        %2281 = vmatpush1.msra.mxu0 0.0
        %2282 = vmatprep.subr.mxu0 0.0
        %2283 = vmatpush1.msra.mxu0 0.0
        %2284 = vmatprep.subr.mxu0 0.0
        %2285 = vmatpush1.msra.mxu0 0.0
        %2286 = vmatprep.subr.mxu0 0.0
        %2287 = vmatpush1.msra.mxu0 0.0
        %2288 = vmatprep.subr.mxu0 0.0
        %2289 = vmatpush1.msra.mxu0 0.0
        %2290 = vmatprep.subr.mxu0 0.0
        %2291 = vmatpush1.msra.mxu0 0.0
        %2292 = vmatprep.subr.mxu0 0.0
        %2293 = vmatpush1.msra.mxu0 0.0
        %2294 = vmatprep.subr.mxu0 0.0
        %2295 = vmatpush1.msra.mxu0 0.0
        %2296 = vmatprep.subr.mxu0 0.0
        %2297 = vmatpush1.msra.mxu0 0.0
        %2298 = vmatprep.subr.mxu0 0.0
        %2299 = vmatpush1.msra.mxu0 0.0
        %2300 = vmatprep.subr.mxu0 0.0
        %2301 = vmatpush1.msra.mxu0 0.0
        %2302 = vmatprep.subr.mxu0 0.0
        %2303 = vmatpush1.msra.mxu0 0.0
        %2304 = vmatprep.subr.mxu0 0.0
        %2305 = vmatpush1.msra.mxu0 0.0
        %2306 = vmatprep.subr.mxu0 0.0
        %2307 = vmatpush1.msra.mxu0 0.0
        %2308 = vmatprep.subr.mxu0 0.0
        %2309 = vmatpush1.msra.mxu0 0.0
        %2310 = vmatprep.subr.mxu0 0.0
        %2311 = vmatpush1.msra.mxu0 0.0
        %2312 = vmatprep.subr.mxu0 0.0
        %2313 = vmatpush1.msra.mxu0 0.0
        %2314 = vmatprep.subr.mxu0 0.0
        %2315 = vmatpush1.msra.mxu0 0.0
        %2316 = vmatprep.subr.mxu0 0.0
        %2317 = vmatpush1.msra.mxu0 0.0
        %2318 = vmatprep.mubr.f32.mxu0 0.0
        %2319 = vmatmul.mubr.f32.gmra.mrb[0].mxu0 %v2252
        %v2320 = vpop.f32.mrb[0].mxu0
        %v2321 = vadd.f32 %v2249, %v2320
        %v2322 = vpop.f32.mrb[0].mxu0
        %v2323 = vadd.f32 %v2249, %v2322
        %2324 = vdwg.mxu0
        %2325 = vmatprep.subr.mxu0 %v2229
        %2326 = vmatpush1.msra.mxu0 %v2228
        %2327 = vmatprep.subr.mxu0 %v2231
        %2328 = vmatpush1.msra.mxu0 %v2230
        %2329 = vmatprep.subr.mxu0 %v2233
        %2330 = vmatpush1.msra.mxu0 %v2232
        %2331 = vmatprep.subr.mxu0 0.0
        %2332 = vmatpush1.msra.mxu0 0.0
        %2333 = vmatprep.subr.mxu0 0.0
        %2334 = vmatpush1.msra.mxu0 0.0
        %2335 = vmatprep.subr.mxu0 0.0
        %2336 = vmatpush1.msra.mxu0 0.0
        %2337 = vmatprep.subr.mxu0 0.0
        %2338 = vmatpush1.msra.mxu0 0.0
        %2339 = vmatprep.subr.mxu0 0.0
        %2340 = vmatpush1.msra.mxu0 0.0
        %2341 = vmatprep.subr.mxu0 0.0
        %2342 = vmatpush1.msra.mxu0 0.0
        %2343 = vmatprep.subr.mxu0 0.0
        %2344 = vmatpush1.msra.mxu0 0.0
        %2345 = vmatprep.subr.mxu0 0.0
        %2346 = vmatpush1.msra.mxu0 0.0
        %2347 = vmatprep.subr.mxu0 0.0
        %2348 = vmatpush1.msra.mxu0 0.0
        %2349 = vmatprep.subr.mxu0 0.0
        %2350 = vmatpush1.msra.mxu0 0.0
        %2351 = vmatprep.subr.mxu0 0.0
        %2352 = vmatpush1.msra.mxu0 0.0
        %2353 = vmatprep.subr.mxu0 0.0
        %2354 = vmatpush1.msra.mxu0 0.0
        %2355 = vmatprep.subr.mxu0 0.0
        %2356 = vmatpush1.msra.mxu0 0.0
        %2357 = vmatprep.subr.mxu0 0.0
        %2358 = vmatpush1.msra.mxu0 0.0
        %2359 = vmatprep.subr.mxu0 0.0
        %2360 = vmatpush1.msra.mxu0 0.0
        %2361 = vmatprep.subr.mxu0 0.0
        %2362 = vmatpush1.msra.mxu0 0.0
        %2363 = vmatprep.subr.mxu0 0.0
        %2364 = vmatpush1.msra.mxu0 0.0
        %2365 = vmatprep.subr.mxu0 0.0
        %2366 = vmatpush1.msra.mxu0 0.0
        %2367 = vmatprep.subr.mxu0 0.0
        %2368 = vmatpush1.msra.mxu0 0.0
        %2369 = vmatprep.subr.mxu0 0.0
        %2370 = vmatpush1.msra.mxu0 0.0
        %2371 = vmatprep.subr.mxu0 0.0
        %2372 = vmatpush1.msra.mxu0 0.0
        %2373 = vmatprep.subr.mxu0 0.0
        %2374 = vmatpush1.msra.mxu0 0.0
        %2375 = vmatprep.subr.mxu0 0.0
        %2376 = vmatpush1.msra.mxu0 0.0
        %2377 = vmatprep.subr.mxu0 0.0
        %2378 = vmatpush1.msra.mxu0 0.0
        %2379 = vmatprep.subr.mxu0 0.0
        %2380 = vmatpush1.msra.mxu0 0.0
        %2381 = vmatprep.subr.mxu0 0.0
        %2382 = vmatpush1.msra.mxu0 0.0
        %2383 = vmatprep.subr.mxu0 0.0
        %2384 = vmatpush1.msra.mxu0 0.0
        %2385 = vmatprep.subr.mxu0 0.0
        %2386 = vmatpush1.msra.mxu0 0.0
        %2387 = vmatprep.subr.mxu0 0.0
        %2388 = vmatpush1.msra.mxu0 0.0
        %2389 = vmatprep.mubr.f32.mxu0 0.0
        %2390 = vmatmul.mubr.f32.gmra.mrb[0].mxu0 %v2252
        %v2391 = vpop.f32.mrb[0].mxu0
        %v2392 = vadd.f32 %v2249, %v2391
        %v2393 = vpop.f32.mrb[0].mxu0
        %v2394 = vadd.f32 %v2249, %v2393
        %2395 = vdwg.mxu0
        %2396 = vmatprep.subr.mxu0 %v2231
        %2397 = vmatpush1.msra.mxu0 %v2230
        %2398 = vmatprep.subr.mxu0 %v2233
        %2399 = vmatpush1.msra.mxu0 %v2232
        %2400 = vmatprep.subr.mxu0 %v2235
        %2401 = vmatpush1.msra.mxu0 %v2234
        %2402 = vmatprep.subr.mxu0 0.0
        %2403 = vmatpush1.msra.mxu0 0.0
        %2404 = vmatprep.subr.mxu0 0.0
        %2405 = vmatpush1.msra.mxu0 0.0
        %2406 = vmatprep.subr.mxu0 0.0
        %2407 = vmatpush1.msra.mxu0 0.0
        %2408 = vmatprep.subr.mxu0 0.0
        %2409 = vmatpush1.msra.mxu0 0.0
        %2410 = vmatprep.subr.mxu0 0.0
        %2411 = vmatpush1.msra.mxu0 0.0
        %2412 = vmatprep.subr.mxu0 0.0
        %2413 = vmatpush1.msra.mxu0 0.0
        %2414 = vmatprep.subr.mxu0 0.0
        %2415 = vmatpush1.msra.mxu0 0.0
        %2416 = vmatprep.subr.mxu0 0.0
        %2417 = vmatpush1.msra.mxu0 0.0
        %2418 = vmatprep.subr.mxu0 0.0
        %2419 = vmatpush1.msra.mxu0 0.0
        %2420 = vmatprep.subr.mxu0 0.0
        %2421 = vmatpush1.msra.mxu0 0.0
        %2422 = vmatprep.subr.mxu0 0.0
        %2423 = vmatpush1.msra.mxu0 0.0
        %2424 = vmatprep.subr.mxu0 0.0
        %2425 = vmatpush1.msra.mxu0 0.0
        %2426 = vmatprep.subr.mxu0 0.0
        %2427 = vmatpush1.msra.mxu0 0.0
        %2428 = vmatprep.subr.mxu0 0.0
        %2429 = vmatpush1.msra.mxu0 0.0
        %2430 = vmatprep.subr.mxu0 0.0
        %2431 = vmatpush1.msra.mxu0 0.0
        %2432 = vmatprep.subr.mxu0 0.0
        %2433 = vmatpush1.msra.mxu0 0.0
        %2434 = vmatprep.subr.mxu0 0.0
        %2435 = vmatpush1.msra.mxu0 0.0
        %2436 = vmatprep.subr.mxu0 0.0
        %2437 = vmatpush1.msra.mxu0 0.0
        %2438 = vmatprep.subr.mxu0 0.0
        %2439 = vmatpush1.msra.mxu0 0.0
        %2440 = vmatprep.subr.mxu0 0.0
        %2441 = vmatpush1.msra.mxu0 0.0
        %2442 = vmatprep.subr.mxu0 0.0
        %2443 = vmatpush1.msra.mxu0 0.0
        %2444 = vmatprep.subr.mxu0 0.0
        %2445 = vmatpush1.msra.mxu0 0.0
        %2446 = vmatprep.subr.mxu0 0.0
        %2447 = vmatpush1.msra.mxu0 0.0
        %2448 = vmatprep.subr.mxu0 0.0
        %2449 = vmatpush1.msra.mxu0 0.0
        %2450 = vmatprep.subr.mxu0 0.0
        %2451 = vmatpush1.msra.mxu0 0.0
        %2452 = vmatprep.subr.mxu0 0.0
        %2453 = vmatpush1.msra.mxu0 0.0
        %2454 = vmatprep.subr.mxu0 0.0
        %2455 = vmatpush1.msra.mxu0 0.0
        %2456 = vmatprep.subr.mxu0 0.0
        %2457 = vmatpush1.msra.mxu0 0.0
        %2458 = vmatprep.subr.mxu0 0.0
        %2459 = vmatpush1.msra.mxu0 0.0
        %2460 = vmatprep.mubr.f32.mxu0 0.0
        %2461 = vmatmul.mubr.f32.gmra.mrb[0].mxu0 %v2252
        %v2462 = vpop.f32.mrb[0].mxu0
        %v2463 = vadd.f32 %v2249, %v2462
        %v2464 = vpop.f32.mrb[0].mxu0
        %v2465 = vadd.f32 %v2249, %v2464
        %2466 = vdwg.mxu0
        %2467 = vmatprep.subr.mxu0 %v2233
        %2468 = vmatpush1.msra.mxu0 %v2232
        %2469 = vmatprep.subr.mxu0 %v2235
        %2470 = vmatpush1.msra.mxu0 %v2234
        %2471 = vmatprep.subr.mxu0 %v2237
        %2472 = vmatpush1.msra.mxu0 %v2236
        %2473 = vmatprep.subr.mxu0 0.0
        %2474 = vmatpush1.msra.mxu0 0.0
        %2475 = vmatprep.subr.mxu0 0.0
        %2476 = vmatpush1.msra.mxu0 0.0
        %2477 = vmatprep.subr.mxu0 0.0
        %2478 = vmatpush1.msra.mxu0 0.0
        %2479 = vmatprep.subr.mxu0 0.0
        %2480 = vmatpush1.msra.mxu0 0.0
        %2481 = vmatprep.subr.mxu0 0.0
        %2482 = vmatpush1.msra.mxu0 0.0
        %2483 = vmatprep.subr.mxu0 0.0
        %2484 = vmatpush1.msra.mxu0 0.0
        %2485 = vmatprep.subr.mxu0 0.0
        %2486 = vmatpush1.msra.mxu0 0.0
        %2487 = vmatprep.subr.mxu0 0.0
        %2488 = vmatpush1.msra.mxu0 0.0
        %2489 = vmatprep.subr.mxu0 0.0
        %2490 = vmatpush1.msra.mxu0 0.0
        %2491 = vmatprep.subr.mxu0 0.0
        %2492 = vmatpush1.msra.mxu0 0.0
        %2493 = vmatprep.subr.mxu0 0.0
        %2494 = vmatpush1.msra.mxu0 0.0
        %2495 = vmatprep.subr.mxu0 0.0
        %2496 = vmatpush1.msra.mxu0 0.0
        %2497 = vmatprep.subr.mxu0 0.0
        %2498 = vmatpush1.msra.mxu0 0.0
        %2499 = vmatprep.subr.mxu0 0.0
        %2500 = vmatpush1.msra.mxu0 0.0
        %2501 = vmatprep.subr.mxu0 0.0
        %2502 = vmatpush1.msra.mxu0 0.0
        %2503 = vmatprep.subr.mxu0 0.0
        %2504 = vmatpush1.msra.mxu0 0.0
        %2505 = vmatprep.subr.mxu0 0.0
        %2506 = vmatpush1.msra.mxu0 0.0
        %2507 = vmatprep.subr.mxu0 0.0
        %2508 = vmatpush1.msra.mxu0 0.0
        %2509 = vmatprep.subr.mxu0 0.0
        %2510 = vmatpush1.msra.mxu0 0.0
        %2511 = vmatprep.subr.mxu0 0.0
        %2512 = vmatpush1.msra.mxu0 0.0
        %2513 = vmatprep.subr.mxu0 0.0
        %2514 = vmatpush1.msra.mxu0 0.0
        %2515 = vmatprep.subr.mxu0 0.0
        %2516 = vmatpush1.msra.mxu0 0.0
        %2517 = vmatprep.subr.mxu0 0.0
        %2518 = vmatpush1.msra.mxu0 0.0
        %2519 = vmatprep.subr.mxu0 0.0
        %2520 = vmatpush1.msra.mxu0 0.0
        %2521 = vmatprep.subr.mxu0 0.0
        %2522 = vmatpush1.msra.mxu0 0.0
        %2523 = vmatprep.subr.mxu0 0.0
        %2524 = vmatpush1.msra.mxu0 0.0
        %2525 = vmatprep.subr.mxu0 0.0
        %2526 = vmatpush1.msra.mxu0 0.0
        %2527 = vmatprep.subr.mxu0 0.0
        %2528 = vmatpush1.msra.mxu0 0.0
        %2529 = vmatprep.subr.mxu0 0.0
        %2530 = vmatpush1.msra.mxu0 0.0
        %2531 = vmatprep.mubr.f32.mxu0 0.0
        %2532 = vmatmul.mubr.f32.gmra.mrb[0].mxu0 %v2252
        %v2533 = vpop.f32.mrb[0].mxu0
        %v2534 = vadd.f32 %v2249, %v2533
        %v2535 = vpop.f32.mrb[0].mxu0
        %v2536 = vadd.f32 %v2249, %v2535
        %2537 = vdwg.mxu0
        %2538 = vmatprep.subr.mxu0 %v2235
        %2539 = vmatpush1.msra.mxu0 %v2234
        %2540 = vmatprep.subr.mxu0 %v2237
        %2541 = vmatpush1.msra.mxu0 %v2236
        %2542 = vmatprep.subr.mxu0 %v2239
        %2543 = vmatpush1.msra.mxu0 %v2238
        %2544 = vmatprep.subr.mxu0 0.0
        %2545 = vmatpush1.msra.mxu0 0.0
        %2546 = vmatprep.subr.mxu0 0.0
        %2547 = vmatpush1.msra.mxu0 0.0
        %2548 = vmatprep.subr.mxu0 0.0
        %2549 = vmatpush1.msra.mxu0 0.0
        %2550 = vmatprep.subr.mxu0 0.0
        %2551 = vmatpush1.msra.mxu0 0.0
        %2552 = vmatprep.subr.mxu0 0.0
        %2553 = vmatpush1.msra.mxu0 0.0
        %2554 = vmatprep.subr.mxu0 0.0
        %2555 = vmatpush1.msra.mxu0 0.0
        %2556 = vmatprep.subr.mxu0 0.0
        %2557 = vmatpush1.msra.mxu0 0.0
        %2558 = vmatprep.subr.mxu0 0.0
        %2559 = vmatpush1.msra.mxu0 0.0
        %2560 = vmatprep.subr.mxu0 0.0
        %2561 = vmatpush1.msra.mxu0 0.0
        %2562 = vmatprep.subr.mxu0 0.0
        %2563 = vmatpush1.msra.mxu0 0.0
        %2564 = vmatprep.subr.mxu0 0.0
        %2565 = vmatpush1.msra.mxu0 0.0
        %2566 = vmatprep.subr.mxu0 0.0
        %2567 = vmatpush1.msra.mxu0 0.0
        %2568 = vmatprep.subr.mxu0 0.0
        %2569 = vmatpush1.msra.mxu0 0.0
        %2570 = vmatprep.subr.mxu0 0.0
        %2571 = vmatpush1.msra.mxu0 0.0
        %2572 = vmatprep.subr.mxu0 0.0
        %2573 = vmatpush1.msra.mxu0 0.0
        %2574 = vmatprep.subr.mxu0 0.0
        %2575 = vmatpush1.msra.mxu0 0.0
        %2576 = vmatprep.subr.mxu0 0.0
        %2577 = vmatpush1.msra.mxu0 0.0
        %2578 = vmatprep.subr.mxu0 0.0
        %2579 = vmatpush1.msra.mxu0 0.0
        %2580 = vmatprep.subr.mxu0 0.0
        %2581 = vmatpush1.msra.mxu0 0.0
        %2582 = vmatprep.subr.mxu0 0.0
        %2583 = vmatpush1.msra.mxu0 0.0
        %2584 = vmatprep.subr.mxu0 0.0
        %2585 = vmatpush1.msra.mxu0 0.0
        %2586 = vmatprep.subr.mxu0 0.0
        %2587 = vmatpush1.msra.mxu0 0.0
        %2588 = vmatprep.subr.mxu0 0.0
        %2589 = vmatpush1.msra.mxu0 0.0
        %2590 = vmatprep.subr.mxu0 0.0
        %2591 = vmatpush1.msra.mxu0 0.0
        %2592 = vmatprep.subr.mxu0 0.0
        %2593 = vmatpush1.msra.mxu0 0.0
        %2594 = vmatprep.subr.mxu0 0.0
        %2595 = vmatpush1.msra.mxu0 0.0
        %2596 = vmatprep.subr.mxu0 0.0
        %2597 = vmatpush1.msra.mxu0 0.0
        %2598 = vmatprep.subr.mxu0 0.0
        %2599 = vmatpush1.msra.mxu0 0.0
        %2600 = vmatprep.subr.mxu0 0.0
        %2601 = vmatpush1.msra.mxu0 0.0
        %2602 = vmatprep.mubr.f32.mxu0 0.0
        %2603 = vmatmul.mubr.f32.gmra.mrb[0].mxu0 %v2252
        %v2604 = vpop.f32.mrb[0].mxu0
        %v2605 = vadd.f32 %v2249, %v2604
        %v2606 = vpop.f32.mrb[0].mxu0
        %v2607 = vadd.f32 %v2249, %v2606
        %2608 = vdwg.mxu0
        %2609 = vmatprep.subr.mxu0 %v2237
        %2610 = vmatpush1.msra.mxu0 %v2236
        %2611 = vmatprep.subr.mxu0 %v2239
        %2612 = vmatpush1.msra.mxu0 %v2238
        %2613 = vmatprep.subr.mxu0 %v2241
        %2614 = vmatpush1.msra.mxu0 %v2240
        %2615 = vmatprep.subr.mxu0 0.0
        %2616 = vmatpush1.msra.mxu0 0.0
        %2617 = vmatprep.subr.mxu0 0.0
        %2618 = vmatpush1.msra.mxu0 0.0
        %2619 = vmatprep.subr.mxu0 0.0
        %2620 = vmatpush1.msra.mxu0 0.0
        %2621 = vmatprep.subr.mxu0 0.0
        %2622 = vmatpush1.msra.mxu0 0.0
        %2623 = vmatprep.subr.mxu0 0.0
        %2624 = vmatpush1.msra.mxu0 0.0
        %2625 = vmatprep.subr.mxu0 0.0
        %2626 = vmatpush1.msra.mxu0 0.0
        %2627 = vmatprep.subr.mxu0 0.0
        %2628 = vmatpush1.msra.mxu0 0.0
        %2629 = vmatprep.subr.mxu0 0.0
        %2630 = vmatpush1.msra.mxu0 0.0
        %2631 = vmatprep.subr.mxu0 0.0
        %2632 = vmatpush1.msra.mxu0 0.0
        %2633 = vmatprep.subr.mxu0 0.0
        %2634 = vmatpush1.msra.mxu0 0.0
        %2635 = vmatprep.subr.mxu0 0.0
        %2636 = vmatpush1.msra.mxu0 0.0
        %2637 = vmatprep.subr.mxu0 0.0
        %2638 = vmatpush1.msra.mxu0 0.0
        %2639 = vmatprep.subr.mxu0 0.0
        %2640 = vmatpush1.msra.mxu0 0.0
        %2641 = vmatprep.subr.mxu0 0.0
        %2642 = vmatpush1.msra.mxu0 0.0
        %2643 = vmatprep.subr.mxu0 0.0
        %2644 = vmatpush1.msra.mxu0 0.0
        %2645 = vmatprep.subr.mxu0 0.0
        %2646 = vmatpush1.msra.mxu0 0.0
        %2647 = vmatprep.subr.mxu0 0.0
        %2648 = vmatpush1.msra.mxu0 0.0
        %2649 = vmatprep.subr.mxu0 0.0
        %2650 = vmatpush1.msra.mxu0 0.0
        %2651 = vmatprep.subr.mxu0 0.0
        %2652 = vmatpush1.msra.mxu0 0.0
        %2653 = vmatprep.subr.mxu0 0.0
        %2654 = vmatpush1.msra.mxu0 0.0
        %2655 = vmatprep.subr.mxu0 0.0
        %2656 = vmatpush1.msra.mxu0 0.0
        %2657 = vmatprep.subr.mxu0 0.0
        %2658 = vmatpush1.msra.mxu0 0.0
        %2659 = vmatprep.subr.mxu0 0.0
        %2660 = vmatpush1.msra.mxu0 0.0
        %2661 = vmatprep.subr.mxu0 0.0
        %2662 = vmatpush1.msra.mxu0 0.0
        %2663 = vmatprep.subr.mxu0 0.0
        %2664 = vmatpush1.msra.mxu0 0.0
        %2665 = vmatprep.subr.mxu0 0.0
        %2666 = vmatpush1.msra.mxu0 0.0
        %2667 = vmatprep.subr.mxu0 0.0
        %2668 = vmatpush1.msra.mxu0 0.0
        %2669 = vmatprep.subr.mxu0 0.0
        %2670 = vmatpush1.msra.mxu0 0.0
        %2671 = vmatprep.subr.mxu0 0.0
        %2672 = vmatpush1.msra.mxu0 0.0
        %2673 = vmatprep.mubr.f32.mxu0 0.0
        %2674 = vmatmul.mubr.f32.gmra.mrb[0].mxu0 %v2252
        %v2675 = vpop.f32.mrb[0].mxu0
        %v2676 = vadd.f32 %v2249, %v2675
        %v2677 = vpop.f32.mrb[0].mxu0
        %v2678 = vadd.f32 %v2249, %v2677
        %2679 = vdwg.mxu0
        %2680 = vmatprep.subr.mxu0 %v2239
        %2681 = vmatpush1.msra.mxu0 %v2238
        %2682 = vmatprep.subr.mxu0 %v2241
        %2683 = vmatpush1.msra.mxu0 %v2240
        %2684 = vmatprep.subr.mxu0 %v2243
        %2685 = vmatpush1.msra.mxu0 %v2242
        %2686 = vmatprep.subr.mxu0 0.0
        %2687 = vmatpush1.msra.mxu0 0.0
        %2688 = vmatprep.subr.mxu0 0.0
        %2689 = vmatpush1.msra.mxu0 0.0
        %2690 = vmatprep.subr.mxu0 0.0
        %2691 = vmatpush1.msra.mxu0 0.0
        %2692 = vmatprep.subr.mxu0 0.0
        %2693 = vmatpush1.msra.mxu0 0.0
        %2694 = vmatprep.subr.mxu0 0.0
        %2695 = vmatpush1.msra.mxu0 0.0
        %2696 = vmatprep.subr.mxu0 0.0
        %2697 = vmatpush1.msra.mxu0 0.0
        %2698 = vmatprep.subr.mxu0 0.0
        %2699 = vmatpush1.msra.mxu0 0.0
        %2700 = vmatprep.subr.mxu0 0.0
        %2701 = vmatpush1.msra.mxu0 0.0
        %2702 = vmatprep.subr.mxu0 0.0
        %2703 = vmatpush1.msra.mxu0 0.0
        %2704 = vmatprep.subr.mxu0 0.0
        %2705 = vmatpush1.msra.mxu0 0.0
        %2706 = vmatprep.subr.mxu0 0.0
        %2707 = vmatpush1.msra.mxu0 0.0
        %2708 = vmatprep.subr.mxu0 0.0
        %2709 = vmatpush1.msra.mxu0 0.0
        %2710 = vmatprep.subr.mxu0 0.0
        %2711 = vmatpush1.msra.mxu0 0.0
        %2712 = vmatprep.subr.mxu0 0.0
        %2713 = vmatpush1.msra.mxu0 0.0
        %2714 = vmatprep.subr.mxu0 0.0
        %2715 = vmatpush1.msra.mxu0 0.0
        %2716 = vmatprep.subr.mxu0 0.0
        %2717 = vmatpush1.msra.mxu0 0.0
        %2718 = vmatprep.subr.mxu0 0.0
        %2719 = vmatpush1.msra.mxu0 0.0
        %2720 = vmatprep.subr.mxu0 0.0
        %2721 = vmatpush1.msra.mxu0 0.0
        %2722 = vmatprep.subr.mxu0 0.0
        %2723 = vmatpush1.msra.mxu0 0.0
        %2724 = vmatprep.subr.mxu0 0.0
        %2725 = vmatpush1.msra.mxu0 0.0
        %2726 = vmatprep.subr.mxu0 0.0
        %2727 = vmatpush1.msra.mxu0 0.0
        %2728 = vmatprep.subr.mxu0 0.0
        %2729 = vmatpush1.msra.mxu0 0.0
        %2730 = vmatprep.subr.mxu0 0.0
        %2731 = vmatpush1.msra.mxu0 0.0
        %2732 = vmatprep.subr.mxu0 0.0
        %2733 = vmatpush1.msra.mxu0 0.0
        %2734 = vmatprep.subr.mxu0 0.0
        %2735 = vmatpush1.msra.mxu0 0.0
        %2736 = vmatprep.subr.mxu0 0.0
        %2737 = vmatpush1.msra.mxu0 0.0
        %2738 = vmatprep.subr.mxu0 0.0
        %2739 = vmatpush1.msra.mxu0 0.0
        %2740 = vmatprep.subr.mxu0 0.0
        %2741 = vmatpush1.msra.mxu0 0.0
        %2742 = vmatprep.subr.mxu0 0.0
        %2743 = vmatpush1.msra.mxu0 0.0
        %2744 = vmatprep.mubr.f32.mxu0 0.0
        %2745 = vmatmul.mubr.f32.gmra.mrb[0].mxu0 %v2252
        %v2746 = vpop.f32.mrb[0].mxu0
        %v2747 = vadd.f32 %v2249, %v2746
        %v2748 = vpop.f32.mrb[0].mxu0
        %v2749 = vadd.f32 %v2249, %v2748
        %2750 = vdwg.mxu0
        %2751 = vmatprep.subr.mxu0 %v2241
        %2752 = vmatpush1.msra.mxu0 %v2240
        %2753 = vmatprep.subr.mxu0 %v2243
        %2754 = vmatpush1.msra.mxu0 %v2242
        %2755 = vmatprep.subr.mxu0 0.0
        %2756 = vmatpush1.msra.mxu0 0.0
        %2757 = vmatprep.subr.mxu0 0.0
        %2758 = vmatpush1.msra.mxu0 0.0
        %2759 = vmatprep.subr.mxu0 0.0
        %2760 = vmatpush1.msra.mxu0 0.0
        %2761 = vmatprep.subr.mxu0 0.0
        %2762 = vmatpush1.msra.mxu0 0.0
        %2763 = vmatprep.subr.mxu0 0.0
        %2764 = vmatpush1.msra.mxu0 0.0
        %2765 = vmatprep.subr.mxu0 0.0
        %2766 = vmatpush1.msra.mxu0 0.0
        %2767 = vmatprep.subr.mxu0 0.0
        %2768 = vmatpush1.msra.mxu0 0.0
        %2769 = vmatprep.subr.mxu0 0.0
        %2770 = vmatpush1.msra.mxu0 0.0
        %2771 = vmatprep.subr.mxu0 0.0
        %2772 = vmatpush1.msra.mxu0 0.0
        %2773 = vmatprep.subr.mxu0 0.0
        %2774 = vmatpush1.msra.mxu0 0.0
        %2775 = vmatprep.subr.mxu0 0.0
        %2776 = vmatpush1.msra.mxu0 0.0
        %2777 = vmatprep.subr.mxu0 0.0
        %2778 = vmatpush1.msra.mxu0 0.0
        %2779 = vmatprep.subr.mxu0 0.0
        %2780 = vmatpush1.msra.mxu0 0.0
        %2781 = vmatprep.subr.mxu0 0.0
        %2782 = vmatpush1.msra.mxu0 0.0
        %2783 = vmatprep.subr.mxu0 0.0
        %2784 = vmatpush1.msra.mxu0 0.0
        %2785 = vmatprep.subr.mxu0 0.0
        %2786 = vmatpush1.msra.mxu0 0.0
        %2787 = vmatprep.subr.mxu0 0.0
        %2788 = vmatpush1.msra.mxu0 0.0
        %2789 = vmatprep.subr.mxu0 0.0
        %2790 = vmatpush1.msra.mxu0 0.0
        %2791 = vmatprep.subr.mxu0 0.0
        %2792 = vmatpush1.msra.mxu0 0.0
        %2793 = vmatprep.subr.mxu0 0.0
        %2794 = vmatpush1.msra.mxu0 0.0
        %2795 = vmatprep.subr.mxu0 0.0
        %2796 = vmatpush1.msra.mxu0 0.0
        %2797 = vmatprep.subr.mxu0 0.0
        %2798 = vmatpush1.msra.mxu0 0.0
        %2799 = vmatprep.subr.mxu0 0.0
        %2800 = vmatpush1.msra.mxu0 0.0
        %2801 = vmatprep.subr.mxu0 0.0
        %2802 = vmatpush1.msra.mxu0 0.0
        %2803 = vmatprep.subr.mxu0 0.0
        %2804 = vmatpush1.msra.mxu0 0.0
        %2805 = vmatprep.subr.mxu0 0.0
        %2806 = vmatpush1.msra.mxu0 0.0
        %2807 = vmatprep.subr.mxu0 0.0
        %2808 = vmatpush1.msra.mxu0 0.0
        %2809 = vmatprep.subr.mxu0 0.0
        %2810 = vmatpush1.msra.mxu0 0.0
        %2811 = vmatprep.subr.mxu0 0.0
        %2812 = vmatpush1.msra.mxu0 0.0
        %2813 = vmatprep.subr.mxu0 0.0
        %2814 = vmatpush1.msra.mxu0 0.0
        %2815 = vmatprep.mubr.f32.mxu0 0.0
        %2816 = vmatmul.mubr.f32.gmra.mrb[0].mxu0 %v2252
        %v2817 = vpop.f32.mrb[0].mxu0
        %v2818 = vadd.f32 %v2249, %v2817
        %v2819 = vpop.f32.mrb[0].mxu0
        %v2820 = vadd.f32 %v2249, %v2819
        %2821 = vdwg.mxu0
        %v2822 = vmax.f32 %v2321, 0.0
        %v2823 = vmax.f32 %v2323, 0.0
        %v2824 = vmax.f32 %v2392, 0.0
        %v2825 = vmax.f32 %v2394, 0.0
        %v2826 = vmax.f32 %v2463, 0.0
        %v2827 = vmax.f32 %v2465, 0.0
        %v2828 = vmax.f32 %v2534, 0.0
        %v2829 = vmax.f32 %v2536, 0.0
        %v2830 = vmax.f32 %v2605, 0.0
        %v2831 = vmax.f32 %v2607, 0.0
        %v2832 = vmax.f32 %v2676, 0.0
        %v2833 = vmax.f32 %v2678, 0.0
        %v2834 = vmax.f32 %v2747, 0.0
        %v2835 = vmax.f32 %v2749, 0.0
        %v2836 = vmax.f32 %v2818, 0.0
        %v2837 = vmax.f32 %v2820, 0.0
        %vm2838 = vcmp.ge.s32.totalorder %v647, 2
        %vm2839 = vcmp.ge.s32.totalorder %v648, 2
        %2856 = vrot.lane.b32.xlu0 %v2822, 2
        %v2857 = vpop.permute.xlu0 %2856
        %2858 = vrot.lane.b32.xlu0 %v2823, 2
        %v2859 = vpop.permute.xlu0 %2858
        %2860 = vrot.lane.b32.xlu0 %v2824, 2
        %v2861 = vpop.permute.xlu0 %2860
        %2862 = vrot.lane.b32.xlu0 %v2825, 2
        %v2863 = vpop.permute.xlu0 %2862
        %2864 = vrot.lane.b32.xlu0 %v2826, 2
        %v2865 = vpop.permute.xlu0 %2864
        %2866 = vrot.lane.b32.xlu0 %v2827, 2
        %v2867 = vpop.permute.xlu0 %2866
        %2868 = vrot.lane.b32.xlu0 %v2828, 2
        %v2869 = vpop.permute.xlu0 %2868
        %2870 = vrot.lane.b32.xlu0 %v2829, 2
        %v2871 = vpop.permute.xlu0 %2870
        %2872 = vrot.lane.b32.xlu0 %v2830, 2
        %v2873 = vpop.permute.xlu0 %2872
        %2874 = vrot.lane.b32.xlu0 %v2831, 2
        %v2875 = vpop.permute.xlu0 %2874
        %2876 = vrot.lane.b32.xlu0 %v2832, 2
        %v2877 = vpop.permute.xlu0 %2876
        %2878 = vrot.lane.b32.xlu0 %v2833, 2
        %v2879 = vpop.permute.xlu0 %2878
        %2880 = vrot.lane.b32.xlu0 %v2834, 2
        %v2881 = vpop.permute.xlu0 %2880
        %2882 = vrot.lane.b32.xlu0 %v2835, 2
        %v2883 = vpop.permute.xlu0 %2882
        %2884 = vrot.lane.b32.xlu0 %v2836, 2
        %v2885 = vpop.permute.xlu0 %2884
        %2886 = vrot.lane.b32.xlu0 %v2837, 2
        %v2887 = vpop.permute.xlu0 %2886
        %vm2888 = vcmask 15360
        %v2889 = vsel %vm2888, %v2857, %v2859
        %v2890 = vsel %vm2888, %v2859, %v2861
        %v2891 = vsel %vm2888, %v2861, %v2863
        %v2892 = vsel %vm2888, %v2863, %v2865
        %v2893 = vsel %vm2888, %v2865, %v2867
        %v2894 = vsel %vm2888, %v2867, %v2869
        %v2895 = vsel %vm2888, %v2869, %v2871
        %v2896 = vsel %vm2888, %v2871, %v2873
        %v2897 = vsel %vm2888, %v2873, %v2875
        %v2898 = vsel %vm2888, %v2875, %v2877
        %v2899 = vsel %vm2888, %v2877, %v2879
        %v2900 = vsel %vm2888, %v2879, %v2881
        %v2901 = vsel %vm2888, %v2881, %v2883
        %v2902 = vsel %vm2888, %v2883, %v2885
        %v2903 = vsel %vm2888, %v2885, %v2887
        %v2920 = vsel %vm2888, 0.0, %v2857
        %v2921 = vsel %vm2838, 1, 0
        %v2922 = vsel %vm2839, 1, 0
        %v2923 = vlaneseq
        %v2924 = vshrl.u32 %v2923, 7
        %v2925 = vsub.s32 0, %v2924
        %v2926 = vrot.slane %v2921, %v2925
        %v2927 = vlaneseq
        %v2928 = vshrl.u32 %v2927, 7
        %v2929 = vsub.s32 1, %v2928
        %v2930 = vrot.slane %v2921, %v2929
        %v2931 = vlaneseq
        %v2932 = vshrl.u32 %v2931, 7
        %v2933 = vsub.s32 2, %v2932
        %v2934 = vrot.slane %v2921, %v2933
        %v2935 = vlaneseq
        %v2936 = vshrl.u32 %v2935, 7
        %v2937 = vsub.s32 3, %v2936
        %v2938 = vrot.slane %v2921, %v2937
        %v2939 = vlaneseq
        %v2940 = vshrl.u32 %v2939, 7
        %v2941 = vsub.s32 4, %v2940
        %v2942 = vrot.slane %v2921, %v2941
        %v2943 = vlaneseq
        %v2944 = vshrl.u32 %v2943, 7
        %v2945 = vsub.s32 5, %v2944
        %v2946 = vrot.slane %v2921, %v2945
        %v2947 = vlaneseq
        %v2948 = vshrl.u32 %v2947, 7
        %v2949 = vsub.s32 6, %v2948
        %v2950 = vrot.slane %v2921, %v2949
        %v2951 = vlaneseq
        %v2952 = vshrl.u32 %v2951, 7
        %v2953 = vsub.s32 7, %v2952
        %v2954 = vrot.slane %v2921, %v2953
        %v2955 = vlaneseq
        %v2956 = vshrl.u32 %v2955, 7
        %v2957 = vsub.s32 0, %v2956
        %v2958 = vrot.slane %v2922, %v2957
        %v2959 = vlaneseq
        %v2960 = vshrl.u32 %v2959, 7
        %v2961 = vsub.s32 1, %v2960
        %v2962 = vrot.slane %v2922, %v2961
        %v2963 = vlaneseq
        %v2964 = vshrl.u32 %v2963, 7
        %v2965 = vsub.s32 2, %v2964
        %v2966 = vrot.slane %v2922, %v2965
        %v2967 = vlaneseq
        %v2968 = vshrl.u32 %v2967, 7
        %v2969 = vsub.s32 3, %v2968
        %v2970 = vrot.slane %v2922, %v2969
        %v2971 = vlaneseq
        %v2972 = vshrl.u32 %v2971, 7
        %v2973 = vsub.s32 4, %v2972
        %v2974 = vrot.slane %v2922, %v2973
        %v2975 = vlaneseq
        %v2976 = vshrl.u32 %v2975, 7
        %v2977 = vsub.s32 5, %v2976
        %v2978 = vrot.slane %v2922, %v2977
        %v2979 = vlaneseq
        %v2980 = vshrl.u32 %v2979, 7
        %v2981 = vsub.s32 6, %v2980
        %v2982 = vrot.slane %v2922, %v2981
        %v2983 = vlaneseq
        %v2984 = vshrl.u32 %v2983, 7
        %v2985 = vsub.s32 7, %v2984
        %v2986 = vrot.slane %v2922, %v2985
        %vm2987 = vcmp.eq.s32.totalorder %v2926, 1
        %vm2988 = vcmp.eq.s32.totalorder %v2930, 1
        %vm2989 = vcmp.eq.s32.totalorder %v2934, 1
        %vm2990 = vcmp.eq.s32.totalorder %v2938, 1
        %vm2991 = vcmp.eq.s32.totalorder %v2942, 1
        %vm2992 = vcmp.eq.s32.totalorder %v2946, 1
        %vm2993 = vcmp.eq.s32.totalorder %v2950, 1
        %vm2994 = vcmp.eq.s32.totalorder %v2954, 1
        %vm2995 = vcmp.eq.s32.totalorder %v2958, 1
        %vm2996 = vcmp.eq.s32.totalorder %v2962, 1
        %vm2997 = vcmp.eq.s32.totalorder %v2966, 1
        %vm2998 = vcmp.eq.s32.totalorder %v2970, 1
        %vm2999 = vcmp.eq.s32.totalorder %v2974, 1
        %vm3000 = vcmp.eq.s32.totalorder %v2978, 1
        %vm3001 = vcmp.eq.s32.totalorder %v2982, 1
        %vm3002 = vcmp.eq.s32.totalorder %v2986, 1
        %v3003 = vsel %vm2987, %v2920, 0.0
        %v3004 = vsel %vm2988, %v2889, 0.0
        %v3005 = vsel %vm2989, %v2890, 0.0
        %v3006 = vsel %vm2990, %v2891, 0.0
        %v3007 = vsel %vm2991, %v2892, 0.0
        %v3008 = vsel %vm2992, %v2893, 0.0
        %v3009 = vsel %vm2993, %v2894, 0.0
        %v3010 = vsel %vm2994, %v2895, 0.0
        %v3011 = vsel %vm2995, %v2896, 0.0
        %v3012 = vsel %vm2996, %v2897, 0.0
        %v3013 = vsel %vm2997, %v2898, 0.0
        %v3014 = vsel %vm2998, %v2899, 0.0
        %v3015 = vsel %vm2999, %v2900, 0.0
        %v3016 = vsel %vm3000, %v2901, 0.0
        %v3017 = vsel %vm3001, %v2902, 0.0
        %v3018 = vsel %vm3002, %v2903, 0.0
        %vm3019 = vcmp.lt.s32.totalorder %v647, 126
        %vm3020 = vcmp.lt.s32.totalorder %v648, 126
        %3021 = vrot.lane.b32.xlu0 %v2822, 126
        %v3022 = vpop.permute.xlu0 %3021
        %3023 = vrot.lane.b32.xlu0 %v2823, 126
        %v3024 = vpop.permute.xlu0 %3023
        %3025 = vrot.lane.b32.xlu0 %v2824, 126
        %v3026 = vpop.permute.xlu0 %3025
        %3027 = vrot.lane.b32.xlu0 %v2825, 126
        %v3028 = vpop.permute.xlu0 %3027
        %3029 = vrot.lane.b32.xlu0 %v2826, 126
        %v3030 = vpop.permute.xlu0 %3029
        %3031 = vrot.lane.b32.xlu0 %v2827, 126
        %v3032 = vpop.permute.xlu0 %3031
        %3033 = vrot.lane.b32.xlu0 %v2828, 126
        %v3034 = vpop.permute.xlu0 %3033
        %3035 = vrot.lane.b32.xlu0 %v2829, 126
        %v3036 = vpop.permute.xlu0 %3035
        %3037 = vrot.lane.b32.xlu0 %v2830, 126
        %v3038 = vpop.permute.xlu0 %3037
        %3039 = vrot.lane.b32.xlu0 %v2831, 126
        %v3040 = vpop.permute.xlu0 %3039
        %3041 = vrot.lane.b32.xlu0 %v2832, 126
        %v3042 = vpop.permute.xlu0 %3041
        %3043 = vrot.lane.b32.xlu0 %v2833, 126
        %v3044 = vpop.permute.xlu0 %3043
        %3045 = vrot.lane.b32.xlu0 %v2834, 126
        %v3046 = vpop.permute.xlu0 %3045
        %3047 = vrot.lane.b32.xlu0 %v2835, 126
        %v3048 = vpop.permute.xlu0 %3047
        %3049 = vrot.lane.b32.xlu0 %v2836, 126
        %v3050 = vpop.permute.xlu0 %3049
        %3051 = vrot.lane.b32.xlu0 %v2837, 126
        %v3052 = vpop.permute.xlu0 %3051
        %vm3053 = vcmask 1031168
        %v3054 = vsel %vm3053, %v3022, %v3024
        %v3055 = vsel %vm3053, %v3024, %v3026
        %v3056 = vsel %vm3053, %v3026, %v3028
        %v3057 = vsel %vm3053, %v3028, %v3030
        %v3058 = vsel %vm3053, %v3030, %v3032
        %v3059 = vsel %vm3053, %v3032, %v3034
        %v3060 = vsel %vm3053, %v3034, %v3036
        %v3061 = vsel %vm3053, %v3036, %v3038
        %v3062 = vsel %vm3053, %v3038, %v3040
        %v3063 = vsel %vm3053, %v3040, %v3042
        %v3064 = vsel %vm3053, %v3042, %v3044
        %v3065 = vsel %vm3053, %v3044, %v3046
        %v3066 = vsel %vm3053, %v3046, %v3048
        %v3067 = vsel %vm3053, %v3048, %v3050
        %v3068 = vsel %vm3053, %v3050, %v3052
        %v3085 = vsel %vm3053, %v3052, 0.0
        %v3086 = vsel %vm3019, 1, 0
        %v3087 = vsel %vm3020, 1, 0
        %v3088 = vlaneseq
        %v3089 = vshrl.u32 %v3088, 7
        %v3090 = vsub.s32 0, %v3089
        %v3091 = vrot.slane %v3086, %v3090
        %v3092 = vlaneseq
        %v3093 = vshrl.u32 %v3092, 7
        %v3094 = vsub.s32 1, %v3093
        %v3095 = vrot.slane %v3086, %v3094
        %v3096 = vlaneseq
        %v3097 = vshrl.u32 %v3096, 7
        %v3098 = vsub.s32 2, %v3097
        %v3099 = vrot.slane %v3086, %v3098
        %v3100 = vlaneseq
        %v3101 = vshrl.u32 %v3100, 7
        %v3102 = vsub.s32 3, %v3101
        %v3103 = vrot.slane %v3086, %v3102
        %v3104 = vlaneseq
        %v3105 = vshrl.u32 %v3104, 7
        %v3106 = vsub.s32 4, %v3105
        %v3107 = vrot.slane %v3086, %v3106
        %v3108 = vlaneseq
        %v3109 = vshrl.u32 %v3108, 7
        %v3110 = vsub.s32 5, %v3109
        %v3111 = vrot.slane %v3086, %v3110
        %v3112 = vlaneseq
        %v3113 = vshrl.u32 %v3112, 7
        %v3114 = vsub.s32 6, %v3113
        %v3115 = vrot.slane %v3086, %v3114
        %v3116 = vlaneseq
        %v3117 = vshrl.u32 %v3116, 7
        %v3118 = vsub.s32 7, %v3117
        %v3119 = vrot.slane %v3086, %v3118
        %v3120 = vlaneseq
        %v3121 = vshrl.u32 %v3120, 7
        %v3122 = vsub.s32 0, %v3121
        %v3123 = vrot.slane %v3087, %v3122
        %v3124 = vlaneseq
        %v3125 = vshrl.u32 %v3124, 7
        %v3126 = vsub.s32 1, %v3125
        %v3127 = vrot.slane %v3087, %v3126
        %v3128 = vlaneseq
        %v3129 = vshrl.u32 %v3128, 7
        %v3130 = vsub.s32 2, %v3129
        %v3131 = vrot.slane %v3087, %v3130
        %v3132 = vlaneseq
        %v3133 = vshrl.u32 %v3132, 7
        %v3134 = vsub.s32 3, %v3133
        %v3135 = vrot.slane %v3087, %v3134
        %v3136 = vlaneseq
        %v3137 = vshrl.u32 %v3136, 7
        %v3138 = vsub.s32 4, %v3137
        %v3139 = vrot.slane %v3087, %v3138
        %v3140 = vlaneseq
        %v3141 = vshrl.u32 %v3140, 7
        %v3142 = vsub.s32 5, %v3141
        %v3143 = vrot.slane %v3087, %v3142
        %v3144 = vlaneseq
        %v3145 = vshrl.u32 %v3144, 7
        %v3146 = vsub.s32 6, %v3145
        %v3147 = vrot.slane %v3087, %v3146
        %v3148 = vlaneseq
        %v3149 = vshrl.u32 %v3148, 7
        %v3150 = vsub.s32 7, %v3149
        %v3151 = vrot.slane %v3087, %v3150
        %vm3152 = vcmp.eq.s32.totalorder %v3091, 1
        %vm3153 = vcmp.eq.s32.totalorder %v3095, 1
        %vm3154 = vcmp.eq.s32.totalorder %v3099, 1
        %vm3155 = vcmp.eq.s32.totalorder %v3103, 1
        %vm3156 = vcmp.eq.s32.totalorder %v3107, 1
        %vm3157 = vcmp.eq.s32.totalorder %v3111, 1
        %vm3158 = vcmp.eq.s32.totalorder %v3115, 1
        %vm3159 = vcmp.eq.s32.totalorder %v3119, 1
        %vm3160 = vcmp.eq.s32.totalorder %v3123, 1
        %vm3161 = vcmp.eq.s32.totalorder %v3127, 1
        %vm3162 = vcmp.eq.s32.totalorder %v3131, 1
        %vm3163 = vcmp.eq.s32.totalorder %v3135, 1
        %vm3164 = vcmp.eq.s32.totalorder %v3139, 1
        %vm3165 = vcmp.eq.s32.totalorder %v3143, 1
        %vm3166 = vcmp.eq.s32.totalorder %v3147, 1
        %vm3167 = vcmp.eq.s32.totalorder %v3151, 1
        %v3168 = vsel %vm3152, %v3054, 0.0
        %v3169 = vsel %vm3153, %v3055, 0.0
        %v3170 = vsel %vm3154, %v3056, 0.0
        %v3171 = vsel %vm3155, %v3057, 0.0
        %v3172 = vsel %vm3156, %v3058, 0.0
        %v3173 = vsel %vm3157, %v3059, 0.0
        %v3174 = vsel %vm3158, %v3060, 0.0
        %v3175 = vsel %vm3159, %v3061, 0.0
        %v3176 = vsel %vm3160, %v3062, 0.0
        %v3177 = vsel %vm3161, %v3063, 0.0
        %v3178 = vsel %vm3162, %v3064, 0.0
        %v3179 = vsel %vm3163, %v3065, 0.0
        %v3180 = vsel %vm3164, %v3066, 0.0
        %v3181 = vsel %vm3165, %v3067, 0.0
        %v3182 = vsel %vm3166, %v3068, 0.0
        %v3183 = vsel %vm3167, %v3085, 0.0
        %v3184 = vld [vmem:[#allocation19] sm:$0xff]
        %v3185 = vld [vmem:[#allocation20] sm:$0xff]
        %3187 = vset.pattern.permute.xlu0 0
        %3188 = vperm.xlu0 %3187, %v3185
        %v3189 = vpop.permute.xlu0 %3188
        %v3192 = vsel %vm672, %v3184, 0
        %3194 = vmatprep.subr.mxu0 %v3004
        %3195 = vmatpush1.msra.mxu0 %v3003
        %3196 = vmatprep.subr.mxu0 %v2823
        %3197 = vmatpush1.msra.mxu0 %v2822
        %3198 = vmatprep.subr.mxu0 %v3169
        %3199 = vmatpush1.msra.mxu0 %v3168
        %3200 = vmatprep.subr.mxu0 0.0
        %3201 = vmatpush1.msra.mxu0 0.0
        %3202 = vmatprep.subr.mxu0 0.0
        %3203 = vmatpush1.msra.mxu0 0.0
        %3204 = vmatprep.subr.mxu0 0.0
        %3205 = vmatpush1.msra.mxu0 0.0
        %3206 = vmatprep.subr.mxu0 0.0
        %3207 = vmatpush1.msra.mxu0 0.0
        %3208 = vmatprep.subr.mxu0 0.0
        %3209 = vmatpush1.msra.mxu0 0.0
        %3210 = vmatprep.subr.mxu0 0.0
        %3211 = vmatpush1.msra.mxu0 0.0
        %3212 = vmatprep.subr.mxu0 0.0
        %3213 = vmatpush1.msra.mxu0 0.0
        %3214 = vmatprep.subr.mxu0 0.0
        %3215 = vmatpush1.msra.mxu0 0.0
        %3216 = vmatprep.subr.mxu0 0.0
        %3217 = vmatpush1.msra.mxu0 0.0
        %3218 = vmatprep.subr.mxu0 0.0
        %3219 = vmatpush1.msra.mxu0 0.0
        %3220 = vmatprep.subr.mxu0 0.0
        %3221 = vmatpush1.msra.mxu0 0.0
        %3222 = vmatprep.subr.mxu0 0.0
        %3223 = vmatpush1.msra.mxu0 0.0
        %3224 = vmatprep.subr.mxu0 0.0
        %3225 = vmatpush1.msra.mxu0 0.0
        %3226 = vmatprep.subr.mxu0 0.0
        %3227 = vmatpush1.msra.mxu0 0.0
        %3228 = vmatprep.subr.mxu0 0.0
        %3229 = vmatpush1.msra.mxu0 0.0
        %3230 = vmatprep.subr.mxu0 0.0
        %3231 = vmatpush1.msra.mxu0 0.0
        %3232 = vmatprep.subr.mxu0 0.0
        %3233 = vmatpush1.msra.mxu0 0.0
        %3234 = vmatprep.subr.mxu0 0.0
        %3235 = vmatpush1.msra.mxu0 0.0
        %3236 = vmatprep.subr.mxu0 0.0
        %3237 = vmatpush1.msra.mxu0 0.0
        %3238 = vmatprep.subr.mxu0 0.0
        %3239 = vmatpush1.msra.mxu0 0.0
        %3240 = vmatprep.subr.mxu0 0.0
        %3241 = vmatpush1.msra.mxu0 0.0
        %3242 = vmatprep.subr.mxu0 0.0
        %3243 = vmatpush1.msra.mxu0 0.0
        %3244 = vmatprep.subr.mxu0 0.0
        %3245 = vmatpush1.msra.mxu0 0.0
        %3246 = vmatprep.subr.mxu0 0.0
        %3247 = vmatpush1.msra.mxu0 0.0
        %3248 = vmatprep.subr.mxu0 0.0
        %3249 = vmatpush1.msra.mxu0 0.0
        %3250 = vmatprep.subr.mxu0 0.0
        %3251 = vmatpush1.msra.mxu0 0.0
        %3252 = vmatprep.subr.mxu0 0.0
        %3253 = vmatpush1.msra.mxu0 0.0
        %3254 = vmatprep.subr.mxu0 0.0
        %3255 = vmatpush1.msra.mxu0 0.0
        %3256 = vmatprep.subr.mxu0 0.0
        %3257 = vmatpush1.msra.mxu0 0.0
        %3258 = vmatprep.mubr.f32.mxu0 0.0
        %3259 = vmatmul.mubr.f32.gmra.mrb[0].mxu0 %v3192
        %v3260 = vpop.f32.mrb[0].mxu0
        %v3261 = vadd.f32 %v3189, %v3260
        %v3262 = vpop.f32.mrb[0].mxu0
        %v3263 = vadd.f32 %v3189, %v3262
        %3264 = vdwg.mxu0
        %3265 = vmatprep.subr.mxu0 %v3006
        %3266 = vmatpush1.msra.mxu0 %v3005
        %3267 = vmatprep.subr.mxu0 %v2825
        %3268 = vmatpush1.msra.mxu0 %v2824
        %3269 = vmatprep.subr.mxu0 %v3171
        %3270 = vmatpush1.msra.mxu0 %v3170
        %3271 = vmatprep.subr.mxu0 0.0
        %3272 = vmatpush1.msra.mxu0 0.0
        %3273 = vmatprep.subr.mxu0 0.0
        %3274 = vmatpush1.msra.mxu0 0.0
        %3275 = vmatprep.subr.mxu0 0.0
        %3276 = vmatpush1.msra.mxu0 0.0
        %3277 = vmatprep.subr.mxu0 0.0
        %3278 = vmatpush1.msra.mxu0 0.0
        %3279 = vmatprep.subr.mxu0 0.0
        %3280 = vmatpush1.msra.mxu0 0.0
        %3281 = vmatprep.subr.mxu0 0.0
        %3282 = vmatpush1.msra.mxu0 0.0
        %3283 = vmatprep.subr.mxu0 0.0
        %3284 = vmatpush1.msra.mxu0 0.0
        %3285 = vmatprep.subr.mxu0 0.0
        %3286 = vmatpush1.msra.mxu0 0.0
        %3287 = vmatprep.subr.mxu0 0.0
        %3288 = vmatpush1.msra.mxu0 0.0
        %3289 = vmatprep.subr.mxu0 0.0
        %3290 = vmatpush1.msra.mxu0 0.0
        %3291 = vmatprep.subr.mxu0 0.0
        %3292 = vmatpush1.msra.mxu0 0.0
        %3293 = vmatprep.subr.mxu0 0.0
        %3294 = vmatpush1.msra.mxu0 0.0
        %3295 = vmatprep.subr.mxu0 0.0
        %3296 = vmatpush1.msra.mxu0 0.0
        %3297 = vmatprep.subr.mxu0 0.0
        %3298 = vmatpush1.msra.mxu0 0.0
        %3299 = vmatprep.subr.mxu0 0.0
        %3300 = vmatpush1.msra.mxu0 0.0
        %3301 = vmatprep.subr.mxu0 0.0
        %3302 = vmatpush1.msra.mxu0 0.0
        %3303 = vmatprep.subr.mxu0 0.0
        %3304 = vmatpush1.msra.mxu0 0.0
        %3305 = vmatprep.subr.mxu0 0.0
        %3306 = vmatpush1.msra.mxu0 0.0
        %3307 = vmatprep.subr.mxu0 0.0
        %3308 = vmatpush1.msra.mxu0 0.0
        %3309 = vmatprep.subr.mxu0 0.0
        %3310 = vmatpush1.msra.mxu0 0.0
        %3311 = vmatprep.subr.mxu0 0.0
        %3312 = vmatpush1.msra.mxu0 0.0
        %3313 = vmatprep.subr.mxu0 0.0
        %3314 = vmatpush1.msra.mxu0 0.0
        %3315 = vmatprep.subr.mxu0 0.0
        %3316 = vmatpush1.msra.mxu0 0.0
        %3317 = vmatprep.subr.mxu0 0.0
        %3318 = vmatpush1.msra.mxu0 0.0
        %3319 = vmatprep.subr.mxu0 0.0
        %3320 = vmatpush1.msra.mxu0 0.0
        %3321 = vmatprep.subr.mxu0 0.0
        %3322 = vmatpush1.msra.mxu0 0.0
        %3323 = vmatprep.subr.mxu0 0.0
        %3324 = vmatpush1.msra.mxu0 0.0
        %3325 = vmatprep.subr.mxu0 0.0
        %3326 = vmatpush1.msra.mxu0 0.0
        %3327 = vmatprep.subr.mxu0 0.0
        %3328 = vmatpush1.msra.mxu0 0.0
        %3329 = vmatprep.mubr.f32.mxu0 0.0
        %3330 = vmatmul.mubr.f32.gmra.mrb[0].mxu0 %v3192
        %v3331 = vpop.f32.mrb[0].mxu0
        %v3332 = vadd.f32 %v3189, %v3331
        %v3333 = vpop.f32.mrb[0].mxu0
        %v3334 = vadd.f32 %v3189, %v3333
        %3335 = vdwg.mxu0
        %3336 = vmatprep.subr.mxu0 %v3008
        %3337 = vmatpush1.msra.mxu0 %v3007
        %3338 = vmatprep.subr.mxu0 %v2827
        %3339 = vmatpush1.msra.mxu0 %v2826
        %3340 = vmatprep.subr.mxu0 %v3173
        %3341 = vmatpush1.msra.mxu0 %v3172
        %3342 = vmatprep.subr.mxu0 0.0
        %3343 = vmatpush1.msra.mxu0 0.0
        %3344 = vmatprep.subr.mxu0 0.0
        %3345 = vmatpush1.msra.mxu0 0.0
        %3346 = vmatprep.subr.mxu0 0.0
        %3347 = vmatpush1.msra.mxu0 0.0
        %3348 = vmatprep.subr.mxu0 0.0
        %3349 = vmatpush1.msra.mxu0 0.0
        %3350 = vmatprep.subr.mxu0 0.0
        %3351 = vmatpush1.msra.mxu0 0.0
        %3352 = vmatprep.subr.mxu0 0.0
        %3353 = vmatpush1.msra.mxu0 0.0
        %3354 = vmatprep.subr.mxu0 0.0
        %3355 = vmatpush1.msra.mxu0 0.0
        %3356 = vmatprep.subr.mxu0 0.0
        %3357 = vmatpush1.msra.mxu0 0.0
        %3358 = vmatprep.subr.mxu0 0.0
        %3359 = vmatpush1.msra.mxu0 0.0
        %3360 = vmatprep.subr.mxu0 0.0
        %3361 = vmatpush1.msra.mxu0 0.0
        %3362 = vmatprep.subr.mxu0 0.0
        %3363 = vmatpush1.msra.mxu0 0.0
        %3364 = vmatprep.subr.mxu0 0.0
        %3365 = vmatpush1.msra.mxu0 0.0
        %3366 = vmatprep.subr.mxu0 0.0
        %3367 = vmatpush1.msra.mxu0 0.0
        %3368 = vmatprep.subr.mxu0 0.0
        %3369 = vmatpush1.msra.mxu0 0.0
        %3370 = vmatprep.subr.mxu0 0.0
        %3371 = vmatpush1.msra.mxu0 0.0
        %3372 = vmatprep.subr.mxu0 0.0
        %3373 = vmatpush1.msra.mxu0 0.0
        %3374 = vmatprep.subr.mxu0 0.0
        %3375 = vmatpush1.msra.mxu0 0.0
        %3376 = vmatprep.subr.mxu0 0.0
        %3377 = vmatpush1.msra.mxu0 0.0
        %3378 = vmatprep.subr.mxu0 0.0
        %3379 = vmatpush1.msra.mxu0 0.0
        %3380 = vmatprep.subr.mxu0 0.0
        %3381 = vmatpush1.msra.mxu0 0.0
        %3382 = vmatprep.subr.mxu0 0.0
        %3383 = vmatpush1.msra.mxu0 0.0
        %3384 = vmatprep.subr.mxu0 0.0
        %3385 = vmatpush1.msra.mxu0 0.0
        %3386 = vmatprep.subr.mxu0 0.0
        %3387 = vmatpush1.msra.mxu0 0.0
        %3388 = vmatprep.subr.mxu0 0.0
        %3389 = vmatpush1.msra.mxu0 0.0
        %3390 = vmatprep.subr.mxu0 0.0
        %3391 = vmatpush1.msra.mxu0 0.0
        %3392 = vmatprep.subr.mxu0 0.0
        %3393 = vmatpush1.msra.mxu0 0.0
        %3394 = vmatprep.subr.mxu0 0.0
        %3395 = vmatpush1.msra.mxu0 0.0
        %3396 = vmatprep.subr.mxu0 0.0
        %3397 = vmatpush1.msra.mxu0 0.0
        %3398 = vmatprep.subr.mxu0 0.0
        %3399 = vmatpush1.msra.mxu0 0.0
        %3400 = vmatprep.mubr.f32.mxu0 0.0
        %3401 = vmatmul.mubr.f32.gmra.mrb[0].mxu0 %v3192
        %v3402 = vpop.f32.mrb[0].mxu0
        %v3403 = vadd.f32 %v3189, %v3402
        %v3404 = vpop.f32.mrb[0].mxu0
        %v3405 = vadd.f32 %v3189, %v3404
        %3406 = vdwg.mxu0
        %3407 = vmatprep.subr.mxu0 %v3010
        %3408 = vmatpush1.msra.mxu0 %v3009
        %3409 = vmatprep.subr.mxu0 %v2829
        %3410 = vmatpush1.msra.mxu0 %v2828
        %3411 = vmatprep.subr.mxu0 %v3175
        %3412 = vmatpush1.msra.mxu0 %v3174
        %3413 = vmatprep.subr.mxu0 0.0
        %3414 = vmatpush1.msra.mxu0 0.0
        %3415 = vmatprep.subr.mxu0 0.0
        %3416 = vmatpush1.msra.mxu0 0.0
        %3417 = vmatprep.subr.mxu0 0.0
        %3418 = vmatpush1.msra.mxu0 0.0
        %3419 = vmatprep.subr.mxu0 0.0
        %3420 = vmatpush1.msra.mxu0 0.0
        %3421 = vmatprep.subr.mxu0 0.0
        %3422 = vmatpush1.msra.mxu0 0.0
        %3423 = vmatprep.subr.mxu0 0.0
        %3424 = vmatpush1.msra.mxu0 0.0
        %3425 = vmatprep.subr.mxu0 0.0
        %3426 = vmatpush1.msra.mxu0 0.0
        %3427 = vmatprep.subr.mxu0 0.0
        %3428 = vmatpush1.msra.mxu0 0.0
        %3429 = vmatprep.subr.mxu0 0.0
        %3430 = vmatpush1.msra.mxu0 0.0
        %3431 = vmatprep.subr.mxu0 0.0
        %3432 = vmatpush1.msra.mxu0 0.0
        %3433 = vmatprep.subr.mxu0 0.0
        %3434 = vmatpush1.msra.mxu0 0.0
        %3435 = vmatprep.subr.mxu0 0.0
        %3436 = vmatpush1.msra.mxu0 0.0
        %3437 = vmatprep.subr.mxu0 0.0
        %3438 = vmatpush1.msra.mxu0 0.0
        %3439 = vmatprep.subr.mxu0 0.0
        %3440 = vmatpush1.msra.mxu0 0.0
        %3441 = vmatprep.subr.mxu0 0.0
        %3442 = vmatpush1.msra.mxu0 0.0
        %3443 = vmatprep.subr.mxu0 0.0
        %3444 = vmatpush1.msra.mxu0 0.0
        %3445 = vmatprep.subr.mxu0 0.0
        %3446 = vmatpush1.msra.mxu0 0.0
        %3447 = vmatprep.subr.mxu0 0.0
        %3448 = vmatpush1.msra.mxu0 0.0
        %3449 = vmatprep.subr.mxu0 0.0
        %3450 = vmatpush1.msra.mxu0 0.0
        %3451 = vmatprep.subr.mxu0 0.0
        %3452 = vmatpush1.msra.mxu0 0.0
        %3453 = vmatprep.subr.mxu0 0.0
        %3454 = vmatpush1.msra.mxu0 0.0
        %3455 = vmatprep.subr.mxu0 0.0
        %3456 = vmatpush1.msra.mxu0 0.0
        %3457 = vmatprep.subr.mxu0 0.0
        %3458 = vmatpush1.msra.mxu0 0.0
        %3459 = vmatprep.subr.mxu0 0.0
        %3460 = vmatpush1.msra.mxu0 0.0
        %3461 = vmatprep.subr.mxu0 0.0
        %3462 = vmatpush1.msra.mxu0 0.0
        %3463 = vmatprep.subr.mxu0 0.0
        %3464 = vmatpush1.msra.mxu0 0.0
        %3465 = vmatprep.subr.mxu0 0.0
        %3466 = vmatpush1.msra.mxu0 0.0
        %3467 = vmatprep.subr.mxu0 0.0
        %3468 = vmatpush1.msra.mxu0 0.0
        %3469 = vmatprep.subr.mxu0 0.0
        %3470 = vmatpush1.msra.mxu0 0.0
        %3471 = vmatprep.mubr.f32.mxu0 0.0
        %3472 = vmatmul.mubr.f32.gmra.mrb[0].mxu0 %v3192
        %v3473 = vpop.f32.mrb[0].mxu0
        %v3474 = vadd.f32 %v3189, %v3473
        %v3475 = vpop.f32.mrb[0].mxu0
        %v3476 = vadd.f32 %v3189, %v3475
        %3477 = vdwg.mxu0
        %3478 = vmatprep.subr.mxu0 %v3012
        %3479 = vmatpush1.msra.mxu0 %v3011
        %3480 = vmatprep.subr.mxu0 %v2831
        %3481 = vmatpush1.msra.mxu0 %v2830
        %3482 = vmatprep.subr.mxu0 %v3177
        %3483 = vmatpush1.msra.mxu0 %v3176
        %3484 = vmatprep.subr.mxu0 0.0
        %3485 = vmatpush1.msra.mxu0 0.0
        %3486 = vmatprep.subr.mxu0 0.0
        %3487 = vmatpush1.msra.mxu0 0.0
        %3488 = vmatprep.subr.mxu0 0.0
        %3489 = vmatpush1.msra.mxu0 0.0
        %3490 = vmatprep.subr.mxu0 0.0
        %3491 = vmatpush1.msra.mxu0 0.0
        %3492 = vmatprep.subr.mxu0 0.0
        %3493 = vmatpush1.msra.mxu0 0.0
        %3494 = vmatprep.subr.mxu0 0.0
        %3495 = vmatpush1.msra.mxu0 0.0
        %3496 = vmatprep.subr.mxu0 0.0
        %3497 = vmatpush1.msra.mxu0 0.0
        %3498 = vmatprep.subr.mxu0 0.0
        %3499 = vmatpush1.msra.mxu0 0.0
        %3500 = vmatprep.subr.mxu0 0.0
        %3501 = vmatpush1.msra.mxu0 0.0
        %3502 = vmatprep.subr.mxu0 0.0
        %3503 = vmatpush1.msra.mxu0 0.0
        %3504 = vmatprep.subr.mxu0 0.0
        %3505 = vmatpush1.msra.mxu0 0.0
        %3506 = vmatprep.subr.mxu0 0.0
        %3507 = vmatpush1.msra.mxu0 0.0
        %3508 = vmatprep.subr.mxu0 0.0
        %3509 = vmatpush1.msra.mxu0 0.0
        %3510 = vmatprep.subr.mxu0 0.0
        %3511 = vmatpush1.msra.mxu0 0.0
        %3512 = vmatprep.subr.mxu0 0.0
        %3513 = vmatpush1.msra.mxu0 0.0
        %3514 = vmatprep.subr.mxu0 0.0
        %3515 = vmatpush1.msra.mxu0 0.0
        %3516 = vmatprep.subr.mxu0 0.0
        %3517 = vmatpush1.msra.mxu0 0.0
        %3518 = vmatprep.subr.mxu0 0.0
        %3519 = vmatpush1.msra.mxu0 0.0
        %3520 = vmatprep.subr.mxu0 0.0
        %3521 = vmatpush1.msra.mxu0 0.0
        %3522 = vmatprep.subr.mxu0 0.0
        %3523 = vmatpush1.msra.mxu0 0.0
        %3524 = vmatprep.subr.mxu0 0.0
        %3525 = vmatpush1.msra.mxu0 0.0
        %3526 = vmatprep.subr.mxu0 0.0
        %3527 = vmatpush1.msra.mxu0 0.0
        %3528 = vmatprep.subr.mxu0 0.0
        %3529 = vmatpush1.msra.mxu0 0.0
        %3530 = vmatprep.subr.mxu0 0.0
        %3531 = vmatpush1.msra.mxu0 0.0
        %3532 = vmatprep.subr.mxu0 0.0
        %3533 = vmatpush1.msra.mxu0 0.0
        %3534 = vmatprep.subr.mxu0 0.0
        %3535 = vmatpush1.msra.mxu0 0.0
        %3536 = vmatprep.subr.mxu0 0.0
        %3537 = vmatpush1.msra.mxu0 0.0
        %3538 = vmatprep.subr.mxu0 0.0
        %3539 = vmatpush1.msra.mxu0 0.0
        %3540 = vmatprep.subr.mxu0 0.0
        %3541 = vmatpush1.msra.mxu0 0.0
        %3542 = vmatprep.mubr.f32.mxu0 0.0
        %3543 = vmatmul.mubr.f32.gmra.mrb[0].mxu0 %v3192
        %v3544 = vpop.f32.mrb[0].mxu0
        %v3545 = vadd.f32 %v3189, %v3544
        %v3546 = vpop.f32.mrb[0].mxu0
        %v3547 = vadd.f32 %v3189, %v3546
        %3548 = vdwg.mxu0
        %3549 = vmatprep.subr.mxu0 %v3014
        %3550 = vmatpush1.msra.mxu0 %v3013
        %3551 = vmatprep.subr.mxu0 %v2833
        %3552 = vmatpush1.msra.mxu0 %v2832
        %3553 = vmatprep.subr.mxu0 %v3179
        %3554 = vmatpush1.msra.mxu0 %v3178
        %3555 = vmatprep.subr.mxu0 0.0
        %3556 = vmatpush1.msra.mxu0 0.0
        %3557 = vmatprep.subr.mxu0 0.0
        %3558 = vmatpush1.msra.mxu0 0.0
        %3559 = vmatprep.subr.mxu0 0.0
        %3560 = vmatpush1.msra.mxu0 0.0
        %3561 = vmatprep.subr.mxu0 0.0
        %3562 = vmatpush1.msra.mxu0 0.0
        %3563 = vmatprep.subr.mxu0 0.0
        %3564 = vmatpush1.msra.mxu0 0.0
        %3565 = vmatprep.subr.mxu0 0.0
        %3566 = vmatpush1.msra.mxu0 0.0
        %3567 = vmatprep.subr.mxu0 0.0
        %3568 = vmatpush1.msra.mxu0 0.0
        %3569 = vmatprep.subr.mxu0 0.0
        %3570 = vmatpush1.msra.mxu0 0.0
        %3571 = vmatprep.subr.mxu0 0.0
        %3572 = vmatpush1.msra.mxu0 0.0
        %3573 = vmatprep.subr.mxu0 0.0
        %3574 = vmatpush1.msra.mxu0 0.0
        %3575 = vmatprep.subr.mxu0 0.0
        %3576 = vmatpush1.msra.mxu0 0.0
        %3577 = vmatprep.subr.mxu0 0.0
        %3578 = vmatpush1.msra.mxu0 0.0
        %3579 = vmatprep.subr.mxu0 0.0
        %3580 = vmatpush1.msra.mxu0 0.0
        %3581 = vmatprep.subr.mxu0 0.0
        %3582 = vmatpush1.msra.mxu0 0.0
        %3583 = vmatprep.subr.mxu0 0.0
        %3584 = vmatpush1.msra.mxu0 0.0
        %3585 = vmatprep.subr.mxu0 0.0
        %3586 = vmatpush1.msra.mxu0 0.0
        %3587 = vmatprep.subr.mxu0 0.0
        %3588 = vmatpush1.msra.mxu0 0.0
        %3589 = vmatprep.subr.mxu0 0.0
        %3590 = vmatpush1.msra.mxu0 0.0
        %3591 = vmatprep.subr.mxu0 0.0
        %3592 = vmatpush1.msra.mxu0 0.0
        %3593 = vmatprep.subr.mxu0 0.0
        %3594 = vmatpush1.msra.mxu0 0.0
        %3595 = vmatprep.subr.mxu0 0.0
        %3596 = vmatpush1.msra.mxu0 0.0
        %3597 = vmatprep.subr.mxu0 0.0
        %3598 = vmatpush1.msra.mxu0 0.0
        %3599 = vmatprep.subr.mxu0 0.0
        %3600 = vmatpush1.msra.mxu0 0.0
        %3601 = vmatprep.subr.mxu0 0.0
        %3602 = vmatpush1.msra.mxu0 0.0
        %3603 = vmatprep.subr.mxu0 0.0
        %3604 = vmatpush1.msra.mxu0 0.0
        %3605 = vmatprep.subr.mxu0 0.0
        %3606 = vmatpush1.msra.mxu0 0.0
        %3607 = vmatprep.subr.mxu0 0.0
        %3608 = vmatpush1.msra.mxu0 0.0
        %3609 = vmatprep.subr.mxu0 0.0
        %3610 = vmatpush1.msra.mxu0 0.0
        %3611 = vmatprep.subr.mxu0 0.0
        %3612 = vmatpush1.msra.mxu0 0.0
        %3613 = vmatprep.mubr.f32.mxu0 0.0
        %3614 = vmatmul.mubr.f32.gmra.mrb[0].mxu0 %v3192
        %v3615 = vpop.f32.mrb[0].mxu0
        %v3616 = vadd.f32 %v3189, %v3615
        %v3617 = vpop.f32.mrb[0].mxu0
        %v3618 = vadd.f32 %v3189, %v3617
        %3619 = vdwg.mxu0
        %3620 = vmatprep.subr.mxu0 %v3016
        %3621 = vmatpush1.msra.mxu0 %v3015
        %3622 = vmatprep.subr.mxu0 %v2835
        %3623 = vmatpush1.msra.mxu0 %v2834
        %3624 = vmatprep.subr.mxu0 %v3181
        %3625 = vmatpush1.msra.mxu0 %v3180
        %3626 = vmatprep.subr.mxu0 0.0
        %3627 = vmatpush1.msra.mxu0 0.0
        %3628 = vmatprep.subr.mxu0 0.0
        %3629 = vmatpush1.msra.mxu0 0.0
        %3630 = vmatprep.subr.mxu0 0.0
        %3631 = vmatpush1.msra.mxu0 0.0
        %3632 = vmatprep.subr.mxu0 0.0
        %3633 = vmatpush1.msra.mxu0 0.0
        %3634 = vmatprep.subr.mxu0 0.0
        %3635 = vmatpush1.msra.mxu0 0.0
        %3636 = vmatprep.subr.mxu0 0.0
        %3637 = vmatpush1.msra.mxu0 0.0
        %3638 = vmatprep.subr.mxu0 0.0
        %3639 = vmatpush1.msra.mxu0 0.0
        %3640 = vmatprep.subr.mxu0 0.0
        %3641 = vmatpush1.msra.mxu0 0.0
        %3642 = vmatprep.subr.mxu0 0.0
        %3643 = vmatpush1.msra.mxu0 0.0
        %3644 = vmatprep.subr.mxu0 0.0
        %3645 = vmatpush1.msra.mxu0 0.0
        %3646 = vmatprep.subr.mxu0 0.0
        %3647 = vmatpush1.msra.mxu0 0.0
        %3648 = vmatprep.subr.mxu0 0.0
        %3649 = vmatpush1.msra.mxu0 0.0
        %3650 = vmatprep.subr.mxu0 0.0
        %3651 = vmatpush1.msra.mxu0 0.0
        %3652 = vmatprep.subr.mxu0 0.0
        %3653 = vmatpush1.msra.mxu0 0.0
        %3654 = vmatprep.subr.mxu0 0.0
        %3655 = vmatpush1.msra.mxu0 0.0
        %3656 = vmatprep.subr.mxu0 0.0
        %3657 = vmatpush1.msra.mxu0 0.0
        %3658 = vmatprep.subr.mxu0 0.0
        %3659 = vmatpush1.msra.mxu0 0.0
        %3660 = vmatprep.subr.mxu0 0.0
        %3661 = vmatpush1.msra.mxu0 0.0
        %3662 = vmatprep.subr.mxu0 0.0
        %3663 = vmatpush1.msra.mxu0 0.0
        %3664 = vmatprep.subr.mxu0 0.0
        %3665 = vmatpush1.msra.mxu0 0.0
        %3666 = vmatprep.subr.mxu0 0.0
        %3667 = vmatpush1.msra.mxu0 0.0
        %3668 = vmatprep.subr.mxu0 0.0
        %3669 = vmatpush1.msra.mxu0 0.0
        %3670 = vmatprep.subr.mxu0 0.0
        %3671 = vmatpush1.msra.mxu0 0.0
        %3672 = vmatprep.subr.mxu0 0.0
        %3673 = vmatpush1.msra.mxu0 0.0
        %3674 = vmatprep.subr.mxu0 0.0
        %3675 = vmatpush1.msra.mxu0 0.0
        %3676 = vmatprep.subr.mxu0 0.0
        %3677 = vmatpush1.msra.mxu0 0.0
        %3678 = vmatprep.subr.mxu0 0.0
        %3679 = vmatpush1.msra.mxu0 0.0
        %3680 = vmatprep.subr.mxu0 0.0
        %3681 = vmatpush1.msra.mxu0 0.0
        %3682 = vmatprep.subr.mxu0 0.0
        %3683 = vmatpush1.msra.mxu0 0.0
        %3684 = vmatprep.mubr.f32.mxu0 0.0
        %3685 = vmatmul.mubr.f32.gmra.mrb[0].mxu0 %v3192
        %v3686 = vpop.f32.mrb[0].mxu0
        %v3687 = vadd.f32 %v3189, %v3686
        %v3688 = vpop.f32.mrb[0].mxu0
        %v3689 = vadd.f32 %v3189, %v3688
        %3690 = vdwg.mxu0
        %3691 = vmatprep.subr.mxu0 %v3018
        %3692 = vmatpush1.msra.mxu0 %v3017
        %3693 = vmatprep.subr.mxu0 %v2837
        %3694 = vmatpush1.msra.mxu0 %v2836
        %3695 = vmatprep.subr.mxu0 %v3183
        %3696 = vmatpush1.msra.mxu0 %v3182
        %3697 = vmatprep.subr.mxu0 0.0
        %3698 = vmatpush1.msra.mxu0 0.0
        %3699 = vmatprep.subr.mxu0 0.0
        %3700 = vmatpush1.msra.mxu0 0.0
        %3701 = vmatprep.subr.mxu0 0.0
        %3702 = vmatpush1.msra.mxu0 0.0
        %3703 = vmatprep.subr.mxu0 0.0
        %3704 = vmatpush1.msra.mxu0 0.0
        %3705 = vmatprep.subr.mxu0 0.0
        %3706 = vmatpush1.msra.mxu0 0.0
        %3707 = vmatprep.subr.mxu0 0.0
        %3708 = vmatpush1.msra.mxu0 0.0
        %3709 = vmatprep.subr.mxu0 0.0
        %3710 = vmatpush1.msra.mxu0 0.0
        %3711 = vmatprep.subr.mxu0 0.0
        %3712 = vmatpush1.msra.mxu0 0.0
        %3713 = vmatprep.subr.mxu0 0.0
        %3714 = vmatpush1.msra.mxu0 0.0
        %3715 = vmatprep.subr.mxu0 0.0
        %3716 = vmatpush1.msra.mxu0 0.0
        %3717 = vmatprep.subr.mxu0 0.0
        %3718 = vmatpush1.msra.mxu0 0.0
        %3719 = vmatprep.subr.mxu0 0.0
        %3720 = vmatpush1.msra.mxu0 0.0
        %3721 = vmatprep.subr.mxu0 0.0
        %3722 = vmatpush1.msra.mxu0 0.0
        %3723 = vmatprep.subr.mxu0 0.0
        %3724 = vmatpush1.msra.mxu0 0.0
        %3725 = vmatprep.subr.mxu0 0.0
        %3726 = vmatpush1.msra.mxu0 0.0
        %3727 = vmatprep.subr.mxu0 0.0
        %3728 = vmatpush1.msra.mxu0 0.0
        %3729 = vmatprep.subr.mxu0 0.0
        %3730 = vmatpush1.msra.mxu0 0.0
        %3731 = vmatprep.subr.mxu0 0.0
        %3732 = vmatpush1.msra.mxu0 0.0
        %3733 = vmatprep.subr.mxu0 0.0
        %3734 = vmatpush1.msra.mxu0 0.0
        %3735 = vmatprep.subr.mxu0 0.0
        %3736 = vmatpush1.msra.mxu0 0.0
        %3737 = vmatprep.subr.mxu0 0.0
        %3738 = vmatpush1.msra.mxu0 0.0
        %3739 = vmatprep.subr.mxu0 0.0
        %3740 = vmatpush1.msra.mxu0 0.0
        %3741 = vmatprep.subr.mxu0 0.0
        %3742 = vmatpush1.msra.mxu0 0.0
        %3743 = vmatprep.subr.mxu0 0.0
        %3744 = vmatpush1.msra.mxu0 0.0
        %3745 = vmatprep.subr.mxu0 0.0
        %3746 = vmatpush1.msra.mxu0 0.0
        %3747 = vmatprep.subr.mxu0 0.0
        %3748 = vmatpush1.msra.mxu0 0.0
        %3749 = vmatprep.subr.mxu0 0.0
        %3750 = vmatpush1.msra.mxu0 0.0
        %3751 = vmatprep.subr.mxu0 0.0
        %3752 = vmatpush1.msra.mxu0 0.0
        %3753 = vmatprep.subr.mxu0 0.0
        %3754 = vmatpush1.msra.mxu0 0.0
        %3755 = vmatprep.mubr.f32.mxu0 0.0
        %3756 = vmatmul.mubr.f32.gmra.mrb[0].mxu0 %v3192
        %v3757 = vpop.f32.mrb[0].mxu0
        %v3758 = vadd.f32 %v3189, %v3757
        %v3759 = vpop.f32.mrb[0].mxu0
        %v3760 = vadd.f32 %v3189, %v3759
        %3761 = vdwg.mxu0
        %v3762 = vld [vmem:[#allocation22] sm:$0xff]
        %3764 = vset.pattern.permute.xlu0 0
        %3765 = vperm.xlu0 %3764, %v3762
        %v3766 = vpop.permute.xlu0 %3765
        %v3768 = vmul.f32 %v3261, %v3766
        %v3769 = vmul.f32 %v3263, %v3766
        %v3770 = vmul.f32 %v3332, %v3766
        %v3771 = vmul.f32 %v3334, %v3766
        %v3772 = vmul.f32 %v3403, %v3766
        %v3773 = vmul.f32 %v3405, %v3766
        %v3774 = vmul.f32 %v3474, %v3766
        %v3775 = vmul.f32 %v3476, %v3766
        %v3776 = vmul.f32 %v3545, %v3766
        %v3777 = vmul.f32 %v3547, %v3766
        %v3778 = vmul.f32 %v3616, %v3766
        %v3779 = vmul.f32 %v3618, %v3766
        %v3780 = vmul.f32 %v3687, %v3766
        %v3781 = vmul.f32 %v3689, %v3766
        %v3782 = vmul.f32 %v3758, %v3766
        %v3783 = vmul.f32 %v3760, %v3766
        %v3784 = vld [vmem:[#allocation23] sm:$0xff]
        %3786 = vset.pattern.permute.xlu0 0
        %3787 = vperm.xlu0 %3786, %v3784
        %v3788 = vpop.permute.xlu0 %3787
        %v3790 = vadd.f32 %v3768, %v3788
        %v3791 = vadd.f32 %v3769, %v3788
        %v3792 = vadd.f32 %v3770, %v3788
        %v3793 = vadd.f32 %v3771, %v3788
        %v3794 = vadd.f32 %v3772, %v3788
        %v3795 = vadd.f32 %v3773, %v3788
        %v3796 = vadd.f32 %v3774, %v3788
        %v3797 = vadd.f32 %v3775, %v3788
        %v3798 = vadd.f32 %v3776, %v3788
        %v3799 = vadd.f32 %v3777, %v3788
        %v3800 = vadd.f32 %v3778, %v3788
        %v3801 = vadd.f32 %v3779, %v3788
        %v3802 = vadd.f32 %v3780, %v3788
        %v3803 = vadd.f32 %v3781, %v3788
        %v3804 = vadd.f32 %v3782, %v3788
        %v3805 = vadd.f32 %v3783, %v3788
        %v3806 = vadd.f32 %v3790, %v649
        %v3807 = vadd.f32 %v3791, %v650
        %v3808 = vadd.f32 %v3792, %v651
        %v3809 = vadd.f32 %v3793, %v652
        %v3810 = vadd.f32 %v3794, %v653
        %v3811 = vadd.f32 %v3795, %v654
        %v3812 = vadd.f32 %v3796, %v655
        %v3813 = vadd.f32 %v3797, %v656
        %v3814 = vadd.f32 %v3798, %v657
        %v3815 = vadd.f32 %v3799, %v658
        %v3816 = vadd.f32 %v3800, %v659
        %v3817 = vadd.f32 %v3801, %v660
        %v3818 = vadd.f32 %v3802, %v661
        %v3819 = vadd.f32 %v3803, %v662
        %v3820 = vadd.f32 %v3804, %v663
        %v3821 = vadd.f32 %v3805, %v664
        %v3822 = vmax.f32 %v3806, 0.0
        %v3823 = vmax.f32 %v3807, 0.0
        %v3824 = vmax.f32 %v3808, 0.0
        %v3825 = vmax.f32 %v3809, 0.0
        %v3826 = vmax.f32 %v3810, 0.0
        %v3827 = vmax.f32 %v3811, 0.0
        %v3828 = vmax.f32 %v3812, 0.0
        %v3829 = vmax.f32 %v3813, 0.0
        %v3830 = vmax.f32 %v3814, 0.0
        %v3831 = vmax.f32 %v3815, 0.0
        %v3832 = vmax.f32 %v3816, 0.0
        %v3833 = vmax.f32 %v3817, 0.0
        %v3834 = vmax.f32 %v3818, 0.0
        %v3835 = vmax.f32 %v3819, 0.0
        %v3836 = vmax.f32 %v3820, 0.0
        %v3837 = vmax.f32 %v3821, 0.0
        %3838 = vst [vmem:[%s646] sm:$0xff] %v3822
        %3839 = vst [vmem:[%s646 + $0x8] sm:$0xff] %v3823
        %3840 = vst [vmem:[%s646 + $0x10] sm:$0xff] %v3824
        %3841 = vst [vmem:[%s646 + $0x18] sm:$0xff] %v3825
        %3842 = vst [vmem:[%s646 + $0x20] sm:$0xff] %v3826
        %3843 = vst [vmem:[%s646 + $0x28] sm:$0xff] %v3827
        %3844 = vst [vmem:[%s646 + $0x30] sm:$0xff] %v3828
        %3845 = vst [vmem:[%s646 + $0x38] sm:$0xff] %v3829
        %3846 = vst [vmem:[%s646 + $0x40] sm:$0xff] %v3830
        %3847 = vst [vmem:[%s646 + $0x48] sm:$0xff] %v3831
        %3848 = vst [vmem:[%s646 + $0x50] sm:$0xff] %v3832
        %3849 = vst [vmem:[%s646 + $0x58] sm:$0xff] %v3833
        %3850 = vst [vmem:[%s646 + $0x60] sm:$0xff] %v3834
        %3851 = vst [vmem:[%s646 + $0x68] sm:$0xff] %v3835
        %3852 = vst [vmem:[%s646 + $0x70] sm:$0xff] %v3836
        %3853 = vst [vmem:[%s646 + $0x78] sm:$0xff] %v3837
        %s3854 = sand.u32 %s345, 1
        %s3855 = scalar_lea.sflag [#allocation4], %s3854
        %s3856 = sand.u32 %s345, 1
        %s3857 = smul.addr %s3856, 128
        %s3858 = scalar_lea.vmem [#allocation25], %s3857
        // Predicated region
        $region133: #{tpu_custom_call.1} parent=75 // pred_check
          %p3859 = pneg %p355
        $region134: #{tpu_custom_call.1} parent=75 // pred_check_branch
          %3861 = sbr.rel (%p3859) target = $region136
        $region135: #{tpu_custom_call.1} parent=75 // pred_region
          %s3863 = ssub.s32 2048, 2048
          %3864 = vsyncadd %s3855, %s3863
          %s3865 = smul.addr %s38, 16
          %s3866 = smul.addr %s3865, 128
          %s3867 = scalar_lea.hbm %s14, %s3866
          %s3869 = sshll.u32 %s3858, 4
          %s3870 = int_to_ptr.vmem [resolvable:$true] %s3869
          %3872 = dma.vmem_to_hbm [thread:$0]  %s3870, 2048, %s3867, %s3855
        $region136: #{tpu_custom_call.1} parent=75 // pred_fallthru
          _
      $region76: #{tpu_custom_call.1} parent=5 // pred_fallthru
        _
      %p3873 = scmp.le.s32.totalorder 2, %s33
      // Predicated region
      $region137: #{tpu_custom_call.1} parent=5 // pred_check
        %p3874 = pneg %p3873
      $region138: #{tpu_custom_call.1} parent=5 // pred_check_branch
        %3876 = sbr.rel (%p3874) target = $region140
      $region139: #{tpu_custom_call.1} parent=5 // pred_region
        %s3877 = ssub.s32 %s33, 2
        // Predicated region
        $region141: #{tpu_custom_call.1} parent=139 // pred_check
          %p3878 = pneg %p361
        $region142: #{tpu_custom_call.1} parent=139 // pred_check_branch
          %3880 = sbr.rel (%p3878) target = $region144
        $region143: #{tpu_custom_call.1} parent=139 // pred_region
          %s3881 = sand.u32 %s346, 1
          %s3882 = scalar_lea.sflag [#allocation4], %s3881
          %s3883 = sand.u32 %s346, 1
          %s3884 = smul.addr %s3883, 128
          %s3885 = scalar_lea.vmem [#allocation25], %s3884
          %3886 = dma.done %s3882, 2048
        $region144: #{tpu_custom_call.1} parent=139 // pred_fallthru
          _
      $region140: #{tpu_custom_call.1} parent=5 // pred_fallthru
        _
    $region6: #{tpu_custom_call.1} parent=1 // loop_footer
      %s37 = sadd.s32 1, %s33
    $region7: #{tpu_custom_call.1} parent=1 // loop_footer_branch
      %32 = sbr.rel target = $region3
    $region8: #{tpu_custom_call.1} parent=1 // loop_exit
      _
    %3887 = vsyncpa [#allocation3], 1
    %s3888 = scalar_lea.sflag [#allocation3], 1
    %3889 = vsyncpa %s3888, 1
    %3890 = vsyncpa [#allocation6], 1
    %3891 = vsyncpa [#allocation9], 1
    %3892 = vsyncpa [#allocation12], 1
    %3893 = vsyncpa [#allocation15], 1
    %3894 = vsyncpa [#allocation18], 1
    %3895 = vsyncpa [#allocation21], 1
    %3896 = vsyncpa [#allocation24], 1
    %3897 = vsyncpa [#allocation4], 1
    %s3898 = scalar_lea.sflag [#allocation4], 1
    %3899 = vsyncpa %s3898, 1

</llo_original>
